<compile_context>
chip_gen: v6e
topology: v6e:2x2x1
jax: 0.10.0
libtpu: 0.0.40
codegen_flags: <defaults>
</compile_context>

<pallas_src>
import functools

import jax
import jax.numpy as jnp
from jax.experimental import pallas as pl
from jax.experimental.pallas import tpu as pltpu

EPS = 1e-5
LANES = 128
EPILOGUE_ROW_CAP = 1024          # rows per elementwise-epilogue tile
VMEM_LIMIT = 48 * 1024 * 1024    # <= v7x per-core VMEM, fine on v5e/v6e


def _round_up(x, m):
    return (x + m - 1) // m * m


def _compiler_params():
    return pltpu.CompilerParams(
        dimension_semantics=("parallel",),   # independent tiles -> megacore on v7x
        vmem_limit_bytes=VMEM_LIMIT,
    )


def _pick_tile_rows(rows, cap=EPILOGUE_ROW_CAP):
    """Largest multiple-of-8 divisor of `rows` that is <= cap, preferring at
    least two tiles (so both v7x TensorCores get work)."""
    if rows % 8 != 0:
        return rows
    target = min(cap, rows // 2 if rows >= 16 else rows)
    target = max(8, (target // 8) * 8)
    d = target
    while d >= 8:
        if rows % d == 0:
            return d
        d -= 8
    return rows


# ----------------------------- Pallas kernels ------------------------------

def _make_conv_stats_kernel(taps, ho, wo, cpad):
    """Fused shift-and-matmul conv (+ per-channel sum / sumsq statistics).

    x_ref:    (SH, SW, Cin) bf16  spatially padded (phase-stacked) image
    w_ref:    (ntaps, Cin, Cpad) bf16  per-tap weight matrices
    y_ref:    (Ho*Wo, Cpad) bf16  conv output (pre-BN)
    stats_ref:(2, Cpad) f32       row 0 = col sum, row 1 = col sum of squares
    """
    def kernel(x_ref, w_ref, y_ref, stats_ref):
        cin = x_ref.shape[-1]
        acc = jnp.zeros((ho * wo, cpad), jnp.float32)
        for t, (r0, c0) in enumerate(taps):
            xt = x_ref[r0:r0 + ho, c0:c0 + wo, :]            # contiguous tap slice
            acc = acc + jnp.dot(xt.reshape(ho * wo, cin), w_ref[t],
                                preferred_element_type=jnp.float32)
        y_ref[...] = acc.astype(y_ref.dtype)
        stats_ref[...] = jnp.concatenate(
            [jnp.sum(acc, axis=0, keepdims=True),
             jnp.sum(acc * acc, axis=0, keepdims=True)], axis=0)
    return kernel


def _bn_relu_kernel(y_ref, s_ref, t_ref, o_ref):
    # relu(y * scale + shift); scale/shift fold gamma, beta, mean, var.
    o_ref[...] = jnp.maximum(
        y_ref[...].astype(jnp.float32) * s_ref[...] + t_ref[...], 0.0
    ).astype(o_ref.dtype)


def _bn_add_bn_relu_kernel(y2_ref, yid_ref, s2_ref, t2_ref, sid_ref, tid_ref, o_ref):
    # relu(BN(conv2) + BN(1x1 projection)), both BNs pre-folded to scale/shift.
    o_ref[...] = jnp.maximum(
        y2_ref[...].astype(jnp.float32) * s2_ref[...] + t2_ref[...]
        + yid_ref[...].astype(jnp.float32) * sid_ref[...] + tid_ref[...],
        0.0,
    ).astype(o_ref.dtype)


def _bn_add_relu_kernel(y2_ref, res_ref, s2_ref, t2_ref, o_ref):
    # relu(BN(conv2) + residual); residual comes in at its natural channel
    # width and is padded to Cpad in-kernel (no padded HBM copy).
    res = res_ref[...].astype(jnp.float32)
    rows, cin = res.shape
    cpad = o_ref.shape[-1]
    if cpad > cin:
        res = jnp.concatenate(
            [res, jnp.zeros((rows, cpad - cin), jnp.float32)], axis=-1)
    o_ref[...] = jnp.maximum(
        y2_ref[...].astype(jnp.float32) * s2_ref[...] + t2_ref[...] + res, 0.0
    ).astype(o_ref.dtype)


# --------------------------- pallas_call wrappers ---------------------------

def _conv_taps_call(xph, w_stack, taps, ho, wo, cpad):
    """Run the fused tap-conv + stats kernel with one grid step per image."""
    n, sh, sw, cinp = xph.shape
    ntaps = w_stack.shape[0]
    kernel = _make_conv_stats_kernel(taps, ho, wo, cpad)
    y, stats = pl.pallas_call(
        kernel,
        out_shape=(jax.ShapeDtypeStruct((n, ho * wo, cpad), jnp.bfloat16),
                   jax.ShapeDtypeStruct((n, 2, cpad), jnp.float32)),
        grid=(n,),
        in_specs=[
            pl.BlockSpec((None, sh, sw, cinp), lambda i: (i, 0, 0, 0)),
            pl.BlockSpec((ntaps, cinp, cpad), lambda i: (0, 0, 0)),   # resident
        ],
        out_specs=(
            pl.BlockSpec((None, ho * wo, cpad), lambda i: (i, 0, 0)),
            pl.BlockSpec((None, 2, cpad), lambda i: (i, 0, 0)),
        ),
        compiler_params=_compiler_params(),
    )(xph, w_stack)
    col_sum = jnp.sum(stats[:, 0, :], axis=0)
    col_sumsq = jnp.sum(stats[:, 1, :], axis=0)
    return y, col_sum, col_sumsq, (ho, wo)


def _conv3x3_fused(x_nhwc, w_oihw, stride, cpad):
    """3x3 conv (padding=1, given stride), bias-free (bias cancels through BN).

    Returns y (N, Ho*Wo, Cpad) bf16, per-channel sum / sumsq, and (Ho, Wo).
    """
    n, h, w, cin = x_nhwc.shape
    cout, cin_w = w_oihw.shape[0], w_oihw.shape[1]
    s = stride
    cin_pad = _round_up(cin, 8)
    ho = (h - 1) // s + 1
    wo = (w - 1) // s + 1
    hp = _round_up(h + 2, s)
    wp = _round_up(w + 2, s)
    # One cheap prep copy: spatial pad (+ channel pad to a sublane multiple),
    # cast to bf16.  This replaces the old 9x im2col blow-up.
    xp = jnp.pad(x_nhwc.astype(jnp.bfloat16),
                 ((0, 0), (1, hp - h - 1), (1, wp - w - 1), (0, cin_pad - cin)))
    if s == 1:
        xph, hph = xp, hp
    else:
        # Space-to-depth: stride phases stacked along H so in-kernel tap
        # slices are contiguous even for the strided conv.
        hph = hp // s
        xph = jnp.concatenate(
            [xp[:, p::s, q::s, :] for p in range(s) for q in range(s)], axis=1)
    taps = [(((di % s) * s + (dj % s)) * hph + di // s, dj // s)
            for di in range(3) for dj in range(3)]
    wt = jnp.transpose(w_oihw.astype(jnp.float32), (2, 3, 1, 0)).reshape(9, cin_w, cout)
    w_stack = jnp.zeros((9, cin_pad, cpad), jnp.float32).at[:, :cin_w, :cout].set(wt)
    return _conv_taps_call(xph, w_stack.astype(jnp.bfloat16), taps, ho, wo, cpad)


def _conv1x1_fused(x_nhwc, w_oihw, stride, cpad):
    """1x1 projection conv (stride, padding=0) as a single-tap fused conv."""
    n, h, w, cin = x_nhwc.shape
    cout = w_oihw.shape[0]
    cin_pad = _round_up(cin, 8)
    xs = jnp.pad(x_nhwc[:, ::stride, ::stride, :].astype(jnp.bfloat16),
                 ((0, 0), (0, 0), (0, 0), (0, cin_pad - cin)))
    ho, wo = xs.shape[1], xs.shape[2]
    wmat = jnp.transpose(w_oihw[:, :, 0, 0].astype(jnp.float32), (1, 0))
    w_stack = jnp.zeros((1, cin_pad, cpad), jnp.float32).at[0, :cin, :cout].set(wmat)
    return _conv_taps_call(xs, w_stack.astype(jnp.bfloat16), [(0, 0)], ho, wo, cpad)


def _elementwise_call(kernel, data_args, param_args, out_dtype):
    """Tiled (over rows of the flattened (M, C) arrays) BN / add / ReLU epilogue."""
    rows, cpad = data_args[0].shape
    te = _pick_tile_rows(rows)
    in_specs = ([pl.BlockSpec((te, a.shape[1]), lambda i: (i, 0)) for a in data_args]
                + [pl.BlockSpec((1, cpad), lambda i: (0, 0)) for _ in param_args])
    return pl.pallas_call(
        kernel,
        out_shape=jax.ShapeDtypeStruct((rows, cpad), out_dtype),
        grid=(rows // te,),
        in_specs=in_specs,
        out_specs=pl.BlockSpec((te, cpad), lambda i: (i, 0)),
        compiler_params=_compiler_params(),
    )(*data_args, *param_args)


def _bn_scale_shift(col_sum, col_sumsq, m, gamma_pad, beta_pad):
    """Fold batch stats + affine params into per-channel scale/shift (tiny)."""
    mean = col_sum / m
    var = jnp.maximum(col_sumsq / m - mean * mean, 0.0)
    scale = gamma_pad * jax.lax.rsqrt(var + EPS)
    shift = beta_pad - mean * scale
    return scale.reshape(1, -1), shift.reshape(1, -1)


# ------------------------------- forward pass -------------------------------

@functools.partial(jax.jit, static_argnames=("stride",))
def residual_block_forward(x_nchw, params, stride=1):
    x = jnp.transpose(x_nchw, (0, 2, 3, 1)).astype(jnp.float32)   # NCHW -> NHWC
    n, h, w, cin = x.shape
    cout = params["w1"].shape[0]
    cpad = _round_up(cout, LANES)   # lane-dense output channel dim

    def padc(v):
        return jnp.zeros((cpad,), jnp.float32).at[:cout].set(v.astype(jnp.float32))

    # conv1 (+ fused BN stats) -> BN + ReLU epilogue (bf16 intermediate).
    # Conv biases are dropped everywhere: they cancel exactly through BN.
    y1, s1, ss1, (ho, wo) = _conv3x3_fused(x, params["w1"], stride, cpad)
    m = n * ho * wo
    sc1, sh1 = _bn_scale_shift(s1, ss1, m, padc(params["g1"]), padc(params["be1"]))
    h1 = _elementwise_call(_bn_relu_kernel, [y1.reshape(m, cpad)], [sc1, sh1],
                           out_dtype=jnp.bfloat16)

    # conv2 on the Cpad-channel h1 (its padded channels are exactly zero).
    h1_img = h1.reshape(n, ho, wo, cpad)
    y2, s2, ss2, _ = _conv3x3_fused(h1_img, params["w2"], 1, cpad)
    sc2, sh2 = _bn_scale_shift(s2, ss2, m, padc(params["g2"]), padc(params["be2"]))

    if stride != 1 or cin != cout:
        # 1x1 projection conv + its BN, then fused BN+BN+add+ReLU epilogue.
        yid, sid_s, sid_ss, _ = _conv1x1_fused(x, params["wid"], stride, cpad)
        scid, shid = _bn_scale_shift(
            sid_s, sid_ss, m, padc(params["gid"]), padc(params["beid"]))
        out = _elementwise_call(
            _bn_add_bn_relu_kernel,
            [y2.reshape(m, cpad), yid.reshape(m, cpad)],
            [sc2, sh2, scid, shid], out_dtype=jnp.float32)
    else:
        # Identity residual fed at its natural width; padded in-kernel.
        res = x.reshape(m, cin)
        out = _elementwise_call(
            _bn_add_relu_kernel, [y2.reshape(m, cpad), res],
            [sc2, sh2], out_dtype=jnp.float32)

    out = out[:, :cout].reshape(n, ho, wo, cout)
    return jnp.transpose(out, (0, 3, 1, 2))   # back to NCHW


# ------------------------------ reference (JAX) ------------------------------

def _ref_forward(x_nchw, params, stride):
    def conv(x, w, b, s, p):
        y = jax.lax.conv_general_dilated(
            x, w, (s, s), [(p, p), (p, p)],
            dimension_numbers=("NCHW", "OIHW", "NCHW"),
        )
        return y + b[None, :, None, None]

    def bn(y, g, b):
        mean = jnp.mean(y, axis=(0, 2, 3), keepdims=True)
        var = jnp.mean((y - mean) ** 2, axis=(0, 2, 3), keepdims=True)
        return (y - mean) * jax.lax.rsqrt(var + EPS) * g[None, :, None, None] + b[
            None, :, None, None
        ]

    cin = x_nchw.shape[1]
    cout = params["w1"].shape[0]
    out = jax.nn.relu(bn(conv(x_nchw, params["w1"], params["b1"], stride, 1),
                         params["g1"], params["be1"]))
    out = bn(conv(out, params["w2"], params["b2"], 1, 1), params["g2"], params["be2"])
    if stride != 1 or cin != cout:
        res = bn(conv(x_nchw, params["wid"], params["bid"], stride, 0),
                 params["gid"], params["beid"])
    else:
        res = x_nchw
    return jax.nn.relu(out + res)


# ----------------------------------- main ------------------------------------

if __name__ == "__main__":
    key = jax.random.PRNGKey(0)

    def make_params(k, in_dim, out_dim, proj):
        ks = jax.random.split(k, 6)
        p = {
            "w1": 0.1 * jax.random.normal(ks[0], (out_dim, in_dim, 3, 3), jnp.float32),
            "b1": 0.1 * jax.random.normal(ks[1], (out_dim,), jnp.float32),
            "w2": 0.1 * jax.random.normal(ks[2], (out_dim, out_dim, 3, 3), jnp.float32),
            "b2": 0.1 * jax.random.normal(ks[3], (out_dim,), jnp.float32),
            "g1": jnp.ones((out_dim,), jnp.float32),
            "be1": jnp.zeros((out_dim,), jnp.float32),
            "g2": jnp.ones((out_dim,), jnp.float32),
            "be2": jnp.zeros((out_dim,), jnp.float32),
        }
        if proj:
            p["wid"] = 0.1 * jax.random.normal(ks[4], (out_dim, in_dim, 1, 1), jnp.float32)
            p["bid"] = 0.1 * jax.random.normal(ks[5], (out_dim,), jnp.float32)
            p["gid"] = jnp.ones((out_dim,), jnp.float32)
            p["beid"] = jnp.zeros((out_dim,), jnp.float32)
        return p

    k1, k2, kx1, kx2 = jax.random.split(key, 4)

    # Case 1: downsampling block with 1x1 projection (stride 2, 4 -> 8 channels).
    N, in_dim, out_dim, H, W, stride = 2, 4, 8, 16, 16, 2
    params1 = make_params(k1, in_dim, out_dim, proj=True)
    x1 = jax.random.normal(kx1, (N, in_dim, H, W), jnp.float32)
    out1 = jax.block_until_ready(residual_block_forward(x1, params1, stride=stride))
    ref1 = jax.block_until_ready(_ref_forward(x1, params1, stride))
    assert out1.shape == (N, out_dim, H // stride, W // stride), out1.shape
    # bf16 MXU inputs / bf16 intermediates with f32 accumulation -> few % tol.
    assert jnp.allclose(out1, ref1, atol=5e-2, rtol=5e-2), float(
        jnp.max(jnp.abs(out1 - ref1)))

    # Case 2: plain identity path (stride 1, same channels) — exercises the
    # multi-tile epilogue grid and the residual-add path.
    params2 = make_params(k2, 8, 8, proj=False)
    x2 = jax.random.normal(kx2, (2, 8, 16, 16), jnp.float32)
    out2 = jax.block_until_ready(residual_block_forward(x2, params2, stride=1))
    ref2 = jax.block_until_ready(_ref_forward(x2, params2, 1))
    assert out2.shape == (2, 8, 16, 16), out2.shape
    assert jnp.allclose(out2, ref2, atol=5e-2, rtol=5e-2), float(
        jnp.max(jnp.abs(out2 - ref2)))

    print("KERNEL_OK")
</pallas_src>

<mosaic_0001>
module attributes {stable_mosaic.version = 11 : i64} {
  func.func @kernel(%arg0: i32, %arg1: memref<1x8x8x8xbf16, #tpu.memory_space<vmem>>, %arg2: memref<1x8x128xbf16, #tpu.memory_space<vmem>>, %arg3: memref<1x64x128xbf16, #tpu.memory_space<vmem>>, %arg4: memref<1x2x128xf32, #tpu.memory_space<vmem>>) attributes {dimension_semantics = [#tpu.dimension_semantics<parallel>], iteration_bounds = array<i64: 2>, scalar_prefetch = 0 : i64, scratch_operands = 0 : i64, tpu.core_type = #tpu.core_type<tc>, window_params = [{transform_indices = @transform_0, window_bounds = array<i64: 1, 8, 8, 8>}, {pipeline_mode = #tpu.pipeline_mode<synchronous>, transform_indices = @transform_1, window_bounds = array<i64: 1, 8, 128>}, {transform_indices = @transform_2, window_bounds = array<i64: 1, 64, 128>}, {transform_indices = @transform_3, window_bounds = array<i64: 1, 2, 128>}]} {
    %cst = arith.constant 0.000000e+00 : f32
    %0 = vector.broadcast %cst : f32 to vector<64x128xf32>
    %c0 = arith.constant 0 : index
    %c0_0 = arith.constant 0 : index
    %c0_1 = arith.constant 0 : index
    %c0_2 = arith.constant 0 : index
    %1 = vector.load %arg1[%c0, %c0_0, %c0_1, %c0_2] : memref<1x8x8x8xbf16, #tpu.memory_space<vmem>>, vector<1x8x8x8xbf16>
    %2 = vector.shape_cast %1 : vector<1x8x8x8xbf16> to vector<8x8x8xbf16>
    %3 = vector.shape_cast %2 : vector<8x8x8xbf16> to vector<64x8xbf16>
    %c0_3 = arith.constant 0 : index
    %c0_4 = arith.constant 0 : index
    %c0_5 = arith.constant 0 : index
    %4 = vector.load %arg2[%c0_3, %c0_4, %c0_5] : memref<1x8x128xbf16, #tpu.memory_space<vmem>>, vector<1x8x128xbf16>
    %5 = vector.shape_cast %4 : vector<1x8x128xbf16> to vector<8x128xbf16>
    %cst_6 = arith.constant dense<0.000000e+00> : vector<64x128xf32>
    %6 = tpu.matmul %3, %5, %cst_6 {dimension_numbers = #tpu.dot_dimension_numbers<[1], [0], [0], [1], [0, 0, 1, 1], [], []>} : vector<64x8xbf16>, vector<8x128xbf16>, vector<64x128xf32> -> vector<64x128xf32>
    %7 = arith.addf %0, %6 : vector<64x128xf32>
    %8 = arith.truncf %7 : vector<64x128xf32> to vector<64x128xbf16>
    %c0_7 = arith.constant 0 : index
    %c0_8 = arith.constant 0 : index
    %c0_9 = arith.constant 0 : index
    %9 = vector.load %arg3[%c0_7, %c0_8, %c0_9] : memref<1x64x128xbf16, #tpu.memory_space<vmem>>, vector<1x64x128xbf16>
    %10 = vector.shape_cast %9 : vector<1x64x128xbf16> to vector<64x128xbf16>
    %11 = vector.shape_cast %8 : vector<64x128xbf16> to vector<1x64x128xbf16>
    tpu.vector_store %arg3[%c0_7, %c0_8, %c0_9], %11 {strides = array<i32>} : memref<1x64x128xbf16, #tpu.memory_space<vmem>>, vector<1x64x128xbf16>,
    %cst_10 = arith.constant dense<0.000000e+00> : vector<128xf32>
    %12 = vector.multi_reduction <add>, %7, %cst_10 [0] : vector<64x128xf32> to vector<128xf32>
    %13 = vector.shape_cast %12 : vector<128xf32> to vector<1x128xf32>
    %14 = arith.mulf %7, %7 : vector<64x128xf32>
    %cst_11 = arith.constant dense<0.000000e+00> : vector<128xf32>
    %15 = vector.multi_reduction <add>, %14, %cst_11 [0] : vector<64x128xf32> to vector<128xf32>
    %16 = vector.shape_cast %15 : vector<128xf32> to vector<1x128xf32>
    %17 = tpu.concatenate %13, %16 in 0 : vector<1x128xf32>, vector<1x128xf32> -> vector<2x128xf32>
    %c0_12 = arith.constant 0 : index
    %c0_13 = arith.constant 0 : index
    %c0_14 = arith.constant 0 : index
    %18 = vector.load %arg4[%c0_12, %c0_13, %c0_14] : memref<1x2x128xf32, #tpu.memory_space<vmem>>, vector<1x2x128xf32>
    %19 = vector.shape_cast %18 : vector<1x2x128xf32> to vector<2x128xf32>
    %20 = vector.shape_cast %17 : vector<2x128xf32> to vector<1x2x128xf32>
    tpu.vector_store %arg4[%c0_12, %c0_13, %c0_14], %20 {strides = array<i32>} : memref<1x2x128xf32, #tpu.memory_space<vmem>>, vector<1x2x128xf32>,
    return
  }
  func.func @transform_0(%arg0: i32) -> (i32, i32, i32, i32) {
    %c0_i32 = arith.constant 0 : i32
    %c0_i32_0 = arith.constant 0 : i32
    %c0_i32_1 = arith.constant 0 : i32
    %c0_i32_2 = arith.constant 0 : i32
    return %arg0, %c0_i32, %c0_i32_0, %c0_i32_1 : i32, i32, i32, i32
  }
  func.func @transform_1(%arg0: i32) -> (i32, i32, i32) {
    %c0_i32 = arith.constant 0 : i32
    %c0_i32_0 = arith.constant 0 : i32
    %c0_i32_1 = arith.constant 0 : i32
    %c0_i32_2 = arith.constant 0 : i32
    return %c0_i32, %c0_i32_0, %c0_i32_1 : i32, i32, i32
  }
  func.func @transform_2(%arg0: i32) -> (i32, i32, i32) {
    %c0_i32 = arith.constant 0 : i32
    %c0_i32_0 = arith.constant 0 : i32
    %c0_i32_1 = arith.constant 0 : i32
    return %arg0, %c0_i32, %c0_i32_0 : i32, i32, i32
  }
  func.func @transform_3(%arg0: i32) -> (i32, i32, i32) {
    %c0_i32 = arith.constant 0 : i32
    %c0_i32_0 = arith.constant 0 : i32
    %c0_i32_1 = arith.constant 0 : i32
    return %arg0, %c0_i32, %c0_i32_0 : i32, i32, i32
  }
}

module attributes {stable_mosaic.version = 11 : i64} {
  func.func @kernel(%arg0: i32, %arg1: memref<1x36x9x8xbf16, #tpu.memory_space<vmem>>, %arg2: memref<9x8x128xbf16, #tpu.memory_space<vmem>>, %arg3: memref<1x64x128xbf16, #tpu.memory_space<vmem>>, %arg4: memref<1x2x128xf32, #tpu.memory_space<vmem>>) attributes {dimension_semantics = [#tpu.dimension_semantics<parallel>], iteration_bounds = array<i64: 2>, scalar_prefetch = 0 : i64, scratch_operands = 0 : i64, tpu.core_type = #tpu.core_type<tc>, window_params = [{transform_indices = @transform_0, window_bounds = array<i64: 1, 36, 9, 8>}, {pipeline_mode = #tpu.pipeline_mode<synchronous>, transform_indices = @transform_1, window_bounds = array<i64: 9, 8, 128>}, {transform_indices = @transform_2, window_bounds = array<i64: 1, 64, 128>}, {transform_indices = @transform_3, window_bounds = array<i64: 1, 2, 128>}]} {
    %cst = arith.constant 0.000000e+00 : f32
    %0 = vector.broadcast %cst : f32 to vector<64x128xf32>
    %c0 = arith.constant 0 : index
    %c0_0 = arith.constant 0 : index
    %c0_1 = arith.constant 0 : index
    %c0_2 = arith.constant 0 : index
    %1 = vector.load %arg1[%c0, %c0_0, %c0_1, %c0_2] : memref<1x36x9x8xbf16, #tpu.memory_space<vmem>>, vector<1x8x8x8xbf16>
    %2 = vector.shape_cast %1 : vector<1x8x8x8xbf16> to vector<8x8x8xbf16>
    %3 = vector.shape_cast %2 : vector<8x8x8xbf16> to vector<64x8xbf16>
    %c0_3 = arith.constant 0 : index
    %c0_4 = arith.constant 0 : index
    %c0_5 = arith.constant 0 : index
    %4 = vector.load %arg2[%c0_3, %c0_4, %c0_5] : memref<9x8x128xbf16, #tpu.memory_space<vmem>>, vector<1x8x128xbf16>
    %5 = vector.shape_cast %4 : vector<1x8x128xbf16> to vector<8x128xbf16>
    %cst_6 = arith.constant dense<0.000000e+00> : vector<64x128xf32>
    %6 = tpu.matmul %3, %5, %cst_6 {dimension_numbers = #tpu.dot_dimension_numbers<[1], [0], [0], [1], [0, 0, 1, 1], [], []>} : vector<64x8xbf16>, vector<8x128xbf16>, vector<64x128xf32> -> vector<64x128xf32>
    %7 = arith.addf %0, %6 : vector<64x128xf32>
    %c0_7 = arith.constant 0 : index
    %c9 = arith.constant 9 : index
    %c0_8 = arith.constant 0 : index
    %c0_9 = arith.constant 0 : index
    %8 = vector.load %arg1[%c0_7, %c9, %c0_8, %c0_9] : memref<1x36x9x8xbf16, #tpu.memory_space<vmem>>, vector<1x8x8x8xbf16>
    %9 = vector.shape_cast %8 : vector<1x8x8x8xbf16> to vector<8x8x8xbf16>
    %10 = vector.shape_cast %9 : vector<8x8x8xbf16> to vector<64x8xbf16>
    %c1 = arith.constant 1 : index
    %c0_10 = arith.constant 0 : index
    %c0_11 = arith.constant 0 : index
    %11 = vector.load %arg2[%c1, %c0_10, %c0_11] : memref<9x8x128xbf16, #tpu.memory_space<vmem>>, vector<1x8x128xbf16>
    %12 = vector.shape_cast %11 : vector<1x8x128xbf16> to vector<8x128xbf16>
    %cst_12 = arith.constant dense<0.000000e+00> : vector<64x128xf32>
    %13 = tpu.matmul %10, %12, %cst_12 {dimension_numbers = #tpu.dot_dimension_numbers<[1], [0], [0], [1], [0, 0, 1, 1], [], []>} : vector<64x8xbf16>, vector<8x128xbf16>, vector<64x128xf32> -> vector<64x128xf32>
    %14 = arith.addf %7, %13 : vector<64x128xf32>
    %c0_13 = arith.constant 0 : index
    %c0_14 = arith.constant 0 : index
    %c1_15 = arith.constant 1 : index
    %c0_16 = arith.constant 0 : index
    %15 = vector.load %arg1[%c0_13, %c0_14, %c1_15, %c0_16] : memref<1x36x9x8xbf16, #tpu.memory_space<vmem>>, vector<1x8x8x8xbf16>
    %16 = vector.shape_cast %15 : vector<1x8x8x8xbf16> to vector<8x8x8xbf16>
    %17 = vector.shape_cast %16 : vector<8x8x8xbf16> to vector<64x8xbf16>
    %c2 = arith.constant 2 : index
    %c0_17 = arith.constant 0 : index
    %c0_18 = arith.constant 0 : index
    %18 = vector.load %arg2[%c2, %c0_17, %c0_18] : memref<9x8x128xbf16, #tpu.memory_space<vmem>>, vector<1x8x128xbf16>
    %19 = vector.shape_cast %18 : vector<1x8x128xbf16> to vector<8x128xbf16>
    %cst_19 = arith.constant dense<0.000000e+00> : vector<64x128xf32>
    %20 = tpu.matmul %17, %19, %cst_19 {dimension_numbers = #tpu.dot_dimension_numbers<[1], [0], [0], [1], [0, 0, 1, 1], [], []>} : vector<64x8xbf16>, vector<8x128xbf16>, vector<64x128xf32> -> vector<64x128xf32>
    %21 = arith.addf %14, %20 : vector<64x128xf32>
    %c0_20 = arith.constant 0 : index
    %c18 = arith.constant 18 : index
    %c0_21 = arith.constant 0 : index
    %c0_22 = arith.constant 0 : index
    %22 = vector.load %arg1[%c0_20, %c18, %c0_21, %c0_22] : memref<1x36x9x8xbf16, #tpu.memory_space<vmem>>, vector<1x8x8x8xbf16>
    %23 = vector.shape_cast %22 : vector<1x8x8x8xbf16> to vector<8x8x8xbf16>
    %24 = vector.shape_cast %23 : vector<8x8x8xbf16> to vector<64x8xbf16>
    %c3 = arith.constant 3 : index
    %c0_23 = arith.constant 0 : index
    %c0_24 = arith.constant 0 : index
    %25 = vector.load %arg2[%c3, %c0_23, %c0_24] : memref<9x8x128xbf16, #tpu.memory_space<vmem>>, vector<1x8x128xbf16>
    %26 = vector.shape_cast %25 : vector<1x8x128xbf16> to vector<8x128xbf16>
    %cst_25 = arith.constant dense<0.000000e+00> : vector<64x128xf32>
    %27 = tpu.matmul %24, %26, %cst_25 {dimension_numbers = #tpu.dot_dimension_numbers<[1], [0], [0], [1], [0, 0, 1, 1], [], []>} : vector<64x8xbf16>, vector<8x128xbf16>, vector<64x128xf32> -> vector<64x128xf32>
    %28 = arith.addf %21, %27 : vector<64x128xf32>
    %c0_26 = arith.constant 0 : index
    %c27 = arith.constant 27 : index
    %c0_27 = arith.constant 0 : index
    %c0_28 = arith.constant 0 : index
    %29 = vector.load %arg1[%c0_26, %c27, %c0_27, %c0_28] : memref<1x36x9x8xbf16, #tpu.memory_space<vmem>>, vector<1x8x8x8xbf16>
    %30 = vector.shape_cast %29 : vector<1x8x8x8xbf16> to vector<8x8x8xbf16>
    %31 = vector.shape_cast %30 : vector<8x8x8xbf16> to vector<64x8xbf16>
    %c4 = arith.constant 4 : index
    %c0_29 = arith.constant 0 : index
    %c0_30 = arith.constant 0 : index
    %32 = vector.load %arg2[%c4, %c0_29, %c0_30] : memref<9x8x128xbf16, #tpu.memory_space<vmem>>, vector<1x8x128xbf16>
    %33 = vector.shape_cast %32 : vector<1x8x128xbf16> to vector<8x128xbf16>
    %cst_31 = arith.constant dense<0.000000e+00> : vector<64x128xf32>
    %34 = tpu.matmul %31, %33, %cst_31 {dimension_numbers = #tpu.dot_dimension_numbers<[1], [0], [0], [1], [0, 0, 1, 1], [], []>} : vector<64x8xbf16>, vector<8x128xbf16>, vector<64x128xf32> -> vector<64x128xf32>
    %35 = arith.addf %28, %34 : vector<64x128xf32>
    %c0_32 = arith.constant 0 : index
    %c18_33 = arith.constant 18 : index
    %c1_34 = arith.constant 1 : index
    %c0_35 = arith.constant 0 : index
    %36 = vector.load %arg1[%c0_32, %c18_33, %c1_34, %c0_35] : memref<1x36x9x8xbf16, #tpu.memory_space<vmem>>, vector<1x8x8x8xbf16>
    %37 = vector.shape_cast %36 : vector<1x8x8x8xbf16> to vector<8x8x8xbf16>
    %38 = vector.shape_cast %37 : vector<8x8x8xbf16> to vector<64x8xbf16>
    %c5 = arith.constant 5 : index
    %c0_36 = arith.constant 0 : index
    %c0_37 = arith.constant 0 : index
    %39 = vector.load %arg2[%c5, %c0_36, %c0_37] : memref<9x8x128xbf16, #tpu.memory_space<vmem>>, vector<1x8x128xbf16>
    %40 = vector.shape_cast %39 : vector<1x8x128xbf16> to vector<8x128xbf16>
    %cst_38 = arith.constant dense<0.000000e+00> : vector<64x128xf32>
    %41 = tpu.matmul %38, %40, %cst_38 {dimension_numbers = #tpu.dot_dimension_numbers<[1], [0], [0], [1], [0, 0, 1, 1], [], []>} : vector<64x8xbf16>, vector<8x128xbf16>, vector<64x128xf32> -> vector<64x128xf32>
    %42 = arith.addf %35, %41 : vector<64x128xf32>
    %c0_39 = arith.constant 0 : index
    %c1_40 = arith.constant 1 : index
    %c0_41 = arith.constant 0 : index
    %c0_42 = arith.constant 0 : index
    %43 = vector.load %arg1[%c0_39, %c1_40, %c0_41, %c0_42] : memref<1x36x9x8xbf16, #tpu.memory_space<vmem>>, vector<1x8x8x8xbf16>
    %44 = vector.shape_cast %43 : vector<1x8x8x8xbf16> to vector<8x8x8xbf16>
    %45 = vector.shape_cast %44 : vector<8x8x8xbf16> to vector<64x8xbf16>
    %c6 = arith.constant 6 : index
    %c0_43 = arith.constant 0 : index
    %c0_44 = arith.constant 0 : index
    %46 = vector.load %arg2[%c6, %c0_43, %c0_44] : memref<9x8x128xbf16, #tpu.memory_space<vmem>>, vector<1x8x128xbf16>
    %47 = vector.shape_cast %46 : vector<1x8x128xbf16> to vector<8x128xbf16>
    %cst_45 = arith.constant dense<0.000000e+00> : vector<64x128xf32>
    %48 = tpu.matmul %45, %47, %cst_45 {dimension_numbers = #tpu.dot_dimension_numbers<[1], [0], [0], [1], [0, 0, 1, 1], [], []>} : vector<64x8xbf16>, vector<8x128xbf16>, vector<64x128xf32> -> vector<64x128xf32>
    %49 = arith.addf %42, %48 : vector<64x128xf32>
    %c0_46 = arith.constant 0 : index
    %c10 = arith.constant 10 : index
    %c0_47 = arith.constant 0 : index
    %c0_48 = arith.constant 0 : index
    %50 = vector.load %arg1[%c0_46, %c10, %c0_47, %c0_48] : memref<1x36x9x8xbf16, #tpu.memory_space<vmem>>, vector<1x8x8x8xbf16>
    %51 = vector.shape_cast %50 : vector<1x8x8x8xbf16> to vector<8x8x8xbf16>
    %52 = vector.shape_cast %51 : vector<8x8x8xbf16> to vector<64x8xbf16>
    %c7 = arith.constant 7 : index
    %c0_49 = arith.constant 0 : index
    %c0_50 = arith.constant 0 : index
    %53 = vector.load %arg2[%c7, %c0_49, %c0_50] : memref<9x8x128xbf16, #tpu.memory_space<vmem>>, vector<1x8x128xbf16>
    %54 = vector.shape_cast %53 : vector<1x8x128xbf16> to vector<8x128xbf16>
    %cst_51 = arith.constant dense<0.000000e+00> : vector<64x128xf32>
    %55 = tpu.matmul %52, %54, %cst_51 {dimension_numbers = #tpu.dot_dimension_numbers<[1], [0], [0], [1], [0, 0, 1, 1], [], []>} : vector<64x8xbf16>, vector<8x128xbf16>, vector<64x128xf32> -> vector<64x128xf32>
    %56 = arith.addf %49, %55 : vector<64x128xf32>
    %c0_52 = arith.constant 0 : index
    %c1_53 = arith.constant 1 : index
    %c1_54 = arith.constant 1 : index
    %c0_55 = arith.constant 0 : index
    %57 = vector.load %arg1[%c0_52, %c1_53, %c1_54, %c0_55] : memref<1x36x9x8xbf16, #tpu.memory_space<vmem>>, vector<1x8x8x8xbf16>
    %58 = vector.shape_cast %57 : vector<1x8x8x8xbf16> to vector<8x8x8xbf16>
    %59 = vector.shape_cast %58 : vector<8x8x8xbf16> to vector<64x8xbf16>
    %c8 = arith.constant 8 : index
    %c0_56 = arith.constant 0 : index
    %c0_57 = arith.constant 0 : index
    %60 = vector.load %arg2[%c8, %c0_56, %c0_57] : memref<9x8x128xbf16, #tpu.memory_space<vmem>>, vector<1x8x128xbf16>
    %61 = vector.shape_cast %60 : vector<1x8x128xbf16> to vector<8x128xbf16>
    %cst_58 = arith.constant dense<0.000000e+00> : vector<64x128xf32>
    %62 = tpu.matmul %59, %61, %cst_58 {dimension_numbers = #tpu.dot_dimension_numbers<[1], [0], [0], [1], [0, 0, 1, 1], [], []>} : vector<64x8xbf16>, vector<8x128xbf16>, vector<64x128xf32> -> vector<64x128xf32>
    %63 = arith.addf %56, %62 : vector<64x128xf32>
    %64 = arith.truncf %63 : vector<64x128xf32> to vector<64x128xbf16>
    %c0_59 = arith.constant 0 : index
    %c0_60 = arith.constant 0 : index
    %c0_61 = arith.constant 0 : index
    %65 = vector.load %arg3[%c0_59, %c0_60, %c0_61] : memref<1x64x128xbf16, #tpu.memory_space<vmem>>, vector<1x64x128xbf16>
    %66 = vector.shape_cast %65 : vector<1x64x128xbf16> to vector<64x128xbf16>
    %67 = vector.shape_cast %64 : vector<64x128xbf16> to vector<1x64x128xbf16>
    tpu.vector_store %arg3[%c0_59, %c0_60, %c0_61], %67 {strides = array<i32>} : memref<1x64x128xbf16, #tpu.memory_space<vmem>>, vector<1x64x128xbf16>,
    %cst_62 = arith.constant dense<0.000000e+00> : vector<128xf32>
    %68 = vector.multi_reduction <add>, %63, %cst_62 [0] : vector<64x128xf32> to vector<128xf32>
    %69 = vector.shape_cast %68 : vector<128xf32> to vector<1x128xf32>
    %70 = arith.mulf %63, %63 : vector<64x128xf32>
    %cst_63 = arith.constant dense<0.000000e+00> : vector<128xf32>
    %71 = vector.multi_reduction <add>, %70, %cst_63 [0] : vector<64x128xf32> to vector<128xf32>
    %72 = vector.shape_cast %71 : vector<128xf32> to vector<1x128xf32>
    %73 = tpu.concatenate %69, %72 in 0 : vector<1x128xf32>, vector<1x128xf32> -> vector<2x128xf32>
    %c0_64 = arith.constant 0 : index
    %c0_65 = arith.constant 0 : index
    %c0_66 = arith.constant 0 : index
    %74 = vector.load %arg4[%c0_64, %c0_65, %c0_66] : memref<1x2x128xf32, #tpu.memory_space<vmem>>, vector<1x2x128xf32>
    %75 = vector.shape_cast %74 : vector<1x2x128xf32> to vector<2x128xf32>
    %76 = vector.shape_cast %73 : vector<2x128xf32> to vector<1x2x128xf32>
    tpu.vector_store %arg4[%c0_64, %c0_65, %c0_66], %76 {strides = array<i32>} : memref<1x2x128xf32, #tpu.memory_space<vmem>>, vector<1x2x128xf32>,
    return
  }
  func.func @transform_0(%arg0: i32) -> (i32, i32, i32, i32) {
    %c0_i32 = arith.constant 0 : i32
    %c0_i32_0 = arith.constant 0 : i32
    %c0_i32_1 = arith.constant 0 : i32
    %c0_i32_2 = arith.constant 0 : i32
    return %arg0, %c0_i32, %c0_i32_0, %c0_i32_1 : i32, i32, i32, i32
  }
  func.func @transform_1(%arg0: i32) -> (i32, i32, i32) {
    %c0_i32 = arith.constant 0 : i32
    %c0_i32_0 = arith.constant 0 : i32
    %c0_i32_1 = arith.constant 0 : i32
    %c0_i32_2 = arith.constant 0 : i32
    return %c0_i32, %c0_i32_0, %c0_i32_1 : i32, i32, i32
  }
  func.func @transform_2(%arg0: i32) -> (i32, i32, i32) {
    %c0_i32 = arith.constant 0 : i32
    %c0_i32_0 = arith.constant 0 : i32
    %c0_i32_1 = arith.constant 0 : i32
    return %arg0, %c0_i32, %c0_i32_0 : i32, i32, i32
  }
  func.func @transform_3(%arg0: i32) -> (i32, i32, i32) {
    %c0_i32 = arith.constant 0 : i32
    %c0_i32_0 = arith.constant 0 : i32
    %c0_i32_1 = arith.constant 0 : i32
    return %arg0, %c0_i32, %c0_i32_0 : i32, i32, i32
  }
}

module attributes {stable_mosaic.version = 11 : i64} {
  func.func @_bn_relu_kernel(%arg0: i32, %arg1: memref<64x128xbf16, #tpu.memory_space<vmem>>, %arg2: memref<1x128xf32, #tpu.memory_space<vmem>>, %arg3: memref<1x128xf32, #tpu.memory_space<vmem>>, %arg4: memref<64x128xbf16, #tpu.memory_space<vmem>>) attributes {dimension_semantics = [#tpu.dimension_semantics<parallel>], iteration_bounds = array<i64: 2>, scalar_prefetch = 0 : i64, scratch_operands = 0 : i64, tpu.core_type = #tpu.core_type<tc>, window_params = [{transform_indices = @transform_0, window_bounds = array<i64: 64, 128>}, {pipeline_mode = #tpu.pipeline_mode<synchronous>, transform_indices = @transform_1, window_bounds = array<i64: 1, 128>}, {pipeline_mode = #tpu.pipeline_mode<synchronous>, transform_indices = @transform_2, window_bounds = array<i64: 1, 128>}, {transform_indices = @transform_3, window_bounds = array<i64: 64, 128>}]} {
    %c0 = arith.constant 0 : index
    %c0_0 = arith.constant 0 : index
    %0 = vector.load %arg1[%c0, %c0_0] : memref<64x128xbf16, #tpu.memory_space<vmem>>, vector<64x128xbf16>
    %1 = arith.extf %0 : vector<64x128xbf16> to vector<64x128xf32>
    %c0_1 = arith.constant 0 : index
    %c0_2 = arith.constant 0 : index
    %2 = vector.load %arg2[%c0_1, %c0_2] : memref<1x128xf32, #tpu.memory_space<vmem>>, vector<1x128xf32>
    %3 = vector.broadcast %2 : vector<1x128xf32> to vector<64x128xf32>
    %4 = arith.mulf %1, %3 : vector<64x128xf32>
    %c0_3 = arith.constant 0 : index
    %c0_4 = arith.constant 0 : index
    %5 = vector.load %arg3[%c0_3, %c0_4] : memref<1x128xf32, #tpu.memory_space<vmem>>, vector<1x128xf32>
    %6 = vector.broadcast %5 : vector<1x128xf32> to vector<64x128xf32>
    %7 = arith.addf %4, %6 : vector<64x128xf32>
    %cst = arith.constant 0.000000e+00 : f32
    %8 = vector.broadcast %cst : f32 to vector<64x128xf32>
    %9 = arith.maximumf %7, %8 : vector<64x128xf32>
    %10 = arith.truncf %9 : vector<64x128xf32> to vector<64x128xbf16>
    %c0_5 = arith.constant 0 : index
    %c0_6 = arith.constant 0 : index
    %11 = vector.load %arg4[%c0_5, %c0_6] : memref<64x128xbf16, #tpu.memory_space<vmem>>, vector<64x128xbf16>
    tpu.vector_store %arg4[%c0_5, %c0_6], %10 {strides = array<i32>} : memref<64x128xbf16, #tpu.memory_space<vmem>>, vector<64x128xbf16>,
    return
  }
  func.func @transform_0(%arg0: i32) -> (i32, i32) {
    %c0_i32 = arith.constant 0 : i32
    %c0_i32_0 = arith.constant 0 : i32
    return %arg0, %c0_i32 : i32, i32
  }
  func.func @transform_1(%arg0: i32) -> (i32, i32) {
    %c0_i32 = arith.constant 0 : i32
    %c0_i32_0 = arith.constant 0 : i32
    %c0_i32_1 = arith.constant 0 : i32
    return %c0_i32, %c0_i32_0 : i32, i32
  }
  func.func @transform_2(%arg0: i32) -> (i32, i32) {
    %c0_i32 = arith.constant 0 : i32
    %c0_i32_0 = arith.constant 0 : i32
    %c0_i32_1 = arith.constant 0 : i32
    return %c0_i32, %c0_i32_0 : i32, i32
  }
  func.func @transform_3(%arg0: i32) -> (i32, i32) {
    %c0_i32 = arith.constant 0 : i32
    %c0_i32_0 = arith.constant 0 : i32
    return %arg0, %c0_i32 : i32, i32
  }
}

module attributes {stable_mosaic.version = 11 : i64} {
  func.func @kernel(%arg0: i32, %arg1: memref<1x10x10x128xbf16, #tpu.memory_space<vmem>>, %arg2: memref<9x128x128xbf16, #tpu.memory_space<vmem>>, %arg3: memref<1x64x128xbf16, #tpu.memory_space<vmem>>, %arg4: memref<1x2x128xf32, #tpu.memory_space<vmem>>) attributes {dimension_semantics = [#tpu.dimension_semantics<parallel>], iteration_bounds = array<i64: 2>, scalar_prefetch = 0 : i64, scratch_operands = 0 : i64, tpu.core_type = #tpu.core_type<tc>, window_params = [{transform_indices = @transform_0, window_bounds = array<i64: 1, 10, 10, 128>}, {pipeline_mode = #tpu.pipeline_mode<synchronous>, transform_indices = @transform_1, window_bounds = array<i64: 9, 128, 128>}, {transform_indices = @transform_2, window_bounds = array<i64: 1, 64, 128>}, {transform_indices = @transform_3, window_bounds = array<i64: 1, 2, 128>}]} {
    %cst = arith.constant 0.000000e+00 : f32
    %0 = vector.broadcast %cst : f32 to vector<64x128xf32>
    %c0 = arith.constant 0 : index
    %c0_0 = arith.constant 0 : index
    %c0_1 = arith.constant 0 : index
    %c0_2 = arith.constant 0 : index
    %1 = vector.load %arg1[%c0, %c0_0, %c0_1, %c0_2] : memref<1x10x10x128xbf16, #tpu.memory_space<vmem>>, vector<1x8x8x128xbf16>
    %2 = vector.shape_cast %1 : vector<1x8x8x128xbf16> to vector<8x8x128xbf16>
    %3 = vector.shape_cast %2 : vector<8x8x128xbf16> to vector<64x128xbf16>
    %c0_3 = arith.constant 0 : index
    %c0_4 = arith.constant 0 : index
    %c0_5 = arith.constant 0 : index
    %4 = vector.load %arg2[%c0_3, %c0_4, %c0_5] : memref<9x128x128xbf16, #tpu.memory_space<vmem>>, vector<1x128x128xbf16>
    %5 = vector.shape_cast %4 : vector<1x128x128xbf16> to vector<128x128xbf16>
    %cst_6 = arith.constant dense<0.000000e+00> : vector<64x128xf32>
    %6 = tpu.matmul %3, %5, %cst_6 {dimension_numbers = #tpu.dot_dimension_numbers<[1], [0], [0], [1], [0, 0, 1, 1], [], []>} : vector<64x128xbf16>, vector<128x128xbf16>, vector<64x128xf32> -> vector<64x128xf32>
    %7 = arith.addf %0, %6 : vector<64x128xf32>
    %c0_7 = arith.constant 0 : index
    %c0_8 = arith.constant 0 : index
    %c1 = arith.constant 1 : index
    %c0_9 = arith.constant 0 : index
    %8 = vector.load %arg1[%c0_7, %c0_8, %c1, %c0_9] : memref<1x10x10x128xbf16, #tpu.memory_space<vmem>>, vector<1x8x8x128xbf16>
    %9 = vector.shape_cast %8 : vector<1x8x8x128xbf16> to vector<8x8x128xbf16>
    %10 = vector.shape_cast %9 : vector<8x8x128xbf16> to vector<64x128xbf16>
    %c1_10 = arith.constant 1 : index
    %c0_11 = arith.constant 0 : index
    %c0_12 = arith.constant 0 : index
    %11 = vector.load %arg2[%c1_10, %c0_11, %c0_12] : memref<9x128x128xbf16, #tpu.memory_space<vmem>>, vector<1x128x128xbf16>
    %12 = vector.shape_cast %11 : vector<1x128x128xbf16> to vector<128x128xbf16>
    %cst_13 = arith.constant dense<0.000000e+00> : vector<64x128xf32>
    %13 = tpu.matmul %10, %12, %cst_13 {dimension_numbers = #tpu.dot_dimension_numbers<[1], [0], [0], [1], [0, 0, 1, 1], [], []>} : vector<64x128xbf16>, vector<128x128xbf16>, vector<64x128xf32> -> vector<64x128xf32>
    %14 = arith.addf %7, %13 : vector<64x128xf32>
    %c0_14 = arith.constant 0 : index
    %c0_15 = arith.constant 0 : index
    %c2 = arith.constant 2 : index
    %c0_16 = arith.constant 0 : index
    %15 = vector.load %arg1[%c0_14, %c0_15, %c2, %c0_16] : memref<1x10x10x128xbf16, #tpu.memory_space<vmem>>, vector<1x8x8x128xbf16>
    %16 = vector.shape_cast %15 : vector<1x8x8x128xbf16> to vector<8x8x128xbf16>
    %17 = vector.shape_cast %16 : vector<8x8x128xbf16> to vector<64x128xbf16>
    %c2_17 = arith.constant 2 : index
    %c0_18 = arith.constant 0 : index
    %c0_19 = arith.constant 0 : index
    %18 = vector.load %arg2[%c2_17, %c0_18, %c0_19] : memref<9x128x128xbf16, #tpu.memory_space<vmem>>, vector<1x128x128xbf16>
    %19 = vector.shape_cast %18 : vector<1x128x128xbf16> to vector<128x128xbf16>
    %cst_20 = arith.constant dense<0.000000e+00> : vector<64x128xf32>
    %20 = tpu.matmul %17, %19, %cst_20 {dimension_numbers = #tpu.dot_dimension_numbers<[1], [0], [0], [1], [0, 0, 1, 1], [], []>} : vector<64x128xbf16>, vector<128x128xbf16>, vector<64x128xf32> -> vector<64x128xf32>
    %21 = arith.addf %14, %20 : vector<64x128xf32>
    %c0_21 = arith.constant 0 : index
    %c1_22 = arith.constant 1 : index
    %c0_23 = arith.constant 0 : index
    %c0_24 = arith.constant 0 : index
    %22 = vector.load %arg1[%c0_21, %c1_22, %c0_23, %c0_24] : memref<1x10x10x128xbf16, #tpu.memory_space<vmem>>, vector<1x8x8x128xbf16>
    %23 = vector.shape_cast %22 : vector<1x8x8x128xbf16> to vector<8x8x128xbf16>
    %24 = vector.shape_cast %23 : vector<8x8x128xbf16> to vector<64x128xbf16>
    %c3 = arith.constant 3 : index
    %c0_25 = arith.constant 0 : index
    %c0_26 = arith.constant 0 : index
    %25 = vector.load %arg2[%c3, %c0_25, %c0_26] : memref<9x128x128xbf16, #tpu.memory_space<vmem>>, vector<1x128x128xbf16>
    %26 = vector.shape_cast %25 : vector<1x128x128xbf16> to vector<128x128xbf16>
    %cst_27 = arith.constant dense<0.000000e+00> : vector<64x128xf32>
    %27 = tpu.matmul %24, %26, %cst_27 {dimension_numbers = #tpu.dot_dimension_numbers<[1], [0], [0], [1], [0, 0, 1, 1], [], []>} : vector<64x128xbf16>, vector<128x128xbf16>, vector<64x128xf32> -> vector<64x128xf32>
    %28 = arith.addf %21, %27 : vector<64x128xf32>
    %c0_28 = arith.constant 0 : index
    %c1_29 = arith.constant 1 : index
    %c1_30 = arith.constant 1 : index
    %c0_31 = arith.constant 0 : index
    %29 = vector.load %arg1[%c0_28, %c1_29, %c1_30, %c0_31] : memref<1x10x10x128xbf16, #tpu.memory_space<vmem>>, vector<1x8x8x128xbf16>
    %30 = vector.shape_cast %29 : vector<1x8x8x128xbf16> to vector<8x8x128xbf16>
    %31 = vector.shape_cast %30 : vector<8x8x128xbf16> to vector<64x128xbf16>
    %c4 = arith.constant 4 : index
    %c0_32 = arith.constant 0 : index
    %c0_33 = arith.constant 0 : index
    %32 = vector.load %arg2[%c4, %c0_32, %c0_33] : memref<9x128x128xbf16, #tpu.memory_space<vmem>>, vector<1x128x128xbf16>
    %33 = vector.shape_cast %32 : vector<1x128x128xbf16> to vector<128x128xbf16>
    %cst_34 = arith.constant dense<0.000000e+00> : vector<64x128xf32>
    %34 = tpu.matmul %31, %33, %cst_34 {dimension_numbers = #tpu.dot_dimension_numbers<[1], [0], [0], [1], [0, 0, 1, 1], [], []>} : vector<64x128xbf16>, vector<128x128xbf16>, vector<64x128xf32> -> vector<64x128xf32>
    %35 = arith.addf %28, %34 : vector<64x128xf32>
    %c0_35 = arith.constant 0 : index
    %c1_36 = arith.constant 1 : index
    %c2_37 = arith.constant 2 : index
    %c0_38 = arith.constant 0 : index
    %36 = vector.load %arg1[%c0_35, %c1_36, %c2_37, %c0_38] : memref<1x10x10x128xbf16, #tpu.memory_space<vmem>>, vector<1x8x8x128xbf16>
    %37 = vector.shape_cast %36 : vector<1x8x8x128xbf16> to vector<8x8x128xbf16>
    %38 = vector.shape_cast %37 : vector<8x8x128xbf16> to vector<64x128xbf16>
    %c5 = arith.constant 5 : index
    %c0_39 = arith.constant 0 : index
    %c0_40 = arith.constant 0 : index
    %39 = vector.load %arg2[%c5, %c0_39, %c0_40] : memref<9x128x128xbf16, #tpu.memory_space<vmem>>, vector<1x128x128xbf16>
    %40 = vector.shape_cast %39 : vector<1x128x128xbf16> to vector<128x128xbf16>
    %cst_41 = arith.constant dense<0.000000e+00> : vector<64x128xf32>
    %41 = tpu.matmul %38, %40, %cst_41 {dimension_numbers = #tpu.dot_dimension_numbers<[1], [0], [0], [1], [0, 0, 1, 1], [], []>} : vector<64x128xbf16>, vector<128x128xbf16>, vector<64x128xf32> -> vector<64x128xf32>
    %42 = arith.addf %35, %41 : vector<64x128xf32>
    %c0_42 = arith.constant 0 : index
    %c2_43 = arith.constant 2 : index
    %c0_44 = arith.constant 0 : index
    %c0_45 = arith.constant 0 : index
    %43 = vector.load %arg1[%c0_42, %c2_43, %c0_44, %c0_45] : memref<1x10x10x128xbf16, #tpu.memory_space<vmem>>, vector<1x8x8x128xbf16>
    %44 = vector.shape_cast %43 : vector<1x8x8x128xbf16> to vector<8x8x128xbf16>
    %45 = vector.shape_cast %44 : vector<8x8x128xbf16> to vector<64x128xbf16>
    %c6 = arith.constant 6 : index
    %c0_46 = arith.constant 0 : index
    %c0_47 = arith.constant 0 : index
    %46 = vector.load %arg2[%c6, %c0_46, %c0_47] : memref<9x128x128xbf16, #tpu.memory_space<vmem>>, vector<1x128x128xbf16>
    %47 = vector.shape_cast %46 : vector<1x128x128xbf16> to vector<128x128xbf16>
    %cst_48 = arith.constant dense<0.000000e+00> : vector<64x128xf32>
    %48 = tpu.matmul %45, %47, %cst_48 {dimension_numbers = #tpu.dot_dimension_numbers<[1], [0], [0], [1], [0, 0, 1, 1], [], []>} : vector<64x128xbf16>, vector<128x128xbf16>, vector<64x128xf32> -> vector<64x128xf32>
    %49 = arith.addf %42, %48 : vector<64x128xf32>
    %c0_49 = arith.constant 0 : index
    %c2_50 = arith.constant 2 : index
    %c1_51 = arith.constant 1 : index
    %c0_52 = arith.constant 0 : index
    %50 = vector.load %arg1[%c0_49, %c2_50, %c1_51, %c0_52] : memref<1x10x10x128xbf16, #tpu.memory_space<vmem>>, vector<1x8x8x128xbf16>
    %51 = vector.shape_cast %50 : vector<1x8x8x128xbf16> to vector<8x8x128xbf16>
    %52 = vector.shape_cast %51 : vector<8x8x128xbf16> to vector<64x128xbf16>
    %c7 = arith.constant 7 : index
    %c0_53 = arith.constant 0 : index
    %c0_54 = arith.constant 0 : index
    %53 = vector.load %arg2[%c7, %c0_53, %c0_54] : memref<9x128x128xbf16, #tpu.memory_space<vmem>>, vector<1x128x128xbf16>
    %54 = vector.shape_cast %53 : vector<1x128x128xbf16> to vector<128x128xbf16>
    %cst_55 = arith.constant dense<0.000000e+00> : vector<64x128xf32>
    %55 = tpu.matmul %52, %54, %cst_55 {dimension_numbers = #tpu.dot_dimension_numbers<[1], [0], [0], [1], [0, 0, 1, 1], [], []>} : vector<64x128xbf16>, vector<128x128xbf16>, vector<64x128xf32> -> vector<64x128xf32>
    %56 = arith.addf %49, %55 : vector<64x128xf32>
    %c0_56 = arith.constant 0 : index
    %c2_57 = arith.constant 2 : index
    %c2_58 = arith.constant 2 : index
    %c0_59 = arith.constant 0 : index
    %57 = vector.load %arg1[%c0_56, %c2_57, %c2_58, %c0_59] : memref<1x10x10x128xbf16, #tpu.memory_space<vmem>>, vector<1x8x8x128xbf16>
    %58 = vector.shape_cast %57 : vector<1x8x8x128xbf16> to vector<8x8x128xbf16>
    %59 = vector.shape_cast %58 : vector<8x8x128xbf16> to vector<64x128xbf16>
    %c8 = arith.constant 8 : index
    %c0_60 = arith.constant 0 : index
    %c0_61 = arith.constant 0 : index
    %60 = vector.load %arg2[%c8, %c0_60, %c0_61] : memref<9x128x128xbf16, #tpu.memory_space<vmem>>, vector<1x128x128xbf16>
    %61 = vector.shape_cast %60 : vector<1x128x128xbf16> to vector<128x128xbf16>
    %cst_62 = arith.constant dense<0.000000e+00> : vector<64x128xf32>
    %62 = tpu.matmul %59, %61, %cst_62 {dimension_numbers = #tpu.dot_dimension_numbers<[1], [0], [0], [1], [0, 0, 1, 1], [], []>} : vector<64x128xbf16>, vector<128x128xbf16>, vector<64x128xf32> -> vector<64x128xf32>
    %63 = arith.addf %56, %62 : vector<64x128xf32>
    %64 = arith.truncf %63 : vector<64x128xf32> to vector<64x128xbf16>
    %c0_63 = arith.constant 0 : index
    %c0_64 = arith.constant 0 : index
    %c0_65 = arith.constant 0 : index
    %65 = vector.load %arg3[%c0_63, %c0_64, %c0_65] : memref<1x64x128xbf16, #tpu.memory_space<vmem>>, vector<1x64x128xbf16>
    %66 = vector.shape_cast %65 : vector<1x64x128xbf16> to vector<64x128xbf16>
    %67 = vector.shape_cast %64 : vector<64x128xbf16> to vector<1x64x128xbf16>
    tpu.vector_store %arg3[%c0_63, %c0_64, %c0_65], %67 {strides = array<i32>} : memref<1x64x128xbf16, #tpu.memory_space<vmem>>, vector<1x64x128xbf16>,
    %cst_66 = arith.constant dense<0.000000e+00> : vector<128xf32>
    %68 = vector.multi_reduction <add>, %63, %cst_66 [0] : vector<64x128xf32> to vector<128xf32>
    %69 = vector.shape_cast %68 : vector<128xf32> to vector<1x128xf32>
    %70 = arith.mulf %63, %63 : vector<64x128xf32>
    %cst_67 = arith.constant dense<0.000000e+00> : vector<128xf32>
    %71 = vector.multi_reduction <add>, %70, %cst_67 [0] : vector<64x128xf32> to vector<128xf32>
    %72 = vector.shape_cast %71 : vector<128xf32> to vector<1x128xf32>
    %73 = tpu.concatenate %69, %72 in 0 : vector<1x128xf32>, vector<1x128xf32> -> vector<2x128xf32>
    %c0_68 = arith.constant 0 : index
    %c0_69 = arith.constant 0 : index
    %c0_70 = arith.constant 0 : index
    %74 = vector.load %arg4[%c0_68, %c0_69, %c0_70] : memref<1x2x128xf32, #tpu.memory_space<vmem>>, vector<1x2x128xf32>
    %75 = vector.shape_cast %74 : vector<1x2x128xf32> to vector<2x128xf32>
    %76 = vector.shape_cast %73 : vector<2x128xf32> to vector<1x2x128xf32>
    tpu.vector_store %arg4[%c0_68, %c0_69, %c0_70], %76 {strides = array<i32>} : memref<1x2x128xf32, #tpu.memory_space<vmem>>, vector<1x2x128xf32>,
    return
  }
  func.func @transform_0(%arg0: i32) -> (i32, i32, i32, i32) {
    %c0_i32 = arith.constant 0 : i32
    %c0_i32_0 = arith.constant 0 : i32
    %c0_i32_1 = arith.constant 0 : i32
    %c0_i32_2 = arith.constant 0 : i32
    return %arg0, %c0_i32, %c0_i32_0, %c0_i32_1 : i32, i32, i32, i32
  }
  func.func @transform_1(%arg0: i32) -> (i32, i32, i32) {
    %c0_i32 = arith.constant 0 : i32
    %c0_i32_0 = arith.constant 0 : i32
    %c0_i32_1 = arith.constant 0 : i32
    %c0_i32_2 = arith.constant 0 : i32
    return %c0_i32, %c0_i32_0, %c0_i32_1 : i32, i32, i32
  }
  func.func @transform_2(%arg0: i32) -> (i32, i32, i32) {
    %c0_i32 = arith.constant 0 : i32
    %c0_i32_0 = arith.constant 0 : i32
    %c0_i32_1 = arith.constant 0 : i32
    return %arg0, %c0_i32, %c0_i32_0 : i32, i32, i32
  }
  func.func @transform_3(%arg0: i32) -> (i32, i32, i32) {
    %c0_i32 = arith.constant 0 : i32
    %c0_i32_0 = arith.constant 0 : i32
    %c0_i32_1 = arith.constant 0 : i32
    return %arg0, %c0_i32, %c0_i32_0 : i32, i32, i32
  }
}

module attributes {stable_mosaic.version = 11 : i64} {
  func.func @_bn_add_bn_relu_kernel(%arg0: i32, %arg1: memref<64x128xbf16, #tpu.memory_space<vmem>>, %arg2: memref<64x128xbf16, #tpu.memory_space<vmem>>, %arg3: memref<1x128xf32, #tpu.memory_space<vmem>>, %arg4: memref<1x128xf32, #tpu.memory_space<vmem>>, %arg5: memref<1x128xf32, #tpu.memory_space<vmem>>, %arg6: memref<1x128xf32, #tpu.memory_space<vmem>>, %arg7: memref<64x128xf32, #tpu.memory_space<vmem>>) attributes {dimension_semantics = [#tpu.dimension_semantics<parallel>], iteration_bounds = array<i64: 2>, scalar_prefetch = 0 : i64, scratch_operands = 0 : i64, tpu.core_type = #tpu.core_type<tc>, window_params = [{transform_indices = @transform_0, window_bounds = array<i64: 64, 128>}, {transform_indices = @transform_1, window_bounds = array<i64: 64, 128>}, {pipeline_mode = #tpu.pipeline_mode<synchronous>, transform_indices = @transform_2, window_bounds = array<i64: 1, 128>}, {pipeline_mode = #tpu.pipeline_mode<synchronous>, transform_indices = @transform_3, window_bounds = array<i64: 1, 128>}, {pipeline_mode = #tpu.pipeline_mode<synchronous>, transform_indices = @transform_4, window_bounds = array<i64: 1, 128>}, {pipeline_mode = #tpu.pipeline_mode<synchronous>, transform_indices = @transform_5, window_bounds = array<i64: 1, 128>}, {transform_indices = @transform_6, window_bounds = array<i64: 64, 128>}]} {
    %c0 = arith.constant 0 : index
    %c0_0 = arith.constant 0 : index
    %0 = vector.load %arg1[%c0, %c0_0] : memref<64x128xbf16, #tpu.memory_space<vmem>>, vector<64x128xbf16>
    %1 = arith.extf %0 : vector<64x128xbf16> to vector<64x128xf32>
    %c0_1 = arith.constant 0 : index
    %c0_2 = arith.constant 0 : index
    %2 = vector.load %arg3[%c0_1, %c0_2] : memref<1x128xf32, #tpu.memory_space<vmem>>, vector<1x128xf32>
    %3 = vector.broadcast %2 : vector<1x128xf32> to vector<64x128xf32>
    %4 = arith.mulf %1, %3 : vector<64x128xf32>
    %c0_3 = arith.constant 0 : index
    %c0_4 = arith.constant 0 : index
    %5 = vector.load %arg4[%c0_3, %c0_4] : memref<1x128xf32, #tpu.memory_space<vmem>>, vector<1x128xf32>
    %6 = vector.broadcast %5 : vector<1x128xf32> to vector<64x128xf32>
    %7 = arith.addf %4, %6 : vector<64x128xf32>
    %c0_5 = arith.constant 0 : index
    %c0_6 = arith.constant 0 : index
    %8 = vector.load %arg2[%c0_5, %c0_6] : memref<64x128xbf16, #tpu.memory_space<vmem>>, vector<64x128xbf16>
    %9 = arith.extf %8 : vector<64x128xbf16> to vector<64x128xf32>
    %c0_7 = arith.constant 0 : index
    %c0_8 = arith.constant 0 : index
    %10 = vector.load %arg5[%c0_7, %c0_8] : memref<1x128xf32, #tpu.memory_space<vmem>>, vector<1x128xf32>
    %11 = vector.broadcast %10 : vector<1x128xf32> to vector<64x128xf32>
    %12 = arith.mulf %9, %11 : vector<64x128xf32>
    %13 = arith.addf %7, %12 : vector<64x128xf32>
    %c0_9 = arith.constant 0 : index
    %c0_10 = arith.constant 0 : index
    %14 = vector.load %arg6[%c0_9, %c0_10] : memref<1x128xf32, #tpu.memory_space<vmem>>, vector<1x128xf32>
    %15 = vector.broadcast %14 : vector<1x128xf32> to vector<64x128xf32>
    %16 = arith.addf %13, %15 : vector<64x128xf32>
    %cst = arith.constant 0.000000e+00 : f32
    %17 = vector.broadcast %cst : f32 to vector<64x128xf32>
    %18 = arith.maximumf %16, %17 : vector<64x128xf32>
    %c0_11 = arith.constant 0 : index
    %c0_12 = arith.constant 0 : index
    %19 = vector.load %arg7[%c0_11, %c0_12] : memref<64x128xf32, #tpu.memory_space<vmem>>, vector<64x128xf32>
    tpu.vector_store %arg7[%c0_11, %c0_12], %18 {strides = array<i32>} : memref<64x128xf32, #tpu.memory_space<vmem>>, vector<64x128xf32>,
    return
  }
  func.func @transform_0(%arg0: i32) -> (i32, i32) {
    %c0_i32 = arith.constant 0 : i32
    %c0_i32_0 = arith.constant 0 : i32
    return %arg0, %c0_i32 : i32, i32
  }
  func.func @transform_1(%arg0: i32) -> (i32, i32) {
    %c0_i32 = arith.constant 0 : i32
    %c0_i32_0 = arith.constant 0 : i32
    return %arg0, %c0_i32 : i32, i32
  }
  func.func @transform_2(%arg0: i32) -> (i32, i32) {
    %c0_i32 = arith.constant 0 : i32
    %c0_i32_0 = arith.constant 0 : i32
    %c0_i32_1 = arith.constant 0 : i32
    return %c0_i32, %c0_i32_0 : i32, i32
  }
  func.func @transform_3(%arg0: i32) -> (i32, i32) {
    %c0_i32 = arith.constant 0 : i32
    %c0_i32_0 = arith.constant 0 : i32
    %c0_i32_1 = arith.constant 0 : i32
    return %c0_i32, %c0_i32_0 : i32, i32
  }
  func.func @transform_4(%arg0: i32) -> (i32, i32) {
    %c0_i32 = arith.constant 0 : i32
    %c0_i32_0 = arith.constant 0 : i32
    %c0_i32_1 = arith.constant 0 : i32
    return %c0_i32, %c0_i32_0 : i32, i32
  }
  func.func @transform_5(%arg0: i32) -> (i32, i32) {
    %c0_i32 = arith.constant 0 : i32
    %c0_i32_0 = arith.constant 0 : i32
    %c0_i32_1 = arith.constant 0 : i32
    return %c0_i32, %c0_i32_0 : i32, i32
  }
  func.func @transform_6(%arg0: i32) -> (i32, i32) {
    %c0_i32 = arith.constant 0 : i32
    %c0_i32_0 = arith.constant 0 : i32
    return %arg0, %c0_i32 : i32, i32
  }
}

</mosaic_0001>

<llo_original>
// kernel: residual_block_forward.8
$region0: #{residual_block_forward.8}
  #allocation0 [shape = 'u32[]', space=smem, size = 0x4, offset = 0x4, fixed_abs, tag = 'smem constant byte address 0x4 - core index']
  #allocation1 [shape = 'u32[144,128]{1,0:T(1,128)}', space=vmem, size = 0x12000, scoped, tag = 'internal scratch']
  %s0 = inlined_call_operand.vmem [shape: bf16[2,8,8,8], index: 0, kind: input, shape index: {}]
  %s1 = inlined_call_operand.vmem [shape: bf16[1,8,128], index: 1, kind: input, shape index: {}]
  %s2 = inlined_call_operand.vmem [shape: bf16[2,64,128], index: 2, kind: output, shape index: {0}]
  %s3 = inlined_call_operand.vmem [shape: f32[2,2,128], index: 3, kind: output, shape index: {1}]
  %4 = xla_tuple %s2, %s3
  %s5 = sld [smem:[#allocation0]]
  $region49: #{residual_block_forward.8} parent=0
    _
  %s7 = ssub.s32 1, %s5
  %s8 = scalar_select 0, %s7, %s5
  loop: start=0, step=1, limit=4
  $region2: #{residual_block_forward.8} parent=0 // loop_pre_header
    _
  $region3: #{residual_block_forward.8} parent=0 // loop_header
    %s10 = sphi 0, %s14
    %p11 = scmp.ge.s32.totalorder %s10, 4
    %s20 = sphi 0, %s22
    %s23 = sphi 0, %s20
    %s24 = sphi 0, %s23
    %s40 = sphi 0, %s24
    %s44 = sphi 0, %s44
    %s46 = sphi 0, %s44
    %s47 = sphi 0, %s46
    %s61 = sphi 0, %s47
    %s67 = sphi 0, %s69
    %s70 = sphi 0, %s67
    %s71 = sphi 0, %s70
    %s87 = sphi 0, %s71
    %s93 = sphi 0, %s95
    %s96 = sphi 0, %s93
    %s97 = sphi 0, %s96
    %s113 = sphi 0, %s97
  $region4: #{residual_block_forward.8} parent=0 // loop_header_branch
    %13 = sbr.rel (%p11) target = $region8
  $region5: #{residual_block_forward.8} parent=0 // loop_body
    %s15 = ssub.s32 %s10, 1
    %s16 = ssub.s32 %s10, 2
    %s17 = sadd.s32 %s10, 1
    %s18 = ssub.s32 %s10, %s17
    %p19 = scmp.eq.s32.totalorder %s18, 0
    %s21 = sadd.s32 %s20, 1
    %s22 = scalar_select %p19, %s20, %s21
    %p25 = pneg %p19
    %p26 = scmp.eq.s32.totalorder %s10, 1
    %p27 = por %p25, %p26
    %p28 = scmp.ne.s32.totalorder %s20, %s23
    %p29 = scmp.eq.s32.totalorder %s10, 0
    %p30 = por %p28, %p29
    %p31 = scmp.ne.s32.totalorder %s20, %s23
    %p32 = scmp.eq.s32.totalorder %s15, 1
    %p33 = por %p31, %p32
    %p34 = scmp.ne.s32.totalorder %s23, %s24
    %p35 = scmp.eq.s32.totalorder %s15, 0
    %p36 = por %p34, %p35
    %p37 = scmp.ne.s32.totalorder %s23, %s24
    %p38 = scmp.eq.s32.totalorder %s16, 1
    %p39 = por %p37, %p38
    %p41 = scmp.ne.s32.totalorder %s24, %s40
    %p42 = scmp.eq.s32.totalorder %s16, 0
    %p43 = por %p41, %p42
    %s45 = sadd.s32 %s44, 1
    %p48 = scmp.eq.s32.totalorder %s10, 1
    %p49 = scmp.ne.s32.totalorder %s44, %s46
    %p50 = scmp.eq.s32.totalorder %s10, 0
    %p51 = por %p49, %p50
    %p52 = scmp.ne.s32.totalorder %s44, %s46
    %p53 = scmp.eq.s32.totalorder %s15, 1
    %p54 = por %p52, %p53
    %p55 = scmp.ne.s32.totalorder %s46, %s47
    %p56 = scmp.eq.s32.totalorder %s15, 0
    %p57 = por %p55, %p56
    %p58 = scmp.ne.s32.totalorder %s46, %s47
    %p59 = scmp.eq.s32.totalorder %s16, 1
    %p60 = por %p58, %p59
    %p62 = scmp.ne.s32.totalorder %s47, %s61
    %p63 = scmp.eq.s32.totalorder %s16, 0
    %p64 = por %p62, %p63
    %s65 = ssub.s32 %s10, %s17
    %p66 = scmp.eq.s32.totalorder %s65, 0
    %s68 = sadd.s32 %s67, 1
    %s69 = scalar_select %p66, %s67, %s68
    %p72 = pneg %p66
    %p73 = scmp.eq.s32.totalorder %s10, 1
    %p74 = por %p72, %p73
    %p75 = scmp.ne.s32.totalorder %s67, %s70
    %p76 = scmp.eq.s32.totalorder %s10, 0
    %p77 = por %p75, %p76
    %p78 = scmp.ne.s32.totalorder %s67, %s70
    %p79 = scmp.eq.s32.totalorder %s15, 1
    %p80 = por %p78, %p79
    %p81 = scmp.ne.s32.totalorder %s70, %s71
    %p82 = scmp.eq.s32.totalorder %s15, 0
    %p83 = por %p81, %p82
    %p84 = scmp.ne.s32.totalorder %s70, %s71
    %p85 = scmp.eq.s32.totalorder %s16, 1
    %p86 = por %p84, %p85
    %p88 = scmp.ne.s32.totalorder %s71, %s87
    %p89 = scmp.eq.s32.totalorder %s16, 0
    %p90 = por %p88, %p89
    %s91 = ssub.s32 %s10, %s17
    %p92 = scmp.eq.s32.totalorder %s91, 0
    %s94 = sadd.s32 %s93, 1
    %s95 = scalar_select %p92, %s93, %s94
    %p98 = pneg %p92
    %p99 = scmp.eq.s32.totalorder %s10, 1
    %p100 = por %p98, %p99
    %p101 = scmp.ne.s32.totalorder %s93, %s96
    %p102 = scmp.eq.s32.totalorder %s10, 0
    %p103 = por %p101, %p102
    %p104 = scmp.ne.s32.totalorder %s93, %s96
    %p105 = scmp.eq.s32.totalorder %s15, 1
    %p106 = por %p104, %p105
    %p107 = scmp.ne.s32.totalorder %s96, %s97
    %p108 = scmp.eq.s32.totalorder %s15, 0
    %p109 = por %p107, %p108
    %p110 = scmp.ne.s32.totalorder %s96, %s97
    %p111 = scmp.eq.s32.totalorder %s16, 1
    %p112 = por %p110, %p111
    %p114 = scmp.ne.s32.totalorder %s97, %s113
    %p115 = scmp.eq.s32.totalorder %s16, 0
    %p116 = por %p114, %p115
    %p117 = scmp.le.s32.totalorder 1, %s10
    %p118 = scmp.lt.s32.totalorder %s10, 3
    %p119 = pnand %p117, %p118
    %p120 = pneg %p119
    // Predicated region
    $region9: #{residual_block_forward.8} parent=5 // pred_check
      _
    $region10: #{residual_block_forward.8} parent=5 // pred_check_branch
      %122 = sbr.rel (%p119) target = $region12
    $region11: #{residual_block_forward.8} parent=5 // pred_region
      %s123 = ssub.s32 %s10, 1
      // Predicated region
      $region13: #{residual_block_forward.8} parent=11 // pred_check
        %p124 = pneg %p57
      $region14: #{residual_block_forward.8} parent=11 // pred_check_branch
        %126 = sbr.rel (%p124) target = $region16
      $region15: #{residual_block_forward.8} parent=11 // pred_region
        _
      $region16: #{residual_block_forward.8} parent=11 // pred_fallthru
        _
    $region12: #{residual_block_forward.8} parent=5 // pred_fallthru
      _
    %p127 = scmp.lt.s32.totalorder %s10, 2
    // Predicated region
    $region17: #{residual_block_forward.8} parent=5 // pred_check
      %p128 = pneg %p127
    $region18: #{residual_block_forward.8} parent=5 // pred_check_branch
      %130 = sbr.rel (%p128) target = $region20
    $region19: #{residual_block_forward.8} parent=5 // pred_region
      // Predicated region
      $region21: #{residual_block_forward.8} parent=19 // pred_check
        %p131 = pneg %p30
      $region22: #{residual_block_forward.8} parent=19 // pred_check_branch
        %133 = sbr.rel (%p131) target = $region24
      $region23: #{residual_block_forward.8} parent=19 // pred_region
        %p134 = scmp.lt.s32.totalorder %s10, 1
        %s135 = scalar_select %p134, %s10, 1
        %s136 = smul.addr %s135, 8
        %s137 = smul.addr %s136, 4
        %s138 = scalar_lea.vmem %s0, %s137
      $region24: #{residual_block_forward.8} parent=19 // pred_fallthru
        _
    $region20: #{residual_block_forward.8} parent=5 // pred_fallthru
      _
    %p139 = scmp.le.s32.totalorder 1, %s10
    %p140 = scmp.lt.s32.totalorder %s10, 3
    %p141 = pnand %p139, %p140
    %p142 = pneg %p141
    // Predicated region
    $region25: #{residual_block_forward.8} parent=5 // pred_check
      _
    $region26: #{residual_block_forward.8} parent=5 // pred_check_branch
      %144 = sbr.rel (%p141) target = $region28
    $region27: #{residual_block_forward.8} parent=5 // pred_region
      %s145 = ssub.s32 %s10, 1
      %p146 = scmp.lt.s32.totalorder %s15, 1
      %s147 = scalar_select %p146, %s15, 1
      %s148 = smul.addr %s147, 8
      %s149 = smul.addr %s148, 4
      %s150 = scalar_lea.vmem %s0, %s149
      %p151 = pneg %p36
      %p152 = pneg %p33
      %p153 = pneg %p57
      %p154 = pneg %p54
      %p155 = pneg %p83
      %p156 = pneg %p80
      %p157 = scmp.lt.s32.totalorder %s15, 1
      %s158 = scalar_select %p157, %s15, 1
      %s159 = smul.addr %s158, 8
      %s160 = smul.addr %s159, 4
      %s161 = scalar_lea.vmem %s2, %s160
      %p162 = pneg %p109
      %p163 = pneg %p106
      %p164 = scmp.lt.s32.totalorder %s15, 1
      %s165 = scalar_select %p164, %s15, 1
      %s166 = smul.addr %s165, 2
      %s167 = scalar_lea.vmem %s3, %s166
      %p168 = scmp.lt.s32.totalorder %s15, 1
      %s169 = scalar_select %p168, %s15, 1
      %s170 = smul.addr %s169, 8
      %s171 = smul.addr %s170, 4
      %s172 = scalar_lea.vmem %s0, %s171
      %p173 = scmp.lt.s32.totalorder %s15, 1
      %s174 = scalar_select %p173, %s15, 1
      %s175 = smul.addr %s174, 8
      %s176 = smul.addr %s175, 4
      %s177 = scalar_lea.vmem %s2, %s176
      %p178 = scmp.lt.s32.totalorder %s15, 1
      %s179 = scalar_select %p178, %s15, 1
      %s180 = smul.addr %s179, 2
      %s181 = scalar_lea.vmem %s3, %s180
      %v183 = vld [vmem:[%s172] sm:$0xf]
      %v184 = vld [vmem:[%s172 + $0x4] sm:$0xf]
      %v185 = vld [vmem:[%s172 + $0x8] sm:$0xf]
      %v186 = vld [vmem:[%s172 + $0xc] sm:$0xf]
      %v187 = vld [vmem:[%s172 + $0x10] sm:$0xf]
      %v188 = vld [vmem:[%s172 + $0x14] sm:$0xf]
      %v189 = vld [vmem:[%s172 + $0x18] sm:$0xf]
      %v190 = vld [vmem:[%s172 + $0x1c] sm:$0xf]
      %v191 = vld [vmem:[%s1] sm:$0xf]
      %v200 = vunpack.c.l.b16 %v183
      %v201 = vunpack.c.l.b16 %v184
      %v202 = vunpack.c.l.b16 %v185
      %v203 = vunpack.c.l.b16 %v186
      %v204 = vunpack.c.l.b16 %v187
      %v205 = vunpack.c.l.b16 %v188
      %v206 = vunpack.c.l.b16 %v189
      %v207 = vunpack.c.l.b16 %v190
      %v208 = vpack.c.b16 %v201, %v200
      %v209 = vpack.c.b16 %v203, %v202
      %v210 = vpack.c.b16 %v205, %v204
      %v211 = vpack.c.b16 %v207, %v206
      %vm212 = vcmask 64512
      %v214 = vsel %vm212, %v208, 0
      %v217 = vsel %vm212, %v209, 0
      %v220 = vsel %vm212, %v210, 0
      %v223 = vsel %vm212, %v211, 0
      %vm225 = vcmask 1043456
      %v227 = vsel %vm225, %v191, 0
      %229 = vmatprep.subr.bf16.mxu0 0
      %230 = vmatpush1.bf16.msra.mxu0 0
      %231 = vmatprep.subr.bf16.mxu0 0
      %232 = vmatpush1.bf16.msra.mxu0 0
      %233 = vmatprep.subr.bf16.mxu0 0
      %234 = vmatpush1.bf16.msra.mxu0 0
      %235 = vmatprep.subr.bf16.mxu0 0
      %236 = vmatpush1.bf16.msra.mxu0 0
      %237 = vmatprep.subr.bf16.mxu0 0
      %238 = vmatpush1.bf16.msra.mxu0 0
      %239 = vmatprep.subr.bf16.mxu0 0
      %240 = vmatpush1.bf16.msra.mxu0 0
      %241 = vmatprep.subr.bf16.mxu0 0
      %242 = vmatpush1.bf16.msra.mxu0 0
      %243 = vmatprep.subr.bf16.mxu0 0
      %244 = vmatpush1.bf16.msra.mxu0 %v227
      %245 = vmatprep.subr.bf16.mxu0 0
      %246 = vmatpush2.bf16.msra.mxu0 0
      %247 = vmatprep.subr.bf16.mxu0 0
      %248 = vmatpush2.bf16.msra.mxu0 0
      %249 = vmatprep.subr.bf16.mxu0 0
      %250 = vmatpush2.bf16.msra.mxu0 0
      %251 = vmatprep.subr.bf16.mxu0 0
      %252 = vmatpush2.bf16.msra.mxu0 0
      %253 = vmatprep.subr.bf16.mxu0 0
      %254 = vmatpush2.bf16.msra.mxu0 0
      %255 = vmatprep.subr.bf16.mxu0 0
      %256 = vmatpush2.bf16.msra.mxu0 0
      %257 = vmatprep.subr.bf16.mxu0 0
      %258 = vmatpush2.bf16.msra.mxu0 0
      %259 = vmatprep.subr.bf16.mxu0 0
      %260 = vmatpush2.bf16.msra.mxu0 0
      %261 = vmatprep.mubr.bf16.mxu0 0
      %262 = vmatmul.mubr.bf16.gmra.mxu0 %v214
      %v263 = vpop.f32.mrf.mxu0
      %v264 = vadd.f32 0.0, %v263
      %v265 = vpop.f32.mrf.mxu0
      %v266 = vpop.f32.mrf.mxu0
      %v267 = vadd.f32 0.0, %v266
      %v268 = vpop.f32.mrf.mxu0
      %269 = vmatprep.mubr.bf16.mxu0 0
      %270 = vmatmul.mubr.bf16.gmra.mxu0 %v217
      %v271 = vpop.f32.mrf.mxu0
      %v272 = vadd.f32 0.0, %v271
      %v273 = vpop.f32.mrf.mxu0
      %v274 = vpop.f32.mrf.mxu0
      %v275 = vadd.f32 0.0, %v274
      %v276 = vpop.f32.mrf.mxu0
      %277 = vmatprep.mubr.bf16.mxu0 0
      %278 = vmatmul.mubr.bf16.gmra.mxu0 %v220
      %v279 = vpop.f32.mrf.mxu0
      %v280 = vadd.f32 0.0, %v279
      %v281 = vpop.f32.mrf.mxu0
      %v282 = vpop.f32.mrf.mxu0
      %v283 = vadd.f32 0.0, %v282
      %v284 = vpop.f32.mrf.mxu0
      %285 = vmatprep.mubr.bf16.mxu0 0
      %286 = vmatmul.mubr.bf16.gmra.mxu0 %v223
      %v287 = vpop.f32.mrf.mxu0
      %v288 = vadd.f32 0.0, %v287
      %v289 = vpop.f32.mrf.mxu0
      %v290 = vpop.f32.mrf.mxu0
      %v291 = vadd.f32 0.0, %v290
      %v292 = vpop.f32.mrf.mxu0
      %293 = vdwg.mxu0
      %v294 = vpack.c.bf16 %v267, %v264
      %v295 = vpack.c.bf16 %v275, %v272
      %v296 = vpack.c.bf16 %v283, %v280
      %v297 = vpack.c.bf16 %v291, %v288
      %v302 = vunpack.c.l.b16 %v294
      %v303 = vunpack.c.h.b16 %v294
      %v304 = vunpack.c.l.b16 %v295
      %v305 = vunpack.c.h.b16 %v295
      %v306 = vunpack.c.l.b16 %v296
      %v307 = vunpack.c.h.b16 %v296
      %v308 = vunpack.c.l.b16 %v297
      %v309 = vunpack.c.h.b16 %v297
      %v310 = vpack.c.b16 %v302, %v302
      %v311 = vpack.c.b16 %v303, %v303
      %v312 = vpack.c.b16 %v304, %v304
      %v313 = vpack.c.b16 %v305, %v305
      %v314 = vpack.c.b16 %v306, %v306
      %v315 = vpack.c.b16 %v307, %v307
      %v316 = vpack.c.b16 %v308, %v308
      %v317 = vpack.c.b16 %v309, %v309
      %326 = vst [vmem:[%s177] sm:$0xf] %v310
      %327 = vst [vmem:[%s177 + $0x4] sm:$0xf] %v311
      %328 = vst [vmem:[%s177 + $0x8] sm:$0xf] %v312
      %329 = vst [vmem:[%s177 + $0xc] sm:$0xf] %v313
      %330 = vst [vmem:[%s177 + $0x10] sm:$0xf] %v314
      %331 = vst [vmem:[%s177 + $0x14] sm:$0xf] %v315
      %332 = vst [vmem:[%s177 + $0x18] sm:$0xf] %v316
      %333 = vst [vmem:[%s177 + $0x1c] sm:$0xf] %v317
      %v334 = vadd.f32 %v264, %v267
      %v335 = vadd.f32 %v334, %v272
      %v336 = vadd.f32 %v335, %v275
      %v337 = vadd.f32 %v336, %v280
      %v338 = vadd.f32 %v337, %v283
      %v339 = vadd.f32 %v338, %v288
      %v340 = vadd.f32 %v339, %v291
      %v341 = vrot.slane %v340, 4
      %v342 = vadd.f32 %v340, %v341
      %v343 = vrot.slane %v342, 2
      %v344 = vadd.f32 %v342, %v343
      %v345 = vrot.slane %v344, 1
      %v346 = vadd.f32 %v344, %v345
      %v347 = vmul.f32 %v264, %v264
      %v348 = vmul.f32 %v267, %v267
      %v349 = vmul.f32 %v272, %v272
      %v350 = vmul.f32 %v275, %v275
      %v351 = vmul.f32 %v280, %v280
      %v352 = vmul.f32 %v283, %v283
      %v353 = vmul.f32 %v288, %v288
      %v354 = vmul.f32 %v291, %v291
      %v355 = vadd.f32 %v347, %v348
      %v356 = vadd.f32 %v355, %v349
      %v357 = vadd.f32 %v356, %v350
      %v358 = vadd.f32 %v357, %v351
      %v359 = vadd.f32 %v358, %v352
      %v360 = vadd.f32 %v359, %v353
      %v361 = vadd.f32 %v360, %v354
      %v362 = vrot.slane %v361, 4
      %v363 = vadd.f32 %v361, %v362
      %v364 = vrot.slane %v363, 2
      %v365 = vadd.f32 %v363, %v364
      %v366 = vrot.slane %v365, 1
      %v367 = vadd.f32 %v365, %v366
      %vm368 = vcmask 1040384
      %v369 = vsel %vm368, %v346, %v367
      %370 = vst [vmem:[%s181] sm:$0x3] %v369
      %p371 = scmp.lt.s32.totalorder %s15, 1
      %s372 = scalar_select %p371, %s15, 1
      %s373 = smul.addr %s372, 8
      %s374 = smul.addr %s373, 4
      %s375 = scalar_lea.vmem %s2, %s374
      %p376 = scmp.lt.s32.totalorder %s15, 1
      %s377 = scalar_select %p376, %s15, 1
      %s378 = smul.addr %s377, 2
      %s379 = scalar_lea.vmem %s3, %s378
      // Predicated region
      $region29: #{residual_block_forward.8} parent=27 // pred_check
        %p380 = pneg %p80
      $region30: #{residual_block_forward.8} parent=27 // pred_check_branch
        %382 = sbr.rel (%p380) target = $region32
      $region31: #{residual_block_forward.8} parent=27 // pred_region
        _
      $region32: #{residual_block_forward.8} parent=27 // pred_fallthru
        _
      // Predicated region
      $region33: #{residual_block_forward.8} parent=27 // pred_check
        %p383 = pneg %p106
      $region34: #{residual_block_forward.8} parent=27 // pred_check_branch
        %385 = sbr.rel (%p383) target = $region36
      $region35: #{residual_block_forward.8} parent=27 // pred_region
        _
      $region36: #{residual_block_forward.8} parent=27 // pred_fallthru
        _
    $region28: #{residual_block_forward.8} parent=5 // pred_fallthru
      _
    %p386 = scmp.le.s32.totalorder 2, %s10
    // Predicated region
    $region37: #{residual_block_forward.8} parent=5 // pred_check
      %p387 = pneg %p386
    $region38: #{residual_block_forward.8} parent=5 // pred_check_branch
      %389 = sbr.rel (%p387) target = $region40
    $region39: #{residual_block_forward.8} parent=5 // pred_region
      %s390 = ssub.s32 %s10, 2
      // Predicated region
      $region41: #{residual_block_forward.8} parent=39 // pred_check
        %p391 = pneg %p86
      $region42: #{residual_block_forward.8} parent=39 // pred_check_branch
        %393 = sbr.rel (%p391) target = $region44
      $region43: #{residual_block_forward.8} parent=39 // pred_region
        %p394 = scmp.lt.s32.totalorder %s16, 1
        %s395 = scalar_select %p394, %s16, 1
        %s396 = smul.addr %s395, 8
        %s397 = smul.addr %s396, 4
        %s398 = scalar_lea.vmem %s2, %s397
      $region44: #{residual_block_forward.8} parent=39 // pred_fallthru
        _
      // Predicated region
      $region45: #{residual_block_forward.8} parent=39 // pred_check
        %p399 = pneg %p112
      $region46: #{residual_block_forward.8} parent=39 // pred_check_branch
        %401 = sbr.rel (%p399) target = $region48
      $region47: #{residual_block_forward.8} parent=39 // pred_region
        %p402 = scmp.lt.s32.totalorder %s16, 1
        %s403 = scalar_select %p402, %s16, 1
        %s404 = smul.addr %s403, 2
        %s405 = scalar_lea.vmem %s3, %s404
      $region48: #{residual_block_forward.8} parent=39 // pred_fallthru
        _
    $region40: #{residual_block_forward.8} parent=5 // pred_fallthru
      _
  $region6: #{residual_block_forward.8} parent=0 // loop_footer
    %s14 = sadd.s32 1, %s10
  $region7: #{residual_block_forward.8} parent=0 // loop_footer_branch
    %9 = sbr.rel target = $region3
  $region8: #{residual_block_forward.8} parent=0 // loop_exit
    _

// kernel: residual_block_forward.6
$region0: #{residual_block_forward.6}
  #allocation0 [shape = 'u32[]', space=smem, size = 0x4, offset = 0x4, fixed_abs, tag = 'smem constant byte address 0x4 - core index']
  #allocation1 [shape = 'u32[144,128]{1,0:T(1,128)}', space=vmem, size = 0x12000, scoped, tag = 'internal scratch']
  %s0 = inlined_call_operand.vmem [shape: bf16[128,128], index: 0, kind: input, shape index: {}]
  %s1 = inlined_call_operand.vmem [shape: f32[1,128], index: 1, kind: input, shape index: {}]
  %s2 = inlined_call_operand.vmem [shape: f32[1,128], index: 2, kind: input, shape index: {}]
  %s3 = inlined_call_operand.vmem [shape: bf16[128,128], index: 3, kind: output, shape index: {}]
  %s4 = sld [smem:[#allocation0]]
  $region45: #{residual_block_forward.6} parent=0
    _
  %s6 = ssub.s32 1, %s4
  %s7 = scalar_select 0, %s6, %s4
  loop: start=0, step=1, limit=4
  $region2: #{residual_block_forward.6} parent=0 // loop_pre_header
    _
  $region3: #{residual_block_forward.6} parent=0 // loop_header
    %s9 = sphi 0, %s13
    %p10 = scmp.ge.s32.totalorder %s9, 4
    %s19 = sphi 0, %s21
    %s22 = sphi 0, %s19
    %s23 = sphi 0, %s22
    %s39 = sphi 0, %s23
    %s43 = sphi 0, %s43
    %s45 = sphi 0, %s43
    %s46 = sphi 0, %s45
    %s60 = sphi 0, %s46
    %s64 = sphi 0, %s64
    %s66 = sphi 0, %s64
    %s67 = sphi 0, %s66
    %s81 = sphi 0, %s67
    %s87 = sphi 0, %s89
    %s90 = sphi 0, %s87
    %s91 = sphi 0, %s90
    %s107 = sphi 0, %s91
  $region4: #{residual_block_forward.6} parent=0 // loop_header_branch
    %12 = sbr.rel (%p10) target = $region8
  $region5: #{residual_block_forward.6} parent=0 // loop_body
    %s14 = ssub.s32 %s9, 1
    %s15 = ssub.s32 %s9, 2
    %s16 = sadd.s32 %s9, 1
    %s17 = ssub.s32 %s9, %s16
    %p18 = scmp.eq.s32.totalorder %s17, 0
    %s20 = sadd.s32 %s19, 1
    %s21 = scalar_select %p18, %s19, %s20
    %p24 = pneg %p18
    %p25 = scmp.eq.s32.totalorder %s9, 1
    %p26 = por %p24, %p25
    %p27 = scmp.ne.s32.totalorder %s19, %s22
    %p28 = scmp.eq.s32.totalorder %s9, 0
    %p29 = por %p27, %p28
    %p30 = scmp.ne.s32.totalorder %s19, %s22
    %p31 = scmp.eq.s32.totalorder %s14, 1
    %p32 = por %p30, %p31
    %p33 = scmp.ne.s32.totalorder %s22, %s23
    %p34 = scmp.eq.s32.totalorder %s14, 0
    %p35 = por %p33, %p34
    %p36 = scmp.ne.s32.totalorder %s22, %s23
    %p37 = scmp.eq.s32.totalorder %s15, 1
    %p38 = por %p36, %p37
    %p40 = scmp.ne.s32.totalorder %s23, %s39
    %p41 = scmp.eq.s32.totalorder %s15, 0
    %p42 = por %p40, %p41
    %s44 = sadd.s32 %s43, 1
    %p47 = scmp.eq.s32.totalorder %s9, 1
    %p48 = scmp.ne.s32.totalorder %s43, %s45
    %p49 = scmp.eq.s32.totalorder %s9, 0
    %p50 = por %p48, %p49
    %p51 = scmp.ne.s32.totalorder %s43, %s45
    %p52 = scmp.eq.s32.totalorder %s14, 1
    %p53 = por %p51, %p52
    %p54 = scmp.ne.s32.totalorder %s45, %s46
    %p55 = scmp.eq.s32.totalorder %s14, 0
    %p56 = por %p54, %p55
    %p57 = scmp.ne.s32.totalorder %s45, %s46
    %p58 = scmp.eq.s32.totalorder %s15, 1
    %p59 = por %p57, %p58
    %p61 = scmp.ne.s32.totalorder %s46, %s60
    %p62 = scmp.eq.s32.totalorder %s15, 0
    %p63 = por %p61, %p62
    %s65 = sadd.s32 %s64, 1
    %p68 = scmp.eq.s32.totalorder %s9, 1
    %p69 = scmp.ne.s32.totalorder %s64, %s66
    %p70 = scmp.eq.s32.totalorder %s9, 0
    %p71 = por %p69, %p70
    %p72 = scmp.ne.s32.totalorder %s64, %s66
    %p73 = scmp.eq.s32.totalorder %s14, 1
    %p74 = por %p72, %p73
    %p75 = scmp.ne.s32.totalorder %s66, %s67
    %p76 = scmp.eq.s32.totalorder %s14, 0
    %p77 = por %p75, %p76
    %p78 = scmp.ne.s32.totalorder %s66, %s67
    %p79 = scmp.eq.s32.totalorder %s15, 1
    %p80 = por %p78, %p79
    %p82 = scmp.ne.s32.totalorder %s67, %s81
    %p83 = scmp.eq.s32.totalorder %s15, 0
    %p84 = por %p82, %p83
    %s85 = ssub.s32 %s9, %s16
    %p86 = scmp.eq.s32.totalorder %s85, 0
    %s88 = sadd.s32 %s87, 1
    %s89 = scalar_select %p86, %s87, %s88
    %p92 = pneg %p86
    %p93 = scmp.eq.s32.totalorder %s9, 1
    %p94 = por %p92, %p93
    %p95 = scmp.ne.s32.totalorder %s87, %s90
    %p96 = scmp.eq.s32.totalorder %s9, 0
    %p97 = por %p95, %p96
    %p98 = scmp.ne.s32.totalorder %s87, %s90
    %p99 = scmp.eq.s32.totalorder %s14, 1
    %p100 = por %p98, %p99
    %p101 = scmp.ne.s32.totalorder %s90, %s91
    %p102 = scmp.eq.s32.totalorder %s14, 0
    %p103 = por %p101, %p102
    %p104 = scmp.ne.s32.totalorder %s90, %s91
    %p105 = scmp.eq.s32.totalorder %s15, 1
    %p106 = por %p104, %p105
    %p108 = scmp.ne.s32.totalorder %s91, %s107
    %p109 = scmp.eq.s32.totalorder %s15, 0
    %p110 = por %p108, %p109
    %p111 = scmp.le.s32.totalorder 1, %s9
    %p112 = scmp.lt.s32.totalorder %s9, 3
    %p113 = pnand %p111, %p112
    %p114 = pneg %p113
    // Predicated region
    $region9: #{residual_block_forward.6} parent=5 // pred_check
      _
    $region10: #{residual_block_forward.6} parent=5 // pred_check_branch
      %116 = sbr.rel (%p113) target = $region12
    $region11: #{residual_block_forward.6} parent=5 // pred_region
      %s117 = ssub.s32 %s9, 1
      // Predicated region
      $region13: #{residual_block_forward.6} parent=11 // pred_check
        %p118 = pneg %p56
      $region14: #{residual_block_forward.6} parent=11 // pred_check_branch
        %120 = sbr.rel (%p118) target = $region16
      $region15: #{residual_block_forward.6} parent=11 // pred_region
        _
      $region16: #{residual_block_forward.6} parent=11 // pred_fallthru
        _
      // Predicated region
      $region17: #{residual_block_forward.6} parent=11 // pred_check
        %p121 = pneg %p77
      $region18: #{residual_block_forward.6} parent=11 // pred_check_branch
        %123 = sbr.rel (%p121) target = $region20
      $region19: #{residual_block_forward.6} parent=11 // pred_region
        _
      $region20: #{residual_block_forward.6} parent=11 // pred_fallthru
        _
    $region12: #{residual_block_forward.6} parent=5 // pred_fallthru
      _
    %p124 = scmp.lt.s32.totalorder %s9, 2
    // Predicated region
    $region21: #{residual_block_forward.6} parent=5 // pred_check
      %p125 = pneg %p124
    $region22: #{residual_block_forward.6} parent=5 // pred_check_branch
      %127 = sbr.rel (%p125) target = $region24
    $region23: #{residual_block_forward.6} parent=5 // pred_region
      // Predicated region
      $region25: #{residual_block_forward.6} parent=23 // pred_check
        %p128 = pneg %p29
      $region26: #{residual_block_forward.6} parent=23 // pred_check_branch
        %130 = sbr.rel (%p128) target = $region28
      $region27: #{residual_block_forward.6} parent=23 // pred_region
        %s131 = smul.u32 8, %s9
        %p132 = scmp.lt.s32.totalorder %s131, 15
        %s133 = scalar_select %p132, %s131, 15
        %s134 = smul.addr %s133, 4
        %s135 = scalar_lea.vmem %s0, %s134
        %s136 = smul.u32 8, %s9
      $region28: #{residual_block_forward.6} parent=23 // pred_fallthru
        _
    $region24: #{residual_block_forward.6} parent=5 // pred_fallthru
      _
    %p137 = scmp.le.s32.totalorder 1, %s9
    %p138 = scmp.lt.s32.totalorder %s9, 3
    %p139 = pnand %p137, %p138
    %p140 = pneg %p139
    // Predicated region
    $region29: #{residual_block_forward.6} parent=5 // pred_check
      _
    $region30: #{residual_block_forward.6} parent=5 // pred_check_branch
      %142 = sbr.rel (%p139) target = $region32
    $region31: #{residual_block_forward.6} parent=5 // pred_region
      %s143 = ssub.s32 %s9, 1
      %s144 = smul.u32 8, %s14
      %p145 = scmp.lt.s32.totalorder %s144, 15
      %s146 = scalar_select %p145, %s144, 15
      %s147 = smul.addr %s146, 4
      %s148 = scalar_lea.vmem %s0, %s147
      %p149 = pneg %p35
      %p150 = pneg %p32
      %p151 = pneg %p56
      %p152 = pneg %p53
      %p153 = pneg %p77
      %p154 = pneg %p74
      %p155 = pneg %p103
      %p156 = pneg %p100
      %s157 = smul.u32 8, %s14
      %p158 = scmp.lt.s32.totalorder %s157, 15
      %s159 = scalar_select %p158, %s157, 15
      %s160 = smul.addr %s159, 4
      %s161 = scalar_lea.vmem %s3, %s160
      %s162 = smul.u32 8, %s14
      %p163 = scmp.lt.s32.totalorder %s162, 15
      %s164 = scalar_select %p163, %s162, 15
      %s165 = smul.addr %s164, 4
      %s166 = scalar_lea.vmem %s0, %s165
      %s167 = smul.u32 8, %s14
      %s168 = smul.u32 8, %s14
      %p169 = scmp.lt.s32.totalorder %s168, 15
      %s170 = scalar_select %p169, %s168, 15
      %s171 = smul.addr %s170, 4
      %s172 = scalar_lea.vmem %s3, %s171
      %s173 = smul.u32 8, %s14
      %v174 = vld [vmem:[%s166] sm:$0xf]
      %v175 = vld [vmem:[%s166 + $0x4] sm:$0xf]
      %v176 = vld [vmem:[%s166 + $0x8] sm:$0xf]
      %v177 = vld [vmem:[%s166 + $0xc] sm:$0xf]
      %v178 = vld [vmem:[%s166 + $0x10] sm:$0xf]
      %v179 = vld [vmem:[%s166 + $0x14] sm:$0xf]
      %v180 = vld [vmem:[%s166 + $0x18] sm:$0xf]
      %v181 = vld [vmem:[%s166 + $0x1c] sm:$0xf]
      %v182 = vunpack.c.l.bf16 %v174
      %v183 = vunpack.c.l.bf16 %v175
      %v184 = vunpack.c.l.bf16 %v176
      %v185 = vunpack.c.l.bf16 %v177
      %v186 = vunpack.c.l.bf16 %v178
      %v187 = vunpack.c.l.bf16 %v179
      %v188 = vunpack.c.l.bf16 %v180
      %v189 = vunpack.c.l.bf16 %v181
      %v190 = vld [vmem:[%s1] sm:$0x1]
      %v192 = vlaneseq
      %v193 = vshrl.u32 %v192, 7
      %v194 = vsub.s32 0, %v193
      %v195 = vrot.slane %v190, %v194
      %v197 = vmul.f32 %v182, %v195
      %v198 = vmul.f32 %v183, %v195
      %v199 = vmul.f32 %v184, %v195
      %v200 = vmul.f32 %v185, %v195
      %v201 = vmul.f32 %v186, %v195
      %v202 = vmul.f32 %v187, %v195
      %v203 = vmul.f32 %v188, %v195
      %v204 = vmul.f32 %v189, %v195
      %v205 = vld [vmem:[%s2] sm:$0x1]
      %v207 = vlaneseq
      %v208 = vshrl.u32 %v207, 7
      %v209 = vsub.s32 0, %v208
      %v210 = vrot.slane %v205, %v209
      %v212 = vadd.f32 %v197, %v210
      %v213 = vadd.f32 %v198, %v210
      %v214 = vadd.f32 %v199, %v210
      %v215 = vadd.f32 %v200, %v210
      %v216 = vadd.f32 %v201, %v210
      %v217 = vadd.f32 %v202, %v210
      %v218 = vadd.f32 %v203, %v210
      %v219 = vadd.f32 %v204, %v210
      %v220 = vmax.f32 %v212, 0.0
      %v221 = vmax.f32 %v213, 0.0
      %v222 = vmax.f32 %v214, 0.0
      %v223 = vmax.f32 %v215, 0.0
      %v224 = vmax.f32 %v216, 0.0
      %v225 = vmax.f32 %v217, 0.0
      %v226 = vmax.f32 %v218, 0.0
      %v227 = vmax.f32 %v219, 0.0
      %v228 = vpack.c.bf16 %v221, %v220
      %v229 = vpack.c.bf16 %v223, %v222
      %v230 = vpack.c.bf16 %v225, %v224
      %v231 = vpack.c.bf16 %v227, %v226
      %v236 = vunpack.c.l.b16 %v228
      %v237 = vunpack.c.h.b16 %v228
      %v238 = vunpack.c.l.b16 %v229
      %v239 = vunpack.c.h.b16 %v229
      %v240 = vunpack.c.l.b16 %v230
      %v241 = vunpack.c.h.b16 %v230
      %v242 = vunpack.c.l.b16 %v231
      %v243 = vunpack.c.h.b16 %v231
      %v244 = vpack.c.b16 %v236, %v236
      %v245 = vpack.c.b16 %v237, %v237
      %v246 = vpack.c.b16 %v238, %v238
      %v247 = vpack.c.b16 %v239, %v239
      %v248 = vpack.c.b16 %v240, %v240
      %v249 = vpack.c.b16 %v241, %v241
      %v250 = vpack.c.b16 %v242, %v242
      %v251 = vpack.c.b16 %v243, %v243
      %260 = vst [vmem:[%s172] sm:$0xf] %v244
      %261 = vst [vmem:[%s172 + $0x4] sm:$0xf] %v245
      %262 = vst [vmem:[%s172 + $0x8] sm:$0xf] %v246
      %263 = vst [vmem:[%s172 + $0xc] sm:$0xf] %v247
      %264 = vst [vmem:[%s172 + $0x10] sm:$0xf] %v248
      %265 = vst [vmem:[%s172 + $0x14] sm:$0xf] %v249
      %266 = vst [vmem:[%s172 + $0x18] sm:$0xf] %v250
      %267 = vst [vmem:[%s172 + $0x1c] sm:$0xf] %v251
      %s268 = smul.u32 8, %s14
      %p269 = scmp.lt.s32.totalorder %s268, 15
      %s270 = scalar_select %p269, %s268, 15
      %s271 = smul.addr %s270, 4
      %s272 = scalar_lea.vmem %s3, %s271
      // Predicated region
      $region33: #{residual_block_forward.6} parent=31 // pred_check
        %p273 = pneg %p100
      $region34: #{residual_block_forward.6} parent=31 // pred_check_branch
        %275 = sbr.rel (%p273) target = $region36
      $region35: #{residual_block_forward.6} parent=31 // pred_region
        %s276 = smul.u32 8, %s14
      $region36: #{residual_block_forward.6} parent=31 // pred_fallthru
        _
    $region32: #{residual_block_forward.6} parent=5 // pred_fallthru
      _
    %p277 = scmp.le.s32.totalorder 2, %s9
    // Predicated region
    $region37: #{residual_block_forward.6} parent=5 // pred_check
      %p278 = pneg %p277
    $region38: #{residual_block_forward.6} parent=5 // pred_check_branch
      %280 = sbr.rel (%p278) target = $region40
    $region39: #{residual_block_forward.6} parent=5 // pred_region
      %s281 = ssub.s32 %s9, 2
      // Predicated region
      $region41: #{residual_block_forward.6} parent=39 // pred_check
        %p282 = pneg %p106
      $region42: #{residual_block_forward.6} parent=39 // pred_check_branch
        %284 = sbr.rel (%p282) target = $region44
      $region43: #{residual_block_forward.6} parent=39 // pred_region
        %s285 = smul.u32 8, %s15
        %p286 = scmp.lt.s32.totalorder %s285, 15
        %s287 = scalar_select %p286, %s285, 15
        %s288 = smul.addr %s287, 4
        %s289 = scalar_lea.vmem %s3, %s288
      $region44: #{residual_block_forward.6} parent=39 // pred_fallthru
        _
    $region40: #{residual_block_forward.6} parent=5 // pred_fallthru
      _
  $region6: #{residual_block_forward.6} parent=0 // loop_footer
    %s13 = sadd.s32 1, %s9
  $region7: #{residual_block_forward.6} parent=0 // loop_footer_branch
    %8 = sbr.rel target = $region3
  $region8: #{residual_block_forward.6} parent=0 // loop_exit
    _

// kernel: residual_block_forward.5
$region0: #{residual_block_forward.5}
  #allocation0 [shape = 'u32[]', space=smem, size = 0x4, offset = 0x4, fixed_abs, tag = 'smem constant byte address 0x4 - core index']
  #allocation1 [shape = 'u32[144,128]{1,0:T(1,128)}', space=vmem, size = 0x12000, scoped, tag = 'internal scratch']
  %s0 = inlined_call_operand.vmem [shape: bf16[2,36,9,8], index: 0, kind: input, shape index: {}]
  %s1 = inlined_call_operand.vmem [shape: bf16[9,8,128], index: 1, kind: input, shape index: {}]
  %s2 = inlined_call_operand.vmem [shape: bf16[2,64,128], index: 2, kind: output, shape index: {0}]
  %s3 = inlined_call_operand.vmem [shape: f32[2,2,128], index: 3, kind: output, shape index: {1}]
  %4 = xla_tuple %s2, %s3
  %s5 = sld [smem:[#allocation0]]
  $region49: #{residual_block_forward.5} parent=0
    _
  %s7 = ssub.s32 1, %s5
  %s8 = scalar_select 0, %s7, %s5
  loop: start=0, step=1, limit=4
  $region2: #{residual_block_forward.5} parent=0 // loop_pre_header
    _
  $region3: #{residual_block_forward.5} parent=0 // loop_header
    %s10 = sphi 0, %s14
    %p11 = scmp.ge.s32.totalorder %s10, 4
    %s20 = sphi 0, %s22
    %s23 = sphi 0, %s20
    %s24 = sphi 0, %s23
    %s40 = sphi 0, %s24
    %s44 = sphi 0, %s44
    %s46 = sphi 0, %s44
    %s47 = sphi 0, %s46
    %s61 = sphi 0, %s47
    %s67 = sphi 0, %s69
    %s70 = sphi 0, %s67
    %s71 = sphi 0, %s70
    %s87 = sphi 0, %s71
    %s93 = sphi 0, %s95
    %s96 = sphi 0, %s93
    %s97 = sphi 0, %s96
    %s113 = sphi 0, %s97
  $region4: #{residual_block_forward.5} parent=0 // loop_header_branch
    %13 = sbr.rel (%p11) target = $region8
  $region5: #{residual_block_forward.5} parent=0 // loop_body
    %s15 = ssub.s32 %s10, 1
    %s16 = ssub.s32 %s10, 2
    %s17 = sadd.s32 %s10, 1
    %s18 = ssub.s32 %s10, %s17
    %p19 = scmp.eq.s32.totalorder %s18, 0
    %s21 = sadd.s32 %s20, 1
    %s22 = scalar_select %p19, %s20, %s21
    %p25 = pneg %p19
    %p26 = scmp.eq.s32.totalorder %s10, 1
    %p27 = por %p25, %p26
    %p28 = scmp.ne.s32.totalorder %s20, %s23
    %p29 = scmp.eq.s32.totalorder %s10, 0
    %p30 = por %p28, %p29
    %p31 = scmp.ne.s32.totalorder %s20, %s23
    %p32 = scmp.eq.s32.totalorder %s15, 1
    %p33 = por %p31, %p32
    %p34 = scmp.ne.s32.totalorder %s23, %s24
    %p35 = scmp.eq.s32.totalorder %s15, 0
    %p36 = por %p34, %p35
    %p37 = scmp.ne.s32.totalorder %s23, %s24
    %p38 = scmp.eq.s32.totalorder %s16, 1
    %p39 = por %p37, %p38
    %p41 = scmp.ne.s32.totalorder %s24, %s40
    %p42 = scmp.eq.s32.totalorder %s16, 0
    %p43 = por %p41, %p42
    %s45 = sadd.s32 %s44, 1
    %p48 = scmp.eq.s32.totalorder %s10, 1
    %p49 = scmp.ne.s32.totalorder %s44, %s46
    %p50 = scmp.eq.s32.totalorder %s10, 0
    %p51 = por %p49, %p50
    %p52 = scmp.ne.s32.totalorder %s44, %s46
    %p53 = scmp.eq.s32.totalorder %s15, 1
    %p54 = por %p52, %p53
    %p55 = scmp.ne.s32.totalorder %s46, %s47
    %p56 = scmp.eq.s32.totalorder %s15, 0
    %p57 = por %p55, %p56
    %p58 = scmp.ne.s32.totalorder %s46, %s47
    %p59 = scmp.eq.s32.totalorder %s16, 1
    %p60 = por %p58, %p59
    %p62 = scmp.ne.s32.totalorder %s47, %s61
    %p63 = scmp.eq.s32.totalorder %s16, 0
    %p64 = por %p62, %p63
    %s65 = ssub.s32 %s10, %s17
    %p66 = scmp.eq.s32.totalorder %s65, 0
    %s68 = sadd.s32 %s67, 1
    %s69 = scalar_select %p66, %s67, %s68
    %p72 = pneg %p66
    %p73 = scmp.eq.s32.totalorder %s10, 1
    %p74 = por %p72, %p73
    %p75 = scmp.ne.s32.totalorder %s67, %s70
    %p76 = scmp.eq.s32.totalorder %s10, 0
    %p77 = por %p75, %p76
    %p78 = scmp.ne.s32.totalorder %s67, %s70
    %p79 = scmp.eq.s32.totalorder %s15, 1
    %p80 = por %p78, %p79
    %p81 = scmp.ne.s32.totalorder %s70, %s71
    %p82 = scmp.eq.s32.totalorder %s15, 0
    %p83 = por %p81, %p82
    %p84 = scmp.ne.s32.totalorder %s70, %s71
    %p85 = scmp.eq.s32.totalorder %s16, 1
    %p86 = por %p84, %p85
    %p88 = scmp.ne.s32.totalorder %s71, %s87
    %p89 = scmp.eq.s32.totalorder %s16, 0
    %p90 = por %p88, %p89
    %s91 = ssub.s32 %s10, %s17
    %p92 = scmp.eq.s32.totalorder %s91, 0
    %s94 = sadd.s32 %s93, 1
    %s95 = scalar_select %p92, %s93, %s94
    %p98 = pneg %p92
    %p99 = scmp.eq.s32.totalorder %s10, 1
    %p100 = por %p98, %p99
    %p101 = scmp.ne.s32.totalorder %s93, %s96
    %p102 = scmp.eq.s32.totalorder %s10, 0
    %p103 = por %p101, %p102
    %p104 = scmp.ne.s32.totalorder %s93, %s96
    %p105 = scmp.eq.s32.totalorder %s15, 1
    %p106 = por %p104, %p105
    %p107 = scmp.ne.s32.totalorder %s96, %s97
    %p108 = scmp.eq.s32.totalorder %s15, 0
    %p109 = por %p107, %p108
    %p110 = scmp.ne.s32.totalorder %s96, %s97
    %p111 = scmp.eq.s32.totalorder %s16, 1
    %p112 = por %p110, %p111
    %p114 = scmp.ne.s32.totalorder %s97, %s113
    %p115 = scmp.eq.s32.totalorder %s16, 0
    %p116 = por %p114, %p115
    %p117 = scmp.le.s32.totalorder 1, %s10
    %p118 = scmp.lt.s32.totalorder %s10, 3
    %p119 = pnand %p117, %p118
    %p120 = pneg %p119
    // Predicated region
    $region9: #{residual_block_forward.5} parent=5 // pred_check
      _
    $region10: #{residual_block_forward.5} parent=5 // pred_check_branch
      %122 = sbr.rel (%p119) target = $region12
    $region11: #{residual_block_forward.5} parent=5 // pred_region
      %s123 = ssub.s32 %s10, 1
      // Predicated region
      $region13: #{residual_block_forward.5} parent=11 // pred_check
        %p124 = pneg %p57
      $region14: #{residual_block_forward.5} parent=11 // pred_check_branch
        %126 = sbr.rel (%p124) target = $region16
      $region15: #{residual_block_forward.5} parent=11 // pred_region
        _
      $region16: #{residual_block_forward.5} parent=11 // pred_fallthru
        _
    $region12: #{residual_block_forward.5} parent=5 // pred_fallthru
      _
    %p127 = scmp.lt.s32.totalorder %s10, 2
    // Predicated region
    $region17: #{residual_block_forward.5} parent=5 // pred_check
      %p128 = pneg %p127
    $region18: #{residual_block_forward.5} parent=5 // pred_check_branch
      %130 = sbr.rel (%p128) target = $region20
    $region19: #{residual_block_forward.5} parent=5 // pred_region
      // Predicated region
      $region21: #{residual_block_forward.5} parent=19 // pred_check
        %p131 = pneg %p30
      $region22: #{residual_block_forward.5} parent=19 // pred_check_branch
        %133 = sbr.rel (%p131) target = $region24
      $region23: #{residual_block_forward.5} parent=19 // pred_region
        %p134 = scmp.lt.s32.totalorder %s10, 1
        %s135 = scalar_select %p134, %s10, 1
        %s136 = smul.addr %s135, 72
        %s137 = smul.addr %s136, 4
        %s138 = scalar_lea.vmem %s0, %s137
      $region24: #{residual_block_forward.5} parent=19 // pred_fallthru
        _
    $region20: #{residual_block_forward.5} parent=5 // pred_fallthru
      _
    %p139 = scmp.le.s32.totalorder 1, %s10
    %p140 = scmp.lt.s32.totalorder %s10, 3
    %p141 = pnand %p139, %p140
    %p142 = pneg %p141
    // Predicated region
    $region25: #{residual_block_forward.5} parent=5 // pred_check
      _
    $region26: #{residual_block_forward.5} parent=5 // pred_check_branch
      %144 = sbr.rel (%p141) target = $region28
    $region27: #{residual_block_forward.5} parent=5 // pred_region
      %s145 = ssub.s32 %s10, 1
      %p146 = scmp.lt.s32.totalorder %s15, 1
      %s147 = scalar_select %p146, %s15, 1
      %s148 = smul.addr %s147, 72
      %s149 = smul.addr %s148, 4
      %s150 = scalar_lea.vmem %s0, %s149
      %p151 = pneg %p36
      %p152 = pneg %p33
      %p153 = pneg %p57
      %p154 = pneg %p54
      %p155 = pneg %p83
      %p156 = pneg %p80
      %p157 = scmp.lt.s32.totalorder %s15, 1
      %s158 = scalar_select %p157, %s15, 1
      %s159 = smul.addr %s158, 8
      %s160 = smul.addr %s159, 4
      %s161 = scalar_lea.vmem %s2, %s160
      %p162 = pneg %p109
      %p163 = pneg %p106
      %p164 = scmp.lt.s32.totalorder %s15, 1
      %s165 = scalar_select %p164, %s15, 1
      %s166 = smul.addr %s165, 2
      %s167 = scalar_lea.vmem %s3, %s166
      %p168 = scmp.lt.s32.totalorder %s15, 1
      %s169 = scalar_select %p168, %s15, 1
      %s170 = smul.addr %s169, 72
      %s171 = smul.addr %s170, 4
      %s172 = scalar_lea.vmem %s0, %s171
      %p173 = scmp.lt.s32.totalorder %s15, 1
      %s174 = scalar_select %p173, %s15, 1
      %s175 = smul.addr %s174, 8
      %s176 = smul.addr %s175, 4
      %s177 = scalar_lea.vmem %s2, %s176
      %p178 = scmp.lt.s32.totalorder %s15, 1
      %s179 = scalar_select %p178, %s15, 1
      %s180 = smul.addr %s179, 2
      %s181 = scalar_lea.vmem %s3, %s180
      %v183 = vld [vmem:[%s172] sm:$0xf]
      %v184 = vld [vmem:[%s172 + $0x8] sm:$0xf]
      %v185 = vld [vmem:[%s172 + $0x10] sm:$0xf]
      %v186 = vld [vmem:[%s172 + $0x18] sm:$0xf]
      %v187 = vld [vmem:[%s172 + $0x20] sm:$0xf]
      %v188 = vld [vmem:[%s172 + $0x28] sm:$0xf]
      %v189 = vld [vmem:[%s172 + $0x30] sm:$0xf]
      %v190 = vld [vmem:[%s172 + $0x38] sm:$0xf]
      %v191 = vld [vmem:[%s1] sm:$0xf]
      %s192 = scalar_lea.vmem %s172, 72
      %v193 = vld [vmem:[%s192] sm:$0xf]
      %v194 = vld [vmem:[%s192 + $0x8] sm:$0xf]
      %v195 = vld [vmem:[%s192 + $0x10] sm:$0xf]
      %v196 = vld [vmem:[%s192 + $0x18] sm:$0xf]
      %v197 = vld [vmem:[%s192 + $0x20] sm:$0xf]
      %v198 = vld [vmem:[%s192 + $0x28] sm:$0xf]
      %v199 = vld [vmem:[%s192 + $0x30] sm:$0xf]
      %v200 = vld [vmem:[%s192 + $0x38] sm:$0xf]
      %s201 = scalar_lea.vmem %s1, 4
      %v202 = vld [vmem:[%s201] sm:$0xf]
      %v211 = vunpack.c.l.b16 %v193
      %v212 = vunpack.c.l.b16 %v194
      %v213 = vunpack.c.l.b16 %v195
      %v214 = vunpack.c.l.b16 %v196
      %v215 = vunpack.c.l.b16 %v197
      %v216 = vunpack.c.l.b16 %v198
      %v217 = vunpack.c.l.b16 %v199
      %v218 = vunpack.c.l.b16 %v200
      %v219 = vpack.c.b16 %v212, %v211
      %v220 = vpack.c.b16 %v214, %v213
      %v221 = vpack.c.b16 %v216, %v215
      %v222 = vpack.c.b16 %v218, %v217
      %vm223 = vcmask 64512
      %v225 = vsel %vm223, %v219, 0
      %v228 = vsel %vm223, %v220, 0
      %v231 = vsel %vm223, %v221, 0
      %v234 = vsel %vm223, %v222, 0
      %vm236 = vcmask 1043456
      %v238 = vsel %vm236, %v202, 0
      %240 = vmatprep.subr.bf16.mxu0 0
      %241 = vmatpush1.bf16.msra.mxu0 0
      %242 = vmatprep.subr.bf16.mxu0 0
      %243 = vmatpush1.bf16.msra.mxu0 0
      %244 = vmatprep.subr.bf16.mxu0 0
      %245 = vmatpush1.bf16.msra.mxu0 0
      %246 = vmatprep.subr.bf16.mxu0 0
      %247 = vmatpush1.bf16.msra.mxu0 0
      %248 = vmatprep.subr.bf16.mxu0 0
      %249 = vmatpush1.bf16.msra.mxu0 0
      %250 = vmatprep.subr.bf16.mxu0 0
      %251 = vmatpush1.bf16.msra.mxu0 0
      %252 = vmatprep.subr.bf16.mxu0 0
      %253 = vmatpush1.bf16.msra.mxu0 0
      %254 = vmatprep.subr.bf16.mxu0 0
      %255 = vmatpush1.bf16.msra.mxu0 %v238
      %256 = vmatprep.subr.bf16.mxu0 0
      %257 = vmatpush2.bf16.msra.mxu0 0
      %258 = vmatprep.subr.bf16.mxu0 0
      %259 = vmatpush2.bf16.msra.mxu0 0
      %260 = vmatprep.subr.bf16.mxu0 0
      %261 = vmatpush2.bf16.msra.mxu0 0
      %262 = vmatprep.subr.bf16.mxu0 0
      %263 = vmatpush2.bf16.msra.mxu0 0
      %264 = vmatprep.subr.bf16.mxu0 0
      %265 = vmatpush2.bf16.msra.mxu0 0
      %266 = vmatprep.subr.bf16.mxu0 0
      %267 = vmatpush2.bf16.msra.mxu0 0
      %268 = vmatprep.subr.bf16.mxu0 0
      %269 = vmatpush2.bf16.msra.mxu0 0
      %270 = vmatprep.subr.bf16.mxu0 0
      %271 = vmatpush2.bf16.msra.mxu0 0
      %272 = vmatprep.mubr.bf16.mxu0 0
      %273 = vmatmul.mubr.bf16.gmra.mxu0 %v225
      %v274 = vpop.f32.mrf.mxu0
      %v275 = vadd.f32 0.0, %v274
      %v276 = vpop.f32.mrf.mxu0
      %v277 = vpop.f32.mrf.mxu0
      %v278 = vadd.f32 0.0, %v277
      %v279 = vpop.f32.mrf.mxu0
      %280 = vmatprep.mubr.bf16.mxu0 0
      %281 = vmatmul.mubr.bf16.gmra.mxu0 %v228
      %v282 = vpop.f32.mrf.mxu0
      %v283 = vadd.f32 0.0, %v282
      %v284 = vpop.f32.mrf.mxu0
      %v285 = vpop.f32.mrf.mxu0
      %v286 = vadd.f32 0.0, %v285
      %v287 = vpop.f32.mrf.mxu0
      %288 = vmatprep.mubr.bf16.mxu0 0
      %289 = vmatmul.mubr.bf16.gmra.mxu0 %v231
      %v290 = vpop.f32.mrf.mxu0
      %v291 = vadd.f32 0.0, %v290
      %v292 = vpop.f32.mrf.mxu0
      %v293 = vpop.f32.mrf.mxu0
      %v294 = vadd.f32 0.0, %v293
      %v295 = vpop.f32.mrf.mxu0
      %296 = vmatprep.mubr.bf16.mxu0 0
      %297 = vmatmul.mubr.bf16.gmra.mxu0 %v234
      %v298 = vpop.f32.mrf.mxu0
      %v299 = vadd.f32 0.0, %v298
      %v300 = vpop.f32.mrf.mxu0
      %v301 = vpop.f32.mrf.mxu0
      %v302 = vadd.f32 0.0, %v301
      %v303 = vpop.f32.mrf.mxu0
      %304 = vdwg.mxu0
      %v313 = vunpack.c.l.b16 %v183
      %v314 = vunpack.c.l.b16 %v184
      %v315 = vunpack.c.l.b16 %v185
      %v316 = vunpack.c.l.b16 %v186
      %v317 = vunpack.c.l.b16 %v187
      %v318 = vunpack.c.l.b16 %v188
      %v319 = vunpack.c.l.b16 %v189
      %v320 = vunpack.c.l.b16 %v190
      %v321 = vpack.c.b16 %v314, %v313
      %v322 = vpack.c.b16 %v316, %v315
      %v323 = vpack.c.b16 %v318, %v317
      %v324 = vpack.c.b16 %v320, %v319
      %v326 = vsel %vm223, %v321, 0
      %v329 = vsel %vm223, %v322, 0
      %v332 = vsel %vm223, %v323, 0
      %v335 = vsel %vm223, %v324, 0
      %v338 = vsel %vm236, %v191, 0
      %340 = vmatprep.subr.bf16.mxu0 0
      %341 = vmatpush1.bf16.msra.mxu0 0
      %342 = vmatprep.subr.bf16.mxu0 0
      %343 = vmatpush1.bf16.msra.mxu0 0
      %344 = vmatprep.subr.bf16.mxu0 0
      %345 = vmatpush1.bf16.msra.mxu0 0
      %346 = vmatprep.subr.bf16.mxu0 0
      %347 = vmatpush1.bf16.msra.mxu0 0
      %348 = vmatprep.subr.bf16.mxu0 0
      %349 = vmatpush1.bf16.msra.mxu0 0
      %350 = vmatprep.subr.bf16.mxu0 0
      %351 = vmatpush1.bf16.msra.mxu0 0
      %352 = vmatprep.subr.bf16.mxu0 0
      %353 = vmatpush1.bf16.msra.mxu0 0
      %354 = vmatprep.subr.bf16.mxu0 0
      %355 = vmatpush1.bf16.msra.mxu0 %v338
      %356 = vmatprep.subr.bf16.mxu0 0
      %357 = vmatpush2.bf16.msra.mxu0 0
      %358 = vmatprep.subr.bf16.mxu0 0
      %359 = vmatpush2.bf16.msra.mxu0 0
      %360 = vmatprep.subr.bf16.mxu0 0
      %361 = vmatpush2.bf16.msra.mxu0 0
      %362 = vmatprep.subr.bf16.mxu0 0
      %363 = vmatpush2.bf16.msra.mxu0 0
      %364 = vmatprep.subr.bf16.mxu0 0
      %365 = vmatpush2.bf16.msra.mxu0 0
      %366 = vmatprep.subr.bf16.mxu0 0
      %367 = vmatpush2.bf16.msra.mxu0 0
      %368 = vmatprep.subr.bf16.mxu0 0
      %369 = vmatpush2.bf16.msra.mxu0 0
      %370 = vmatprep.subr.bf16.mxu0 0
      %371 = vmatpush2.bf16.msra.mxu0 0
      %372 = vmatprep.mubr.bf16.mxu0 0
      %373 = vmatmul.mubr.bf16.gmra.mxu0 %v326
      %v374 = vpop.f32.mrf.mxu0
      %v375 = vadd.f32 %v275, %v374
      %v376 = vpop.f32.mrf.mxu0
      %v377 = vpop.f32.mrf.mxu0
      %v378 = vadd.f32 %v278, %v377
      %v379 = vpop.f32.mrf.mxu0
      %380 = vmatprep.mubr.bf16.mxu0 0
      %381 = vmatmul.mubr.bf16.gmra.mxu0 %v329
      %v382 = vpop.f32.mrf.mxu0
      %v383 = vadd.f32 %v283, %v382
      %v384 = vpop.f32.mrf.mxu0
      %v385 = vpop.f32.mrf.mxu0
      %v386 = vadd.f32 %v286, %v385
      %v387 = vpop.f32.mrf.mxu0
      %388 = vmatprep.mubr.bf16.mxu0 0
      %389 = vmatmul.mubr.bf16.gmra.mxu0 %v332
      %v390 = vpop.f32.mrf.mxu0
      %v391 = vadd.f32 %v291, %v390
      %v392 = vpop.f32.mrf.mxu0
      %v393 = vpop.f32.mrf.mxu0
      %v394 = vadd.f32 %v294, %v393
      %v395 = vpop.f32.mrf.mxu0
      %396 = vmatprep.mubr.bf16.mxu0 0
      %397 = vmatmul.mubr.bf16.gmra.mxu0 %v335
      %v398 = vpop.f32.mrf.mxu0
      %v399 = vadd.f32 %v299, %v398
      %v400 = vpop.f32.mrf.mxu0
      %v401 = vpop.f32.mrf.mxu0
      %v402 = vadd.f32 %v302, %v401
      %v403 = vpop.f32.mrf.mxu0
      %404 = vdwg.mxu0
      %v405 = vld [vmem:[%s172] sm:$0xf]
      %v406 = vld [vmem:[%s172 + $0x4] sm:$0x1]
      %v407 = vld [vmem:[%s172 + $0x8] sm:$0xf]
      %v408 = vld [vmem:[%s172 + $0xc] sm:$0x1]
      %v409 = vld [vmem:[%s172 + $0x10] sm:$0xf]
      %v410 = vld [vmem:[%s172 + $0x14] sm:$0x1]
      %v411 = vld [vmem:[%s172 + $0x18] sm:$0xf]
      %v412 = vld [vmem:[%s172 + $0x1c] sm:$0x1]
      %v413 = vld [vmem:[%s172 + $0x20] sm:$0xf]
      %v414 = vld [vmem:[%s172 + $0x24] sm:$0x1]
      %v415 = vld [vmem:[%s172 + $0x28] sm:$0xf]
      %v416 = vld [vmem:[%s172 + $0x2c] sm:$0x1]
      %v417 = vld [vmem:[%s172 + $0x30] sm:$0xf]
      %v418 = vld [vmem:[%s172 + $0x34] sm:$0x1]
      %v419 = vld [vmem:[%s172 + $0x38] sm:$0xf]
      %v420 = vld [vmem:[%s172 + $0x3c] sm:$0x1]
      %vm421 = vsmask.f32 3328
      %vm422 = vsmask.f32 7440
      %vm423 = vmor %vm421, %vm422
      %v425 = vshrl.u32 %v405, 16
      %v427 = vrot.slane %v425, 4
      %v428 = vshll.u32 %v405, 16
      %v430 = vrot.slane %v428, 5
      %v431 = vor.u32 %v427, %v430
      %v432 = vrot.slane %v431, 4
      %v434 = vshll.u32 %v406, 16
      %v436 = vrot.slane %v434, 5
      %v437 = vsel %vm423, %v432, %v436
      %v439 = vshrl.u32 %v407, 16
      %v441 = vrot.slane %v439, 4
      %v442 = vshll.u32 %v407, 16
      %v444 = vrot.slane %v442, 5
      %v445 = vor.u32 %v441, %v444
      %v446 = vrot.slane %v445, 4
      %v448 = vshll.u32 %v408, 16
      %v450 = vrot.slane %v448, 5
      %v451 = vsel %vm423, %v446, %v450
      %v453 = vshrl.u32 %v409, 16
      %v455 = vrot.slane %v453, 4
      %v456 = vshll.u32 %v409, 16
      %v458 = vrot.slane %v456, 5
      %v459 = vor.u32 %v455, %v458
      %v460 = vrot.slane %v459, 4
      %v462 = vshll.u32 %v410, 16
      %v464 = vrot.slane %v462, 5
      %v465 = vsel %vm423, %v460, %v464
      %v467 = vshrl.u32 %v411, 16
      %v469 = vrot.slane %v467, 4
      %v470 = vshll.u32 %v411, 16
      %v472 = vrot.slane %v470, 5
      %v473 = vor.u32 %v469, %v472
      %v474 = vrot.slane %v473, 4
      %v476 = vshll.u32 %v412, 16
      %v478 = vrot.slane %v476, 5
      %v479 = vsel %vm423, %v474, %v478
      %v481 = vshrl.u32 %v413, 16
      %v483 = vrot.slane %v481, 4
      %v484 = vshll.u32 %v413, 16
      %v486 = vrot.slane %v484, 5
      %v487 = vor.u32 %v483, %v486
      %v488 = vrot.slane %v487, 4
      %v490 = vshll.u32 %v414, 16
      %v492 = vrot.slane %v490, 5
      %v493 = vsel %vm423, %v488, %v492
      %v495 = vshrl.u32 %v415, 16
      %v497 = vrot.slane %v495, 4
      %v498 = vshll.u32 %v415, 16
      %v500 = vrot.slane %v498, 5
      %v501 = vor.u32 %v497, %v500
      %v502 = vrot.slane %v501, 4
      %v504 = vshll.u32 %v416, 16
      %v506 = vrot.slane %v504, 5
      %v507 = vsel %vm423, %v502, %v506
      %v509 = vshrl.u32 %v417, 16
      %v511 = vrot.slane %v509, 4
      %v512 = vshll.u32 %v417, 16
      %v514 = vrot.slane %v512, 5
      %v515 = vor.u32 %v511, %v514
      %v516 = vrot.slane %v515, 4
      %v518 = vshll.u32 %v418, 16
      %v520 = vrot.slane %v518, 5
      %v521 = vsel %vm423, %v516, %v520
      %v523 = vshrl.u32 %v419, 16
      %v525 = vrot.slane %v523, 4
      %v526 = vshll.u32 %v419, 16
      %v528 = vrot.slane %v526, 5
      %v529 = vor.u32 %v525, %v528
      %v530 = vrot.slane %v529, 4
      %v532 = vshll.u32 %v420, 16
      %v534 = vrot.slane %v532, 5
      %v535 = vsel %vm423, %v530, %v534
      %s536 = scalar_lea.vmem %s1, 8
      %v537 = vld [vmem:[%s536] sm:$0xf]
      %v538 = vunpack.c.l.b16 %v437
      %v539 = vunpack.c.l.b16 %v451
      %v540 = vunpack.c.l.b16 %v465
      %v541 = vunpack.c.l.b16 %v479
      %v542 = vunpack.c.l.b16 %v493
      %v543 = vunpack.c.l.b16 %v507
      %v544 = vunpack.c.l.b16 %v521
      %v545 = vunpack.c.l.b16 %v535
      %v546 = vpack.c.b16 %v539, %v538
      %v547 = vpack.c.b16 %v541, %v540
      %v548 = vpack.c.b16 %v543, %v542
      %v549 = vpack.c.b16 %v545, %v544
      %v551 = vsel %vm223, %v546, 0
      %v554 = vsel %vm223, %v547, 0
      %v557 = vsel %vm223, %v548, 0
      %v560 = vsel %vm223, %v549, 0
      %v563 = vsel %vm236, %v537, 0
      %565 = vmatprep.subr.bf16.mxu0 0
      %566 = vmatpush1.bf16.msra.mxu0 0
      %567 = vmatprep.subr.bf16.mxu0 0
      %568 = vmatpush1.bf16.msra.mxu0 0
      %569 = vmatprep.subr.bf16.mxu0 0
      %570 = vmatpush1.bf16.msra.mxu0 0
      %571 = vmatprep.subr.bf16.mxu0 0
      %572 = vmatpush1.bf16.msra.mxu0 0
      %573 = vmatprep.subr.bf16.mxu0 0
      %574 = vmatpush1.bf16.msra.mxu0 0
      %575 = vmatprep.subr.bf16.mxu0 0
      %576 = vmatpush1.bf16.msra.mxu0 0
      %577 = vmatprep.subr.bf16.mxu0 0
      %578 = vmatpush1.bf16.msra.mxu0 0
      %579 = vmatprep.subr.bf16.mxu0 0
      %580 = vmatpush1.bf16.msra.mxu0 %v563
      %581 = vmatprep.subr.bf16.mxu0 0
      %582 = vmatpush2.bf16.msra.mxu0 0
      %583 = vmatprep.subr.bf16.mxu0 0
      %584 = vmatpush2.bf16.msra.mxu0 0
      %585 = vmatprep.subr.bf16.mxu0 0
      %586 = vmatpush2.bf16.msra.mxu0 0
      %587 = vmatprep.subr.bf16.mxu0 0
      %588 = vmatpush2.bf16.msra.mxu0 0
      %589 = vmatprep.subr.bf16.mxu0 0
      %590 = vmatpush2.bf16.msra.mxu0 0
      %591 = vmatprep.subr.bf16.mxu0 0
      %592 = vmatpush2.bf16.msra.mxu0 0
      %593 = vmatprep.subr.bf16.mxu0 0
      %594 = vmatpush2.bf16.msra.mxu0 0
      %595 = vmatprep.subr.bf16.mxu0 0
      %596 = vmatpush2.bf16.msra.mxu0 0
      %597 = vmatprep.mubr.bf16.mxu0 0
      %598 = vmatmul.mubr.bf16.gmra.mxu0 %v551
      %v599 = vpop.f32.mrf.mxu0
      %v600 = vadd.f32 0.0, %v599
      %v601 = vpop.f32.mrf.mxu0
      %v602 = vpop.f32.mrf.mxu0
      %v603 = vadd.f32 0.0, %v602
      %v604 = vpop.f32.mrf.mxu0
      %605 = vmatprep.mubr.bf16.mxu0 0
      %606 = vmatmul.mubr.bf16.gmra.mxu0 %v554
      %v607 = vpop.f32.mrf.mxu0
      %v608 = vadd.f32 0.0, %v607
      %v609 = vpop.f32.mrf.mxu0
      %v610 = vpop.f32.mrf.mxu0
      %v611 = vadd.f32 0.0, %v610
      %v612 = vpop.f32.mrf.mxu0
      %613 = vmatprep.mubr.bf16.mxu0 0
      %614 = vmatmul.mubr.bf16.gmra.mxu0 %v557
      %v615 = vpop.f32.mrf.mxu0
      %v616 = vadd.f32 0.0, %v615
      %v617 = vpop.f32.mrf.mxu0
      %v618 = vpop.f32.mrf.mxu0
      %v619 = vadd.f32 0.0, %v618
      %v620 = vpop.f32.mrf.mxu0
      %621 = vmatprep.mubr.bf16.mxu0 0
      %622 = vmatmul.mubr.bf16.gmra.mxu0 %v560
      %v623 = vpop.f32.mrf.mxu0
      %v624 = vadd.f32 0.0, %v623
      %v625 = vpop.f32.mrf.mxu0
      %v626 = vpop.f32.mrf.mxu0
      %v627 = vadd.f32 0.0, %v626
      %v628 = vpop.f32.mrf.mxu0
      %629 = vdwg.mxu0
      %v630 = vadd.f32 %v375, %v600
      %v631 = vadd.f32 %v378, %v603
      %v632 = vadd.f32 %v383, %v608
      %v633 = vadd.f32 %v386, %v611
      %v634 = vadd.f32 %v391, %v616
      %v635 = vadd.f32 %v394, %v619
      %v636 = vadd.f32 %v399, %v624
      %v637 = vadd.f32 %v402, %v627
      %s638 = scalar_lea.vmem %s172, 144
      %v639 = vld [vmem:[%s638] sm:$0xf]
      %v640 = vld [vmem:[%s638 + $0x8] sm:$0xf]
      %v641 = vld [vmem:[%s638 + $0x10] sm:$0xf]
      %v642 = vld [vmem:[%s638 + $0x18] sm:$0xf]
      %v643 = vld [vmem:[%s638 + $0x20] sm:$0xf]
      %v644 = vld [vmem:[%s638 + $0x28] sm:$0xf]
      %v645 = vld [vmem:[%s638 + $0x30] sm:$0xf]
      %v646 = vld [vmem:[%s638 + $0x38] sm:$0xf]
      %s647 = scalar_lea.vmem %s1, 12
      %v648 = vld [vmem:[%s647] sm:$0xf]
      %v657 = vunpack.c.l.b16 %v639
      %v658 = vunpack.c.l.b16 %v640
      %v659 = vunpack.c.l.b16 %v641
      %v660 = vunpack.c.l.b16 %v642
      %v661 = vunpack.c.l.b16 %v643
      %v662 = vunpack.c.l.b16 %v644
      %v663 = vunpack.c.l.b16 %v645
      %v664 = vunpack.c.l.b16 %v646
      %v665 = vpack.c.b16 %v658, %v657
      %v666 = vpack.c.b16 %v660, %v659
      %v667 = vpack.c.b16 %v662, %v661
      %v668 = vpack.c.b16 %v664, %v663
      %v670 = vsel %vm223, %v665, 0
      %v673 = vsel %vm223, %v666, 0
      %v676 = vsel %vm223, %v667, 0
      %v679 = vsel %vm223, %v668, 0
      %v682 = vsel %vm236, %v648, 0
      %684 = vmatprep.subr.bf16.mxu0 0
      %685 = vmatpush1.bf16.msra.mxu0 0
      %686 = vmatprep.subr.bf16.mxu0 0
      %687 = vmatpush1.bf16.msra.mxu0 0
      %688 = vmatprep.subr.bf16.mxu0 0
      %689 = vmatpush1.bf16.msra.mxu0 0
      %690 = vmatprep.subr.bf16.mxu0 0
      %691 = vmatpush1.bf16.msra.mxu0 0
      %692 = vmatprep.subr.bf16.mxu0 0
      %693 = vmatpush1.bf16.msra.mxu0 0
      %694 = vmatprep.subr.bf16.mxu0 0
      %695 = vmatpush1.bf16.msra.mxu0 0
      %696 = vmatprep.subr.bf16.mxu0 0
      %697 = vmatpush1.bf16.msra.mxu0 0
      %698 = vmatprep.subr.bf16.mxu0 0
      %699 = vmatpush1.bf16.msra.mxu0 %v682
      %700 = vmatprep.subr.bf16.mxu0 0
      %701 = vmatpush2.bf16.msra.mxu0 0
      %702 = vmatprep.subr.bf16.mxu0 0
      %703 = vmatpush2.bf16.msra.mxu0 0
      %704 = vmatprep.subr.bf16.mxu0 0
      %705 = vmatpush2.bf16.msra.mxu0 0
      %706 = vmatprep.subr.bf16.mxu0 0
      %707 = vmatpush2.bf16.msra.mxu0 0
      %708 = vmatprep.subr.bf16.mxu0 0
      %709 = vmatpush2.bf16.msra.mxu0 0
      %710 = vmatprep.subr.bf16.mxu0 0
      %711 = vmatpush2.bf16.msra.mxu0 0
      %712 = vmatprep.subr.bf16.mxu0 0
      %713 = vmatpush2.bf16.msra.mxu0 0
      %714 = vmatprep.subr.bf16.mxu0 0
      %715 = vmatpush2.bf16.msra.mxu0 0
      %716 = vmatprep.mubr.bf16.mxu0 0
      %717 = vmatmul.mubr.bf16.gmra.mxu0 %v670
      %v718 = vpop.f32.mrf.mxu0
      %v719 = vadd.f32 0.0, %v718
      %v720 = vpop.f32.mrf.mxu0
      %v721 = vpop.f32.mrf.mxu0
      %v722 = vadd.f32 0.0, %v721
      %v723 = vpop.f32.mrf.mxu0
      %724 = vmatprep.mubr.bf16.mxu0 0
      %725 = vmatmul.mubr.bf16.gmra.mxu0 %v673
      %v726 = vpop.f32.mrf.mxu0
      %v727 = vadd.f32 0.0, %v726
      %v728 = vpop.f32.mrf.mxu0
      %v729 = vpop.f32.mrf.mxu0
      %v730 = vadd.f32 0.0, %v729
      %v731 = vpop.f32.mrf.mxu0
      %732 = vmatprep.mubr.bf16.mxu0 0
      %733 = vmatmul.mubr.bf16.gmra.mxu0 %v676
      %v734 = vpop.f32.mrf.mxu0
      %v735 = vadd.f32 0.0, %v734
      %v736 = vpop.f32.mrf.mxu0
      %v737 = vpop.f32.mrf.mxu0
      %v738 = vadd.f32 0.0, %v737
      %v739 = vpop.f32.mrf.mxu0
      %740 = vmatprep.mubr.bf16.mxu0 0
      %741 = vmatmul.mubr.bf16.gmra.mxu0 %v679
      %v742 = vpop.f32.mrf.mxu0
      %v743 = vadd.f32 0.0, %v742
      %v744 = vpop.f32.mrf.mxu0
      %v745 = vpop.f32.mrf.mxu0
      %v746 = vadd.f32 0.0, %v745
      %v747 = vpop.f32.mrf.mxu0
      %748 = vdwg.mxu0
      %v749 = vadd.f32 %v630, %v719
      %v750 = vadd.f32 %v631, %v722
      %v751 = vadd.f32 %v632, %v727
      %v752 = vadd.f32 %v633, %v730
      %v753 = vadd.f32 %v634, %v735
      %v754 = vadd.f32 %v635, %v738
      %v755 = vadd.f32 %v636, %v743
      %v756 = vadd.f32 %v637, %v746
      %s757 = scalar_lea.vmem %s172, 216
      %v758 = vld [vmem:[%s757] sm:$0xf]
      %v759 = vld [vmem:[%s757 + $0x8] sm:$0xf]
      %v760 = vld [vmem:[%s757 + $0x10] sm:$0xf]
      %v761 = vld [vmem:[%s757 + $0x18] sm:$0xf]
      %v762 = vld [vmem:[%s757 + $0x20] sm:$0xf]
      %v763 = vld [vmem:[%s757 + $0x28] sm:$0xf]
      %v764 = vld [vmem:[%s757 + $0x30] sm:$0xf]
      %v765 = vld [vmem:[%s757 + $0x38] sm:$0xf]
      %s766 = scalar_lea.vmem %s1, 16
      %v767 = vld [vmem:[%s766] sm:$0xf]
      %v776 = vunpack.c.l.b16 %v758
      %v777 = vunpack.c.l.b16 %v759
      %v778 = vunpack.c.l.b16 %v760
      %v779 = vunpack.c.l.b16 %v761
      %v780 = vunpack.c.l.b16 %v762
      %v781 = vunpack.c.l.b16 %v763
      %v782 = vunpack.c.l.b16 %v764
      %v783 = vunpack.c.l.b16 %v765
      %v784 = vpack.c.b16 %v777, %v776
      %v785 = vpack.c.b16 %v779, %v778
      %v786 = vpack.c.b16 %v781, %v780
      %v787 = vpack.c.b16 %v783, %v782
      %v789 = vsel %vm223, %v784, 0
      %v792 = vsel %vm223, %v785, 0
      %v795 = vsel %vm223, %v786, 0
      %v798 = vsel %vm223, %v787, 0
      %v801 = vsel %vm236, %v767, 0
      %803 = vmatprep.subr.bf16.mxu0 0
      %804 = vmatpush1.bf16.msra.mxu0 0
      %805 = vmatprep.subr.bf16.mxu0 0
      %806 = vmatpush1.bf16.msra.mxu0 0
      %807 = vmatprep.subr.bf16.mxu0 0
      %808 = vmatpush1.bf16.msra.mxu0 0
      %809 = vmatprep.subr.bf16.mxu0 0
      %810 = vmatpush1.bf16.msra.mxu0 0
      %811 = vmatprep.subr.bf16.mxu0 0
      %812 = vmatpush1.bf16.msra.mxu0 0
      %813 = vmatprep.subr.bf16.mxu0 0
      %814 = vmatpush1.bf16.msra.mxu0 0
      %815 = vmatprep.subr.bf16.mxu0 0
      %816 = vmatpush1.bf16.msra.mxu0 0
      %817 = vmatprep.subr.bf16.mxu0 0
      %818 = vmatpush1.bf16.msra.mxu0 %v801
      %819 = vmatprep.subr.bf16.mxu0 0
      %820 = vmatpush2.bf16.msra.mxu0 0
      %821 = vmatprep.subr.bf16.mxu0 0
      %822 = vmatpush2.bf16.msra.mxu0 0
      %823 = vmatprep.subr.bf16.mxu0 0
      %824 = vmatpush2.bf16.msra.mxu0 0
      %825 = vmatprep.subr.bf16.mxu0 0
      %826 = vmatpush2.bf16.msra.mxu0 0
      %827 = vmatprep.subr.bf16.mxu0 0
      %828 = vmatpush2.bf16.msra.mxu0 0
      %829 = vmatprep.subr.bf16.mxu0 0
      %830 = vmatpush2.bf16.msra.mxu0 0
      %831 = vmatprep.subr.bf16.mxu0 0
      %832 = vmatpush2.bf16.msra.mxu0 0
      %833 = vmatprep.subr.bf16.mxu0 0
      %834 = vmatpush2.bf16.msra.mxu0 0
      %835 = vmatprep.mubr.bf16.mxu0 0
      %836 = vmatmul.mubr.bf16.gmra.mxu0 %v789
      %v837 = vpop.f32.mrf.mxu0
      %v838 = vadd.f32 0.0, %v837
      %v839 = vpop.f32.mrf.mxu0
      %v840 = vpop.f32.mrf.mxu0
      %v841 = vadd.f32 0.0, %v840
      %v842 = vpop.f32.mrf.mxu0
      %843 = vmatprep.mubr.bf16.mxu0 0
      %844 = vmatmul.mubr.bf16.gmra.mxu0 %v792
      %v845 = vpop.f32.mrf.mxu0
      %v846 = vadd.f32 0.0, %v845
      %v847 = vpop.f32.mrf.mxu0
      %v848 = vpop.f32.mrf.mxu0
      %v849 = vadd.f32 0.0, %v848
      %v850 = vpop.f32.mrf.mxu0
      %851 = vmatprep.mubr.bf16.mxu0 0
      %852 = vmatmul.mubr.bf16.gmra.mxu0 %v795
      %v853 = vpop.f32.mrf.mxu0
      %v854 = vadd.f32 0.0, %v853
      %v855 = vpop.f32.mrf.mxu0
      %v856 = vpop.f32.mrf.mxu0
      %v857 = vadd.f32 0.0, %v856
      %v858 = vpop.f32.mrf.mxu0
      %859 = vmatprep.mubr.bf16.mxu0 0
      %860 = vmatmul.mubr.bf16.gmra.mxu0 %v798
      %v861 = vpop.f32.mrf.mxu0
      %v862 = vadd.f32 0.0, %v861
      %v863 = vpop.f32.mrf.mxu0
      %v864 = vpop.f32.mrf.mxu0
      %v865 = vadd.f32 0.0, %v864
      %v866 = vpop.f32.mrf.mxu0
      %867 = vdwg.mxu0
      %v868 = vadd.f32 %v749, %v838
      %v869 = vadd.f32 %v750, %v841
      %v870 = vadd.f32 %v751, %v846
      %v871 = vadd.f32 %v752, %v849
      %v872 = vadd.f32 %v753, %v854
      %v873 = vadd.f32 %v754, %v857
      %v874 = vadd.f32 %v755, %v862
      %v875 = vadd.f32 %v756, %v865
      %v876 = vld [vmem:[%s638] sm:$0xf]
      %v877 = vld [vmem:[%s638 + $0x4] sm:$0x1]
      %v878 = vld [vmem:[%s638 + $0x8] sm:$0xf]
      %v879 = vld [vmem:[%s638 + $0xc] sm:$0x1]
      %v880 = vld [vmem:[%s638 + $0x10] sm:$0xf]
      %v881 = vld [vmem:[%s638 + $0x14] sm:$0x1]
      %v882 = vld [vmem:[%s638 + $0x18] sm:$0xf]
      %v883 = vld [vmem:[%s638 + $0x1c] sm:$0x1]
      %v884 = vld [vmem:[%s638 + $0x20] sm:$0xf]
      %v885 = vld [vmem:[%s638 + $0x24] sm:$0x1]
      %v886 = vld [vmem:[%s638 + $0x28] sm:$0xf]
      %v887 = vld [vmem:[%s638 + $0x2c] sm:$0x1]
      %v888 = vld [vmem:[%s638 + $0x30] sm:$0xf]
      %v889 = vld [vmem:[%s638 + $0x34] sm:$0x1]
      %v890 = vld [vmem:[%s638 + $0x38] sm:$0xf]
      %v891 = vld [vmem:[%s638 + $0x3c] sm:$0x1]
      %v893 = vshrl.u32 %v876, 16
      %v895 = vrot.slane %v893, 4
      %v896 = vshll.u32 %v876, 16
      %v898 = vrot.slane %v896, 5
      %v899 = vor.u32 %v895, %v898
      %v900 = vrot.slane %v899, 4
      %v902 = vshll.u32 %v877, 16
      %v904 = vrot.slane %v902, 5
      %v905 = vsel %vm423, %v900, %v904
      %v907 = vshrl.u32 %v878, 16
      %v909 = vrot.slane %v907, 4
      %v910 = vshll.u32 %v878, 16
      %v912 = vrot.slane %v910, 5
      %v913 = vor.u32 %v909, %v912
      %v914 = vrot.slane %v913, 4
      %v916 = vshll.u32 %v879, 16
      %v918 = vrot.slane %v916, 5
      %v919 = vsel %vm423, %v914, %v918
      %v921 = vshrl.u32 %v880, 16
      %v923 = vrot.slane %v921, 4
      %v924 = vshll.u32 %v880, 16
      %v926 = vrot.slane %v924, 5
      %v927 = vor.u32 %v923, %v926
      %v928 = vrot.slane %v927, 4
      %v930 = vshll.u32 %v881, 16
      %v932 = vrot.slane %v930, 5
      %v933 = vsel %vm423, %v928, %v932
      %v935 = vshrl.u32 %v882, 16
      %v937 = vrot.slane %v935, 4
      %v938 = vshll.u32 %v882, 16
      %v940 = vrot.slane %v938, 5
      %v941 = vor.u32 %v937, %v940
      %v942 = vrot.slane %v941, 4
      %v944 = vshll.u32 %v883, 16
      %v946 = vrot.slane %v944, 5
      %v947 = vsel %vm423, %v942, %v946
      %v949 = vshrl.u32 %v884, 16
      %v951 = vrot.slane %v949, 4
      %v952 = vshll.u32 %v884, 16
      %v954 = vrot.slane %v952, 5
      %v955 = vor.u32 %v951, %v954
      %v956 = vrot.slane %v955, 4
      %v958 = vshll.u32 %v885, 16
      %v960 = vrot.slane %v958, 5
      %v961 = vsel %vm423, %v956, %v960
      %v963 = vshrl.u32 %v886, 16
      %v965 = vrot.slane %v963, 4
      %v966 = vshll.u32 %v886, 16
      %v968 = vrot.slane %v966, 5
      %v969 = vor.u32 %v965, %v968
      %v970 = vrot.slane %v969, 4
      %v972 = vshll.u32 %v887, 16
      %v974 = vrot.slane %v972, 5
      %v975 = vsel %vm423, %v970, %v974
      %v977 = vshrl.u32 %v888, 16
      %v979 = vrot.slane %v977, 4
      %v980 = vshll.u32 %v888, 16
      %v982 = vrot.slane %v980, 5
      %v983 = vor.u32 %v979, %v982
      %v984 = vrot.slane %v983, 4
      %v986 = vshll.u32 %v889, 16
      %v988 = vrot.slane %v986, 5
      %v989 = vsel %vm423, %v984, %v988
      %v991 = vshrl.u32 %v890, 16
      %v993 = vrot.slane %v991, 4
      %v994 = vshll.u32 %v890, 16
      %v996 = vrot.slane %v994, 5
      %v997 = vor.u32 %v993, %v996
      %v998 = vrot.slane %v997, 4
      %v1000 = vshll.u32 %v891, 16
      %v1002 = vrot.slane %v1000, 5
      %v1003 = vsel %vm423, %v998, %v1002
      %s1004 = scalar_lea.vmem %s1, 20
      %v1005 = vld [vmem:[%s1004] sm:$0xf]
      %v1006 = vunpack.c.l.b16 %v905
      %v1007 = vunpack.c.l.b16 %v919
      %v1008 = vunpack.c.l.b16 %v933
      %v1009 = vunpack.c.l.b16 %v947
      %v1010 = vunpack.c.l.b16 %v961
      %v1011 = vunpack.c.l.b16 %v975
      %v1012 = vunpack.c.l.b16 %v989
      %v1013 = vunpack.c.l.b16 %v1003
      %v1014 = vpack.c.b16 %v1007, %v1006
      %v1015 = vpack.c.b16 %v1009, %v1008
      %v1016 = vpack.c.b16 %v1011, %v1010
      %v1017 = vpack.c.b16 %v1013, %v1012
      %v1019 = vsel %vm223, %v1014, 0
      %v1022 = vsel %vm223, %v1015, 0
      %v1025 = vsel %vm223, %v1016, 0
      %v1028 = vsel %vm223, %v1017, 0
      %v1031 = vsel %vm236, %v1005, 0
      %1033 = vmatprep.subr.bf16.mxu0 0
      %1034 = vmatpush1.bf16.msra.mxu0 0
      %1035 = vmatprep.subr.bf16.mxu0 0
      %1036 = vmatpush1.bf16.msra.mxu0 0
      %1037 = vmatprep.subr.bf16.mxu0 0
      %1038 = vmatpush1.bf16.msra.mxu0 0
      %1039 = vmatprep.subr.bf16.mxu0 0
      %1040 = vmatpush1.bf16.msra.mxu0 0
      %1041 = vmatprep.subr.bf16.mxu0 0
      %1042 = vmatpush1.bf16.msra.mxu0 0
      %1043 = vmatprep.subr.bf16.mxu0 0
      %1044 = vmatpush1.bf16.msra.mxu0 0
      %1045 = vmatprep.subr.bf16.mxu0 0
      %1046 = vmatpush1.bf16.msra.mxu0 0
      %1047 = vmatprep.subr.bf16.mxu0 0
      %1048 = vmatpush1.bf16.msra.mxu0 %v1031
      %1049 = vmatprep.subr.bf16.mxu0 0
      %1050 = vmatpush2.bf16.msra.mxu0 0
      %1051 = vmatprep.subr.bf16.mxu0 0
      %1052 = vmatpush2.bf16.msra.mxu0 0
      %1053 = vmatprep.subr.bf16.mxu0 0
      %1054 = vmatpush2.bf16.msra.mxu0 0
      %1055 = vmatprep.subr.bf16.mxu0 0
      %1056 = vmatpush2.bf16.msra.mxu0 0
      %1057 = vmatprep.subr.bf16.mxu0 0
      %1058 = vmatpush2.bf16.msra.mxu0 0
      %1059 = vmatprep.subr.bf16.mxu0 0
      %1060 = vmatpush2.bf16.msra.mxu0 0
      %1061 = vmatprep.subr.bf16.mxu0 0
      %1062 = vmatpush2.bf16.msra.mxu0 0
      %1063 = vmatprep.subr.bf16.mxu0 0
      %1064 = vmatpush2.bf16.msra.mxu0 0
      %1065 = vmatprep.mubr.bf16.mxu0 0
      %1066 = vmatmul.mubr.bf16.gmra.mxu0 %v1019
      %v1067 = vpop.f32.mrf.mxu0
      %v1068 = vadd.f32 0.0, %v1067
      %v1069 = vpop.f32.mrf.mxu0
      %v1070 = vpop.f32.mrf.mxu0
      %v1071 = vadd.f32 0.0, %v1070
      %v1072 = vpop.f32.mrf.mxu0
      %1073 = vmatprep.mubr.bf16.mxu0 0
      %1074 = vmatmul.mubr.bf16.gmra.mxu0 %v1022
      %v1075 = vpop.f32.mrf.mxu0
      %v1076 = vadd.f32 0.0, %v1075
      %v1077 = vpop.f32.mrf.mxu0
      %v1078 = vpop.f32.mrf.mxu0
      %v1079 = vadd.f32 0.0, %v1078
      %v1080 = vpop.f32.mrf.mxu0
      %1081 = vmatprep.mubr.bf16.mxu0 0
      %1082 = vmatmul.mubr.bf16.gmra.mxu0 %v1025
      %v1083 = vpop.f32.mrf.mxu0
      %v1084 = vadd.f32 0.0, %v1083
      %v1085 = vpop.f32.mrf.mxu0
      %v1086 = vpop.f32.mrf.mxu0
      %v1087 = vadd.f32 0.0, %v1086
      %v1088 = vpop.f32.mrf.mxu0
      %1089 = vmatprep.mubr.bf16.mxu0 0
      %1090 = vmatmul.mubr.bf16.gmra.mxu0 %v1028
      %v1091 = vpop.f32.mrf.mxu0
      %v1092 = vadd.f32 0.0, %v1091
      %v1093 = vpop.f32.mrf.mxu0
      %v1094 = vpop.f32.mrf.mxu0
      %v1095 = vadd.f32 0.0, %v1094
      %v1096 = vpop.f32.mrf.mxu0
      %1097 = vdwg.mxu0
      %v1098 = vadd.f32 %v868, %v1068
      %v1099 = vadd.f32 %v869, %v1071
      %v1100 = vadd.f32 %v870, %v1076
      %v1101 = vadd.f32 %v871, %v1079
      %v1102 = vadd.f32 %v872, %v1084
      %v1103 = vadd.f32 %v873, %v1087
      %v1104 = vadd.f32 %v874, %v1092
      %v1105 = vadd.f32 %v875, %v1095
      %s1106 = scalar_lea.vmem %s172, 8
      %v1107 = vld [vmem:[%s1106] sm:$0xf]
      %v1108 = vld [vmem:[%s1106 + $0x8] sm:$0xf]
      %v1109 = vld [vmem:[%s1106 + $0x10] sm:$0xf]
      %v1110 = vld [vmem:[%s1106 + $0x18] sm:$0xf]
      %v1111 = vld [vmem:[%s1106 + $0x20] sm:$0xf]
      %v1112 = vld [vmem:[%s1106 + $0x28] sm:$0xf]
      %v1113 = vld [vmem:[%s1106 + $0x30] sm:$0xf]
      %v1114 = vld [vmem:[%s1106 + $0x38] sm:$0xf]
      %s1115 = scalar_lea.vmem %s1, 24
      %v1116 = vld [vmem:[%s1115] sm:$0xf]
      %v1125 = vunpack.c.l.b16 %v1107
      %v1126 = vunpack.c.l.b16 %v1108
      %v1127 = vunpack.c.l.b16 %v1109
      %v1128 = vunpack.c.l.b16 %v1110
      %v1129 = vunpack.c.l.b16 %v1111
      %v1130 = vunpack.c.l.b16 %v1112
      %v1131 = vunpack.c.l.b16 %v1113
      %v1132 = vunpack.c.l.b16 %v1114
      %v1133 = vpack.c.b16 %v1126, %v1125
      %v1134 = vpack.c.b16 %v1128, %v1127
      %v1135 = vpack.c.b16 %v1130, %v1129
      %v1136 = vpack.c.b16 %v1132, %v1131
      %v1138 = vsel %vm223, %v1133, 0
      %v1141 = vsel %vm223, %v1134, 0
      %v1144 = vsel %vm223, %v1135, 0
      %v1147 = vsel %vm223, %v1136, 0
      %v1150 = vsel %vm236, %v1116, 0
      %1152 = vmatprep.subr.bf16.mxu0 0
      %1153 = vmatpush1.bf16.msra.mxu0 0
      %1154 = vmatprep.subr.bf16.mxu0 0
      %1155 = vmatpush1.bf16.msra.mxu0 0
      %1156 = vmatprep.subr.bf16.mxu0 0
      %1157 = vmatpush1.bf16.msra.mxu0 0
      %1158 = vmatprep.subr.bf16.mxu0 0
      %1159 = vmatpush1.bf16.msra.mxu0 0
      %1160 = vmatprep.subr.bf16.mxu0 0
      %1161 = vmatpush1.bf16.msra.mxu0 0
      %1162 = vmatprep.subr.bf16.mxu0 0
      %1163 = vmatpush1.bf16.msra.mxu0 0
      %1164 = vmatprep.subr.bf16.mxu0 0
      %1165 = vmatpush1.bf16.msra.mxu0 0
      %1166 = vmatprep.subr.bf16.mxu0 0
      %1167 = vmatpush1.bf16.msra.mxu0 %v1150
      %1168 = vmatprep.subr.bf16.mxu0 0
      %1169 = vmatpush2.bf16.msra.mxu0 0
      %1170 = vmatprep.subr.bf16.mxu0 0
      %1171 = vmatpush2.bf16.msra.mxu0 0
      %1172 = vmatprep.subr.bf16.mxu0 0
      %1173 = vmatpush2.bf16.msra.mxu0 0
      %1174 = vmatprep.subr.bf16.mxu0 0
      %1175 = vmatpush2.bf16.msra.mxu0 0
      %1176 = vmatprep.subr.bf16.mxu0 0
      %1177 = vmatpush2.bf16.msra.mxu0 0
      %1178 = vmatprep.subr.bf16.mxu0 0
      %1179 = vmatpush2.bf16.msra.mxu0 0
      %1180 = vmatprep.subr.bf16.mxu0 0
      %1181 = vmatpush2.bf16.msra.mxu0 0
      %1182 = vmatprep.subr.bf16.mxu0 0
      %1183 = vmatpush2.bf16.msra.mxu0 0
      %1184 = vmatprep.mubr.bf16.mxu0 0
      %1185 = vmatmul.mubr.bf16.gmra.mxu0 %v1138
      %v1186 = vpop.f32.mrf.mxu0
      %v1187 = vadd.f32 0.0, %v1186
      %v1188 = vpop.f32.mrf.mxu0
      %v1189 = vpop.f32.mrf.mxu0
      %v1190 = vadd.f32 0.0, %v1189
      %v1191 = vpop.f32.mrf.mxu0
      %1192 = vmatprep.mubr.bf16.mxu0 0
      %1193 = vmatmul.mubr.bf16.gmra.mxu0 %v1141
      %v1194 = vpop.f32.mrf.mxu0
      %v1195 = vadd.f32 0.0, %v1194
      %v1196 = vpop.f32.mrf.mxu0
      %v1197 = vpop.f32.mrf.mxu0
      %v1198 = vadd.f32 0.0, %v1197
      %v1199 = vpop.f32.mrf.mxu0
      %1200 = vmatprep.mubr.bf16.mxu0 0
      %1201 = vmatmul.mubr.bf16.gmra.mxu0 %v1144
      %v1202 = vpop.f32.mrf.mxu0
      %v1203 = vadd.f32 0.0, %v1202
      %v1204 = vpop.f32.mrf.mxu0
      %v1205 = vpop.f32.mrf.mxu0
      %v1206 = vadd.f32 0.0, %v1205
      %v1207 = vpop.f32.mrf.mxu0
      %1208 = vmatprep.mubr.bf16.mxu0 0
      %1209 = vmatmul.mubr.bf16.gmra.mxu0 %v1147
      %v1210 = vpop.f32.mrf.mxu0
      %v1211 = vadd.f32 0.0, %v1210
      %v1212 = vpop.f32.mrf.mxu0
      %v1213 = vpop.f32.mrf.mxu0
      %v1214 = vadd.f32 0.0, %v1213
      %v1215 = vpop.f32.mrf.mxu0
      %1216 = vdwg.mxu0
      %v1217 = vadd.f32 %v1098, %v1187
      %v1218 = vadd.f32 %v1099, %v1190
      %v1219 = vadd.f32 %v1100, %v1195
      %v1220 = vadd.f32 %v1101, %v1198
      %v1221 = vadd.f32 %v1102, %v1203
      %v1222 = vadd.f32 %v1103, %v1206
      %v1223 = vadd.f32 %v1104, %v1211
      %v1224 = vadd.f32 %v1105, %v1214
      %s1225 = scalar_lea.vmem %s172, 80
      %v1226 = vld [vmem:[%s1225] sm:$0xf]
      %v1227 = vld [vmem:[%s1225 + $0x8] sm:$0xf]
      %v1228 = vld [vmem:[%s1225 + $0x10] sm:$0xf]
      %v1229 = vld [vmem:[%s1225 + $0x18] sm:$0xf]
      %v1230 = vld [vmem:[%s1225 + $0x20] sm:$0xf]
      %v1231 = vld [vmem:[%s1225 + $0x28] sm:$0xf]
      %v1232 = vld [vmem:[%s1225 + $0x30] sm:$0xf]
      %v1233 = vld [vmem:[%s1225 + $0x38] sm:$0xf]
      %s1234 = scalar_lea.vmem %s1, 28
      %v1235 = vld [vmem:[%s1234] sm:$0xf]
      %v1244 = vunpack.c.l.b16 %v1226
      %v1245 = vunpack.c.l.b16 %v1227
      %v1246 = vunpack.c.l.b16 %v1228
      %v1247 = vunpack.c.l.b16 %v1229
      %v1248 = vunpack.c.l.b16 %v1230
      %v1249 = vunpack.c.l.b16 %v1231
      %v1250 = vunpack.c.l.b16 %v1232
      %v1251 = vunpack.c.l.b16 %v1233
      %v1252 = vpack.c.b16 %v1245, %v1244
      %v1253 = vpack.c.b16 %v1247, %v1246
      %v1254 = vpack.c.b16 %v1249, %v1248
      %v1255 = vpack.c.b16 %v1251, %v1250
      %v1257 = vsel %vm223, %v1252, 0
      %v1260 = vsel %vm223, %v1253, 0
      %v1263 = vsel %vm223, %v1254, 0
      %v1266 = vsel %vm223, %v1255, 0
      %v1269 = vsel %vm236, %v1235, 0
      %1271 = vmatprep.subr.bf16.mxu0 0
      %1272 = vmatpush1.bf16.msra.mxu0 0
      %1273 = vmatprep.subr.bf16.mxu0 0
      %1274 = vmatpush1.bf16.msra.mxu0 0
      %1275 = vmatprep.subr.bf16.mxu0 0
      %1276 = vmatpush1.bf16.msra.mxu0 0
      %1277 = vmatprep.subr.bf16.mxu0 0
      %1278 = vmatpush1.bf16.msra.mxu0 0
      %1279 = vmatprep.subr.bf16.mxu0 0
      %1280 = vmatpush1.bf16.msra.mxu0 0
      %1281 = vmatprep.subr.bf16.mxu0 0
      %1282 = vmatpush1.bf16.msra.mxu0 0
      %1283 = vmatprep.subr.bf16.mxu0 0
      %1284 = vmatpush1.bf16.msra.mxu0 0
      %1285 = vmatprep.subr.bf16.mxu0 0
      %1286 = vmatpush1.bf16.msra.mxu0 %v1269
      %1287 = vmatprep.subr.bf16.mxu0 0
      %1288 = vmatpush2.bf16.msra.mxu0 0
      %1289 = vmatprep.subr.bf16.mxu0 0
      %1290 = vmatpush2.bf16.msra.mxu0 0
      %1291 = vmatprep.subr.bf16.mxu0 0
      %1292 = vmatpush2.bf16.msra.mxu0 0
      %1293 = vmatprep.subr.bf16.mxu0 0
      %1294 = vmatpush2.bf16.msra.mxu0 0
      %1295 = vmatprep.subr.bf16.mxu0 0
      %1296 = vmatpush2.bf16.msra.mxu0 0
      %1297 = vmatprep.subr.bf16.mxu0 0
      %1298 = vmatpush2.bf16.msra.mxu0 0
      %1299 = vmatprep.subr.bf16.mxu0 0
      %1300 = vmatpush2.bf16.msra.mxu0 0
      %1301 = vmatprep.subr.bf16.mxu0 0
      %1302 = vmatpush2.bf16.msra.mxu0 0
      %1303 = vmatprep.mubr.bf16.mxu0 0
      %1304 = vmatmul.mubr.bf16.gmra.mxu0 %v1257
      %v1305 = vpop.f32.mrf.mxu0
      %v1306 = vadd.f32 0.0, %v1305
      %v1307 = vpop.f32.mrf.mxu0
      %v1308 = vpop.f32.mrf.mxu0
      %v1309 = vadd.f32 0.0, %v1308
      %v1310 = vpop.f32.mrf.mxu0
      %1311 = vmatprep.mubr.bf16.mxu0 0
      %1312 = vmatmul.mubr.bf16.gmra.mxu0 %v1260
      %v1313 = vpop.f32.mrf.mxu0
      %v1314 = vadd.f32 0.0, %v1313
      %v1315 = vpop.f32.mrf.mxu0
      %v1316 = vpop.f32.mrf.mxu0
      %v1317 = vadd.f32 0.0, %v1316
      %v1318 = vpop.f32.mrf.mxu0
      %1319 = vmatprep.mubr.bf16.mxu0 0
      %1320 = vmatmul.mubr.bf16.gmra.mxu0 %v1263
      %v1321 = vpop.f32.mrf.mxu0
      %v1322 = vadd.f32 0.0, %v1321
      %v1323 = vpop.f32.mrf.mxu0
      %v1324 = vpop.f32.mrf.mxu0
      %v1325 = vadd.f32 0.0, %v1324
      %v1326 = vpop.f32.mrf.mxu0
      %1327 = vmatprep.mubr.bf16.mxu0 0
      %1328 = vmatmul.mubr.bf16.gmra.mxu0 %v1266
      %v1329 = vpop.f32.mrf.mxu0
      %v1330 = vadd.f32 0.0, %v1329
      %v1331 = vpop.f32.mrf.mxu0
      %v1332 = vpop.f32.mrf.mxu0
      %v1333 = vadd.f32 0.0, %v1332
      %v1334 = vpop.f32.mrf.mxu0
      %1335 = vdwg.mxu0
      %v1336 = vadd.f32 %v1217, %v1306
      %v1337 = vadd.f32 %v1218, %v1309
      %v1338 = vadd.f32 %v1219, %v1314
      %v1339 = vadd.f32 %v1220, %v1317
      %v1340 = vadd.f32 %v1221, %v1322
      %v1341 = vadd.f32 %v1222, %v1325
      %v1342 = vadd.f32 %v1223, %v1330
      %v1343 = vadd.f32 %v1224, %v1333
      %v1344 = vld [vmem:[%s1106] sm:$0xf]
      %v1345 = vld [vmem:[%s1106 + $0x4] sm:$0x1]
      %v1346 = vld [vmem:[%s1106 + $0x8] sm:$0xf]
      %v1347 = vld [vmem:[%s1106 + $0xc] sm:$0x1]
      %v1348 = vld [vmem:[%s1106 + $0x10] sm:$0xf]
      %v1349 = vld [vmem:[%s1106 + $0x14] sm:$0x1]
      %v1350 = vld [vmem:[%s1106 + $0x18] sm:$0xf]
      %v1351 = vld [vmem:[%s1106 + $0x1c] sm:$0x1]
      %v1352 = vld [vmem:[%s1106 + $0x20] sm:$0xf]
      %v1353 = vld [vmem:[%s1106 + $0x24] sm:$0x1]
      %v1354 = vld [vmem:[%s1106 + $0x28] sm:$0xf]
      %v1355 = vld [vmem:[%s1106 + $0x2c] sm:$0x1]
      %v1356 = vld [vmem:[%s1106 + $0x30] sm:$0xf]
      %v1357 = vld [vmem:[%s1106 + $0x34] sm:$0x1]
      %v1358 = vld [vmem:[%s1106 + $0x38] sm:$0xf]
      %v1359 = vld [vmem:[%s1106 + $0x3c] sm:$0x1]
      %v1361 = vshrl.u32 %v1344, 16
      %v1363 = vrot.slane %v1361, 4
      %v1364 = vshll.u32 %v1344, 16
      %v1366 = vrot.slane %v1364, 5
      %v1367 = vor.u32 %v1363, %v1366
      %v1368 = vrot.slane %v1367, 4
      %v1370 = vshll.u32 %v1345, 16
      %v1372 = vrot.slane %v1370, 5
      %v1373 = vsel %vm423, %v1368, %v1372
      %v1375 = vshrl.u32 %v1346, 16
      %v1377 = vrot.slane %v1375, 4
      %v1378 = vshll.u32 %v1346, 16
      %v1380 = vrot.slane %v1378, 5
      %v1381 = vor.u32 %v1377, %v1380
      %v1382 = vrot.slane %v1381, 4
      %v1384 = vshll.u32 %v1347, 16
      %v1386 = vrot.slane %v1384, 5
      %v1387 = vsel %vm423, %v1382, %v1386
      %v1389 = vshrl.u32 %v1348, 16
      %v1391 = vrot.slane %v1389, 4
      %v1392 = vshll.u32 %v1348, 16
      %v1394 = vrot.slane %v1392, 5
      %v1395 = vor.u32 %v1391, %v1394
      %v1396 = vrot.slane %v1395, 4
      %v1398 = vshll.u32 %v1349, 16
      %v1400 = vrot.slane %v1398, 5
      %v1401 = vsel %vm423, %v1396, %v1400
      %v1403 = vshrl.u32 %v1350, 16
      %v1405 = vrot.slane %v1403, 4
      %v1406 = vshll.u32 %v1350, 16
      %v1408 = vrot.slane %v1406, 5
      %v1409 = vor.u32 %v1405, %v1408
      %v1410 = vrot.slane %v1409, 4
      %v1412 = vshll.u32 %v1351, 16
      %v1414 = vrot.slane %v1412, 5
      %v1415 = vsel %vm423, %v1410, %v1414
      %v1417 = vshrl.u32 %v1352, 16
      %v1419 = vrot.slane %v1417, 4
      %v1420 = vshll.u32 %v1352, 16
      %v1422 = vrot.slane %v1420, 5
      %v1423 = vor.u32 %v1419, %v1422
      %v1424 = vrot.slane %v1423, 4
      %v1426 = vshll.u32 %v1353, 16
      %v1428 = vrot.slane %v1426, 5
      %v1429 = vsel %vm423, %v1424, %v1428
      %v1431 = vshrl.u32 %v1354, 16
      %v1433 = vrot.slane %v1431, 4
      %v1434 = vshll.u32 %v1354, 16
      %v1436 = vrot.slane %v1434, 5
      %v1437 = vor.u32 %v1433, %v1436
      %v1438 = vrot.slane %v1437, 4
      %v1440 = vshll.u32 %v1355, 16
      %v1442 = vrot.slane %v1440, 5
      %v1443 = vsel %vm423, %v1438, %v1442
      %v1445 = vshrl.u32 %v1356, 16
      %v1447 = vrot.slane %v1445, 4
      %v1448 = vshll.u32 %v1356, 16
      %v1450 = vrot.slane %v1448, 5
      %v1451 = vor.u32 %v1447, %v1450
      %v1452 = vrot.slane %v1451, 4
      %v1454 = vshll.u32 %v1357, 16
      %v1456 = vrot.slane %v1454, 5
      %v1457 = vsel %vm423, %v1452, %v1456
      %v1459 = vshrl.u32 %v1358, 16
      %v1461 = vrot.slane %v1459, 4
      %v1462 = vshll.u32 %v1358, 16
      %v1464 = vrot.slane %v1462, 5
      %v1465 = vor.u32 %v1461, %v1464
      %v1466 = vrot.slane %v1465, 4
      %v1468 = vshll.u32 %v1359, 16
      %v1470 = vrot.slane %v1468, 5
      %v1471 = vsel %vm423, %v1466, %v1470
      %s1472 = scalar_lea.vmem %s1, 32
      %v1473 = vld [vmem:[%s1472] sm:$0xf]
      %v1474 = vunpack.c.l.b16 %v1373
      %v1475 = vunpack.c.l.b16 %v1387
      %v1476 = vunpack.c.l.b16 %v1401
      %v1477 = vunpack.c.l.b16 %v1415
      %v1478 = vunpack.c.l.b16 %v1429
      %v1479 = vunpack.c.l.b16 %v1443
      %v1480 = vunpack.c.l.b16 %v1457
      %v1481 = vunpack.c.l.b16 %v1471
      %v1482 = vpack.c.b16 %v1475, %v1474
      %v1483 = vpack.c.b16 %v1477, %v1476
      %v1484 = vpack.c.b16 %v1479, %v1478
      %v1485 = vpack.c.b16 %v1481, %v1480
      %v1487 = vsel %vm223, %v1482, 0
      %v1490 = vsel %vm223, %v1483, 0
      %v1493 = vsel %vm223, %v1484, 0
      %v1496 = vsel %vm223, %v1485, 0
      %v1499 = vsel %vm236, %v1473, 0
      %1501 = vmatprep.subr.bf16.mxu0 0
      %1502 = vmatpush1.bf16.msra.mxu0 0
      %1503 = vmatprep.subr.bf16.mxu0 0
      %1504 = vmatpush1.bf16.msra.mxu0 0
      %1505 = vmatprep.subr.bf16.mxu0 0
      %1506 = vmatpush1.bf16.msra.mxu0 0
      %1507 = vmatprep.subr.bf16.mxu0 0
      %1508 = vmatpush1.bf16.msra.mxu0 0
      %1509 = vmatprep.subr.bf16.mxu0 0
      %1510 = vmatpush1.bf16.msra.mxu0 0
      %1511 = vmatprep.subr.bf16.mxu0 0
      %1512 = vmatpush1.bf16.msra.mxu0 0
      %1513 = vmatprep.subr.bf16.mxu0 0
      %1514 = vmatpush1.bf16.msra.mxu0 0
      %1515 = vmatprep.subr.bf16.mxu0 0
      %1516 = vmatpush1.bf16.msra.mxu0 %v1499
      %1517 = vmatprep.subr.bf16.mxu0 0
      %1518 = vmatpush2.bf16.msra.mxu0 0
      %1519 = vmatprep.subr.bf16.mxu0 0
      %1520 = vmatpush2.bf16.msra.mxu0 0
      %1521 = vmatprep.subr.bf16.mxu0 0
      %1522 = vmatpush2.bf16.msra.mxu0 0
      %1523 = vmatprep.subr.bf16.mxu0 0
      %1524 = vmatpush2.bf16.msra.mxu0 0
      %1525 = vmatprep.subr.bf16.mxu0 0
      %1526 = vmatpush2.bf16.msra.mxu0 0
      %1527 = vmatprep.subr.bf16.mxu0 0
      %1528 = vmatpush2.bf16.msra.mxu0 0
      %1529 = vmatprep.subr.bf16.mxu0 0
      %1530 = vmatpush2.bf16.msra.mxu0 0
      %1531 = vmatprep.subr.bf16.mxu0 0
      %1532 = vmatpush2.bf16.msra.mxu0 0
      %1533 = vmatprep.mubr.bf16.mxu0 0
      %1534 = vmatmul.mubr.bf16.gmra.mxu0 %v1487
      %v1535 = vpop.f32.mrf.mxu0
      %v1536 = vadd.f32 0.0, %v1535
      %v1537 = vpop.f32.mrf.mxu0
      %v1538 = vpop.f32.mrf.mxu0
      %v1539 = vadd.f32 0.0, %v1538
      %v1540 = vpop.f32.mrf.mxu0
      %1541 = vmatprep.mubr.bf16.mxu0 0
      %1542 = vmatmul.mubr.bf16.gmra.mxu0 %v1490
      %v1543 = vpop.f32.mrf.mxu0
      %v1544 = vadd.f32 0.0, %v1543
      %v1545 = vpop.f32.mrf.mxu0
      %v1546 = vpop.f32.mrf.mxu0
      %v1547 = vadd.f32 0.0, %v1546
      %v1548 = vpop.f32.mrf.mxu0
      %1549 = vmatprep.mubr.bf16.mxu0 0
      %1550 = vmatmul.mubr.bf16.gmra.mxu0 %v1493
      %v1551 = vpop.f32.mrf.mxu0
      %v1552 = vadd.f32 0.0, %v1551
      %v1553 = vpop.f32.mrf.mxu0
      %v1554 = vpop.f32.mrf.mxu0
      %v1555 = vadd.f32 0.0, %v1554
      %v1556 = vpop.f32.mrf.mxu0
      %1557 = vmatprep.mubr.bf16.mxu0 0
      %1558 = vmatmul.mubr.bf16.gmra.mxu0 %v1496
      %v1559 = vpop.f32.mrf.mxu0
      %v1560 = vadd.f32 0.0, %v1559
      %v1561 = vpop.f32.mrf.mxu0
      %v1562 = vpop.f32.mrf.mxu0
      %v1563 = vadd.f32 0.0, %v1562
      %v1564 = vpop.f32.mrf.mxu0
      %1565 = vdwg.mxu0
      %v1566 = vadd.f32 %v1336, %v1536
      %v1567 = vadd.f32 %v1337, %v1539
      %v1568 = vadd.f32 %v1338, %v1544
      %v1569 = vadd.f32 %v1339, %v1547
      %v1570 = vadd.f32 %v1340, %v1552
      %v1571 = vadd.f32 %v1341, %v1555
      %v1572 = vadd.f32 %v1342, %v1560
      %v1573 = vadd.f32 %v1343, %v1563
      %v1574 = vpack.c.bf16 %v1567, %v1566
      %v1575 = vpack.c.bf16 %v1569, %v1568
      %v1576 = vpack.c.bf16 %v1571, %v1570
      %v1577 = vpack.c.bf16 %v1573, %v1572
      %v1582 = vunpack.c.l.b16 %v1574
      %v1583 = vunpack.c.h.b16 %v1574
      %v1584 = vunpack.c.l.b16 %v1575
      %v1585 = vunpack.c.h.b16 %v1575
      %v1586 = vunpack.c.l.b16 %v1576
      %v1587 = vunpack.c.h.b16 %v1576
      %v1588 = vunpack.c.l.b16 %v1577
      %v1589 = vunpack.c.h.b16 %v1577
      %v1590 = vpack.c.b16 %v1582, %v1582
      %v1591 = vpack.c.b16 %v1583, %v1583
      %v1592 = vpack.c.b16 %v1584, %v1584
      %v1593 = vpack.c.b16 %v1585, %v1585
      %v1594 = vpack.c.b16 %v1586, %v1586
      %v1595 = vpack.c.b16 %v1587, %v1587
      %v1596 = vpack.c.b16 %v1588, %v1588
      %v1597 = vpack.c.b16 %v1589, %v1589
      %1606 = vst [vmem:[%s177] sm:$0xf] %v1590
      %1607 = vst [vmem:[%s177 + $0x4] sm:$0xf] %v1591
      %1608 = vst [vmem:[%s177 + $0x8] sm:$0xf] %v1592
      %1609 = vst [vmem:[%s177 + $0xc] sm:$0xf] %v1593
      %1610 = vst [vmem:[%s177 + $0x10] sm:$0xf] %v1594
      %1611 = vst [vmem:[%s177 + $0x14] sm:$0xf] %v1595
      %1612 = vst [vmem:[%s177 + $0x18] sm:$0xf] %v1596
      %1613 = vst [vmem:[%s177 + $0x1c] sm:$0xf] %v1597
      %v1614 = vadd.f32 %v1566, %v1567
      %v1615 = vadd.f32 %v1614, %v1568
      %v1616 = vadd.f32 %v1615, %v1569
      %v1617 = vadd.f32 %v1616, %v1570
      %v1618 = vadd.f32 %v1617, %v1571
      %v1619 = vadd.f32 %v1618, %v1572
      %v1620 = vadd.f32 %v1619, %v1573
      %v1621 = vrot.slane %v1620, 4
      %v1622 = vadd.f32 %v1620, %v1621
      %v1623 = vrot.slane %v1622, 2
      %v1624 = vadd.f32 %v1622, %v1623
      %v1625 = vrot.slane %v1624, 1
      %v1626 = vadd.f32 %v1624, %v1625
      %v1627 = vmul.f32 %v1566, %v1566
      %v1628 = vmul.f32 %v1567, %v1567
      %v1629 = vmul.f32 %v1568, %v1568
      %v1630 = vmul.f32 %v1569, %v1569
      %v1631 = vmul.f32 %v1570, %v1570
      %v1632 = vmul.f32 %v1571, %v1571
      %v1633 = vmul.f32 %v1572, %v1572
      %v1634 = vmul.f32 %v1573, %v1573
      %v1635 = vadd.f32 %v1627, %v1628
      %v1636 = vadd.f32 %v1635, %v1629
      %v1637 = vadd.f32 %v1636, %v1630
      %v1638 = vadd.f32 %v1637, %v1631
      %v1639 = vadd.f32 %v1638, %v1632
      %v1640 = vadd.f32 %v1639, %v1633
      %v1641 = vadd.f32 %v1640, %v1634
      %v1642 = vrot.slane %v1641, 4
      %v1643 = vadd.f32 %v1641, %v1642
      %v1644 = vrot.slane %v1643, 2
      %v1645 = vadd.f32 %v1643, %v1644
      %v1646 = vrot.slane %v1645, 1
      %v1647 = vadd.f32 %v1645, %v1646
      %vm1648 = vcmask 1040384
      %v1649 = vsel %vm1648, %v1626, %v1647
      %1650 = vst [vmem:[%s181] sm:$0x3] %v1649
      %p1651 = scmp.lt.s32.totalorder %s15, 1
      %s1652 = scalar_select %p1651, %s15, 1
      %s1653 = smul.addr %s1652, 8
      %s1654 = smul.addr %s1653, 4
      %s1655 = scalar_lea.vmem %s2, %s1654
      %p1656 = scmp.lt.s32.totalorder %s15, 1
      %s1657 = scalar_select %p1656, %s15, 1
      %s1658 = smul.addr %s1657, 2
      %s1659 = scalar_lea.vmem %s3, %s1658
      // Predicated region
      $region29: #{residual_block_forward.5} parent=27 // pred_check
        %p1660 = pneg %p80
      $region30: #{residual_block_forward.5} parent=27 // pred_check_branch
        %1662 = sbr.rel (%p1660) target = $region32
      $region31: #{residual_block_forward.5} parent=27 // pred_region
        _
      $region32: #{residual_block_forward.5} parent=27 // pred_fallthru
        _
      // Predicated region
      $region33: #{residual_block_forward.5} parent=27 // pred_check
        %p1663 = pneg %p106
      $region34: #{residual_block_forward.5} parent=27 // pred_check_branch
        %1665 = sbr.rel (%p1663) target = $region36
      $region35: #{residual_block_forward.5} parent=27 // pred_region
        _
      $region36: #{residual_block_forward.5} parent=27 // pred_fallthru
        _
    $region28: #{residual_block_forward.5} parent=5 // pred_fallthru
      _
    %p1666 = scmp.le.s32.totalorder 2, %s10
    // Predicated region
    $region37: #{residual_block_forward.5} parent=5 // pred_check
      %p1667 = pneg %p1666
    $region38: #{residual_block_forward.5} parent=5 // pred_check_branch
      %1669 = sbr.rel (%p1667) target = $region40
    $region39: #{residual_block_forward.5} parent=5 // pred_region
      %s1670 = ssub.s32 %s10, 2
      // Predicated region
      $region41: #{residual_block_forward.5} parent=39 // pred_check
        %p1671 = pneg %p86
      $region42: #{residual_block_forward.5} parent=39 // pred_check_branch
        %1673 = sbr.rel (%p1671) target = $region44
      $region43: #{residual_block_forward.5} parent=39 // pred_region
        %p1674 = scmp.lt.s32.totalorder %s16, 1
        %s1675 = scalar_select %p1674, %s16, 1
        %s1676 = smul.addr %s1675, 8
        %s1677 = smul.addr %s1676, 4
        %s1678 = scalar_lea.vmem %s2, %s1677
      $region44: #{residual_block_forward.5} parent=39 // pred_fallthru
        _
      // Predicated region
      $region45: #{residual_block_forward.5} parent=39 // pred_check
        %p1679 = pneg %p112
      $region46: #{residual_block_forward.5} parent=39 // pred_check_branch
        %1681 = sbr.rel (%p1679) target = $region48
      $region47: #{residual_block_forward.5} parent=39 // pred_region
        %p1682 = scmp.lt.s32.totalorder %s16, 1
        %s1683 = scalar_select %p1682, %s16, 1
        %s1684 = smul.addr %s1683, 2
        %s1685 = scalar_lea.vmem %s3, %s1684
      $region48: #{residual_block_forward.5} parent=39 // pred_fallthru
        _
    $region40: #{residual_block_forward.5} parent=5 // pred_fallthru
      _
  $region6: #{residual_block_forward.5} parent=0 // loop_footer
    %s14 = sadd.s32 1, %s10
  $region7: #{residual_block_forward.5} parent=0 // loop_footer_branch
    %9 = sbr.rel target = $region3
  $region8: #{residual_block_forward.5} parent=0 // loop_exit
    _

// kernel: residual_block_forward.9
$region0: #{residual_block_forward.9}
  #allocation0 [shape = 'u32[]', space=smem, size = 0x4, offset = 0x4, fixed_abs, tag = 'smem constant byte address 0x4 - core index']
  #allocation1 [shape = 'u32[144,128]{1,0:T(1,128)}', space=vmem, size = 0x12000, scoped, tag = 'internal scratch']
  %s0 = inlined_call_operand.vmem [shape: bf16[128,128], index: 0, kind: input, shape index: {}]
  %s1 = inlined_call_operand.vmem [shape: bf16[128,128], index: 1, kind: input, shape index: {}]
  %s2 = inlined_call_operand.vmem [shape: f32[1,128], index: 2, kind: input, shape index: {}]
  %s3 = inlined_call_operand.vmem [shape: f32[1,128], index: 3, kind: input, shape index: {}]
  %s4 = inlined_call_operand.vmem [shape: f32[1,128], index: 4, kind: input, shape index: {}]
  %s5 = inlined_call_operand.vmem [shape: f32[1,128], index: 5, kind: input, shape index: {}]
  %s6 = inlined_call_operand.vmem [shape: f32[128,128], index: 6, kind: output, shape index: {}]
  %s7 = sld [smem:[#allocation0]]
  $region57: #{residual_block_forward.9} parent=0
    _
  %s9 = ssub.s32 1, %s7
  %s10 = scalar_select 0, %s9, %s7
  loop: start=0, step=1, limit=4
  $region2: #{residual_block_forward.9} parent=0 // loop_pre_header
    _
  $region3: #{residual_block_forward.9} parent=0 // loop_header
    %s12 = sphi 0, %s16
    %p13 = scmp.ge.s32.totalorder %s12, 4
    %s22 = sphi 0, %s24
    %s25 = sphi 0, %s22
    %s26 = sphi 0, %s25
    %s42 = sphi 0, %s26
    %s48 = sphi 0, %s50
    %s51 = sphi 0, %s48
    %s52 = sphi 0, %s51
    %s68 = sphi 0, %s52
    %s72 = sphi 0, %s72
    %s74 = sphi 0, %s72
    %s75 = sphi 0, %s74
    %s89 = sphi 0, %s75
    %s93 = sphi 0, %s93
    %s95 = sphi 0, %s93
    %s96 = sphi 0, %s95
    %s110 = sphi 0, %s96
    %s114 = sphi 0, %s114
    %s116 = sphi 0, %s114
    %s117 = sphi 0, %s116
    %s131 = sphi 0, %s117
    %s135 = sphi 0, %s135
    %s137 = sphi 0, %s135
    %s138 = sphi 0, %s137
    %s152 = sphi 0, %s138
    %s158 = sphi 0, %s160
    %s161 = sphi 0, %s158
    %s162 = sphi 0, %s161
    %s178 = sphi 0, %s162
  $region4: #{residual_block_forward.9} parent=0 // loop_header_branch
    %15 = sbr.rel (%p13) target = $region8
  $region5: #{residual_block_forward.9} parent=0 // loop_body
    %s17 = ssub.s32 %s12, 1
    %s18 = ssub.s32 %s12, 2
    %s19 = sadd.s32 %s12, 1
    %s20 = ssub.s32 %s12, %s19
    %p21 = scmp.eq.s32.totalorder %s20, 0
    %s23 = sadd.s32 %s22, 1
    %s24 = scalar_select %p21, %s22, %s23
    %p27 = pneg %p21
    %p28 = scmp.eq.s32.totalorder %s12, 1
    %p29 = por %p27, %p28
    %p30 = scmp.ne.s32.totalorder %s22, %s25
    %p31 = scmp.eq.s32.totalorder %s12, 0
    %p32 = por %p30, %p31
    %p33 = scmp.ne.s32.totalorder %s22, %s25
    %p34 = scmp.eq.s32.totalorder %s17, 1
    %p35 = por %p33, %p34
    %p36 = scmp.ne.s32.totalorder %s25, %s26
    %p37 = scmp.eq.s32.totalorder %s17, 0
    %p38 = por %p36, %p37
    %p39 = scmp.ne.s32.totalorder %s25, %s26
    %p40 = scmp.eq.s32.totalorder %s18, 1
    %p41 = por %p39, %p40
    %p43 = scmp.ne.s32.totalorder %s26, %s42
    %p44 = scmp.eq.s32.totalorder %s18, 0
    %p45 = por %p43, %p44
    %s46 = ssub.s32 %s12, %s19
    %p47 = scmp.eq.s32.totalorder %s46, 0
    %s49 = sadd.s32 %s48, 1
    %s50 = scalar_select %p47, %s48, %s49
    %p53 = pneg %p47
    %p54 = scmp.eq.s32.totalorder %s12, 1
    %p55 = por %p53, %p54
    %p56 = scmp.ne.s32.totalorder %s48, %s51
    %p57 = scmp.eq.s32.totalorder %s12, 0
    %p58 = por %p56, %p57
    %p59 = scmp.ne.s32.totalorder %s48, %s51
    %p60 = scmp.eq.s32.totalorder %s17, 1
    %p61 = por %p59, %p60
    %p62 = scmp.ne.s32.totalorder %s51, %s52
    %p63 = scmp.eq.s32.totalorder %s17, 0
    %p64 = por %p62, %p63
    %p65 = scmp.ne.s32.totalorder %s51, %s52
    %p66 = scmp.eq.s32.totalorder %s18, 1
    %p67 = por %p65, %p66
    %p69 = scmp.ne.s32.totalorder %s52, %s68
    %p70 = scmp.eq.s32.totalorder %s18, 0
    %p71 = por %p69, %p70
    %s73 = sadd.s32 %s72, 1
    %p76 = scmp.eq.s32.totalorder %s12, 1
    %p77 = scmp.ne.s32.totalorder %s72, %s74
    %p78 = scmp.eq.s32.totalorder %s12, 0
    %p79 = por %p77, %p78
    %p80 = scmp.ne.s32.totalorder %s72, %s74
    %p81 = scmp.eq.s32.totalorder %s17, 1
    %p82 = por %p80, %p81
    %p83 = scmp.ne.s32.totalorder %s74, %s75
    %p84 = scmp.eq.s32.totalorder %s17, 0
    %p85 = por %p83, %p84
    %p86 = scmp.ne.s32.totalorder %s74, %s75
    %p87 = scmp.eq.s32.totalorder %s18, 1
    %p88 = por %p86, %p87
    %p90 = scmp.ne.s32.totalorder %s75, %s89
    %p91 = scmp.eq.s32.totalorder %s18, 0
    %p92 = por %p90, %p91
    %s94 = sadd.s32 %s93, 1
    %p97 = scmp.eq.s32.totalorder %s12, 1
    %p98 = scmp.ne.s32.totalorder %s93, %s95
    %p99 = scmp.eq.s32.totalorder %s12, 0
    %p100 = por %p98, %p99
    %p101 = scmp.ne.s32.totalorder %s93, %s95
    %p102 = scmp.eq.s32.totalorder %s17, 1
    %p103 = por %p101, %p102
    %p104 = scmp.ne.s32.totalorder %s95, %s96
    %p105 = scmp.eq.s32.totalorder %s17, 0
    %p106 = por %p104, %p105
    %p107 = scmp.ne.s32.totalorder %s95, %s96
    %p108 = scmp.eq.s32.totalorder %s18, 1
    %p109 = por %p107, %p108
    %p111 = scmp.ne.s32.totalorder %s96, %s110
    %p112 = scmp.eq.s32.totalorder %s18, 0
    %p113 = por %p111, %p112
    %s115 = sadd.s32 %s114, 1
    %p118 = scmp.eq.s32.totalorder %s12, 1
    %p119 = scmp.ne.s32.totalorder %s114, %s116
    %p120 = scmp.eq.s32.totalorder %s12, 0
    %p121 = por %p119, %p120
    %p122 = scmp.ne.s32.totalorder %s114, %s116
    %p123 = scmp.eq.s32.totalorder %s17, 1
    %p124 = por %p122, %p123
    %p125 = scmp.ne.s32.totalorder %s116, %s117
    %p126 = scmp.eq.s32.totalorder %s17, 0
    %p127 = por %p125, %p126
    %p128 = scmp.ne.s32.totalorder %s116, %s117
    %p129 = scmp.eq.s32.totalorder %s18, 1
    %p130 = por %p128, %p129
    %p132 = scmp.ne.s32.totalorder %s117, %s131
    %p133 = scmp.eq.s32.totalorder %s18, 0
    %p134 = por %p132, %p133
    %s136 = sadd.s32 %s135, 1
    %p139 = scmp.eq.s32.totalorder %s12, 1
    %p140 = scmp.ne.s32.totalorder %s135, %s137
    %p141 = scmp.eq.s32.totalorder %s12, 0
    %p142 = por %p140, %p141
    %p143 = scmp.ne.s32.totalorder %s135, %s137
    %p144 = scmp.eq.s32.totalorder %s17, 1
    %p145 = por %p143, %p144
    %p146 = scmp.ne.s32.totalorder %s137, %s138
    %p147 = scmp.eq.s32.totalorder %s17, 0
    %p148 = por %p146, %p147
    %p149 = scmp.ne.s32.totalorder %s137, %s138
    %p150 = scmp.eq.s32.totalorder %s18, 1
    %p151 = por %p149, %p150
    %p153 = scmp.ne.s32.totalorder %s138, %s152
    %p154 = scmp.eq.s32.totalorder %s18, 0
    %p155 = por %p153, %p154
    %s156 = ssub.s32 %s12, %s19
    %p157 = scmp.eq.s32.totalorder %s156, 0
    %s159 = sadd.s32 %s158, 1
    %s160 = scalar_select %p157, %s158, %s159
    %p163 = pneg %p157
    %p164 = scmp.eq.s32.totalorder %s12, 1
    %p165 = por %p163, %p164
    %p166 = scmp.ne.s32.totalorder %s158, %s161
    %p167 = scmp.eq.s32.totalorder %s12, 0
    %p168 = por %p166, %p167
    %p169 = scmp.ne.s32.totalorder %s158, %s161
    %p170 = scmp.eq.s32.totalorder %s17, 1
    %p171 = por %p169, %p170
    %p172 = scmp.ne.s32.totalorder %s161, %s162
    %p173 = scmp.eq.s32.totalorder %s17, 0
    %p174 = por %p172, %p173
    %p175 = scmp.ne.s32.totalorder %s161, %s162
    %p176 = scmp.eq.s32.totalorder %s18, 1
    %p177 = por %p175, %p176
    %p179 = scmp.ne.s32.totalorder %s162, %s178
    %p180 = scmp.eq.s32.totalorder %s18, 0
    %p181 = por %p179, %p180
    %p182 = scmp.le.s32.totalorder 1, %s12
    %p183 = scmp.lt.s32.totalorder %s12, 3
    %p184 = pnand %p182, %p183
    %p185 = pneg %p184
    // Predicated region
    $region9: #{residual_block_forward.9} parent=5 // pred_check
      _
    $region10: #{residual_block_forward.9} parent=5 // pred_check_branch
      %187 = sbr.rel (%p184) target = $region12
    $region11: #{residual_block_forward.9} parent=5 // pred_region
      %s188 = ssub.s32 %s12, 1
      // Predicated region
      $region13: #{residual_block_forward.9} parent=11 // pred_check
        %p189 = pneg %p85
      $region14: #{residual_block_forward.9} parent=11 // pred_check_branch
        %191 = sbr.rel (%p189) target = $region16
      $region15: #{residual_block_forward.9} parent=11 // pred_region
        _
      $region16: #{residual_block_forward.9} parent=11 // pred_fallthru
        _
      // Predicated region
      $region17: #{residual_block_forward.9} parent=11 // pred_check
        %p192 = pneg %p106
      $region18: #{residual_block_forward.9} parent=11 // pred_check_branch
        %194 = sbr.rel (%p192) target = $region20
      $region19: #{residual_block_forward.9} parent=11 // pred_region
        _
      $region20: #{residual_block_forward.9} parent=11 // pred_fallthru
        _
      // Predicated region
      $region21: #{residual_block_forward.9} parent=11 // pred_check
        %p195 = pneg %p127
      $region22: #{residual_block_forward.9} parent=11 // pred_check_branch
        %197 = sbr.rel (%p195) target = $region24
      $region23: #{residual_block_forward.9} parent=11 // pred_region
        _
      $region24: #{residual_block_forward.9} parent=11 // pred_fallthru
        _
      // Predicated region
      $region25: #{residual_block_forward.9} parent=11 // pred_check
        %p198 = pneg %p148
      $region26: #{residual_block_forward.9} parent=11 // pred_check_branch
        %200 = sbr.rel (%p198) target = $region28
      $region27: #{residual_block_forward.9} parent=11 // pred_region
        _
      $region28: #{residual_block_forward.9} parent=11 // pred_fallthru
        _
    $region12: #{residual_block_forward.9} parent=5 // pred_fallthru
      _
    %p201 = scmp.lt.s32.totalorder %s12, 2
    // Predicated region
    $region29: #{residual_block_forward.9} parent=5 // pred_check
      %p202 = pneg %p201
    $region30: #{residual_block_forward.9} parent=5 // pred_check_branch
      %204 = sbr.rel (%p202) target = $region32
    $region31: #{residual_block_forward.9} parent=5 // pred_region
      // Predicated region
      $region33: #{residual_block_forward.9} parent=31 // pred_check
        %p205 = pneg %p32
      $region34: #{residual_block_forward.9} parent=31 // pred_check_branch
        %207 = sbr.rel (%p205) target = $region36
      $region35: #{residual_block_forward.9} parent=31 // pred_region
        %s208 = smul.u32 8, %s12
        %p209 = scmp.lt.s32.totalorder %s208, 15
        %s210 = scalar_select %p209, %s208, 15
        %s211 = smul.addr %s210, 4
        %s212 = scalar_lea.vmem %s0, %s211
        %s213 = smul.u32 8, %s12
      $region36: #{residual_block_forward.9} parent=31 // pred_fallthru
        _
      // Predicated region
      $region37: #{residual_block_forward.9} parent=31 // pred_check
        %p214 = pneg %p58
      $region38: #{residual_block_forward.9} parent=31 // pred_check_branch
        %216 = sbr.rel (%p214) target = $region40
      $region39: #{residual_block_forward.9} parent=31 // pred_region
        %s217 = smul.u32 8, %s12
        %p218 = scmp.lt.s32.totalorder %s217, 15
        %s219 = scalar_select %p218, %s217, 15
        %s220 = smul.addr %s219, 4
        %s221 = scalar_lea.vmem %s1, %s220
        %s222 = smul.u32 8, %s12
      $region40: #{residual_block_forward.9} parent=31 // pred_fallthru
        _
    $region32: #{residual_block_forward.9} parent=5 // pred_fallthru
      _
    %p223 = scmp.le.s32.totalorder 1, %s12
    %p224 = scmp.lt.s32.totalorder %s12, 3
    %p225 = pnand %p223, %p224
    %p226 = pneg %p225
    // Predicated region
    $region41: #{residual_block_forward.9} parent=5 // pred_check
      _
    $region42: #{residual_block_forward.9} parent=5 // pred_check_branch
      %228 = sbr.rel (%p225) target = $region44
    $region43: #{residual_block_forward.9} parent=5 // pred_region
      %s229 = ssub.s32 %s12, 1
      %s230 = smul.u32 8, %s17
      %p231 = scmp.lt.s32.totalorder %s230, 15
      %s232 = scalar_select %p231, %s230, 15
      %s233 = smul.addr %s232, 4
      %s234 = scalar_lea.vmem %s0, %s233
      %p235 = pneg %p38
      %p236 = pneg %p35
      %s237 = smul.u32 8, %s17
      %p238 = scmp.lt.s32.totalorder %s237, 15
      %s239 = scalar_select %p238, %s237, 15
      %s240 = smul.addr %s239, 4
      %s241 = scalar_lea.vmem %s1, %s240
      %p242 = pneg %p64
      %p243 = pneg %p61
      %p244 = pneg %p85
      %p245 = pneg %p82
      %p246 = pneg %p106
      %p247 = pneg %p103
      %p248 = pneg %p127
      %p249 = pneg %p124
      %p250 = pneg %p148
      %p251 = pneg %p145
      %p252 = pneg %p174
      %p253 = pneg %p171
      %s254 = smul.u32 8, %s17
      %p255 = scmp.lt.s32.totalorder %s254, 15
      %s256 = scalar_select %p255, %s254, 15
      %s257 = smul.addr %s256, 8
      %s258 = scalar_lea.vmem %s6, %s257
      %s259 = smul.u32 8, %s17
      %p260 = scmp.lt.s32.totalorder %s259, 15
      %s261 = scalar_select %p260, %s259, 15
      %s262 = smul.addr %s261, 4
      %s263 = scalar_lea.vmem %s0, %s262
      %s264 = smul.u32 8, %s17
      %s265 = smul.u32 8, %s17
      %p266 = scmp.lt.s32.totalorder %s265, 15
      %s267 = scalar_select %p266, %s265, 15
      %s268 = smul.addr %s267, 4
      %s269 = scalar_lea.vmem %s1, %s268
      %s270 = smul.u32 8, %s17
      %s271 = smul.u32 8, %s17
      %p272 = scmp.lt.s32.totalorder %s271, 15
      %s273 = scalar_select %p272, %s271, 15
      %s274 = smul.addr %s273, 8
      %s275 = scalar_lea.vmem %s6, %s274
      %s276 = smul.u32 8, %s17
      %v277 = vld [vmem:[%s263] sm:$0xf]
      %v278 = vld [vmem:[%s263 + $0x4] sm:$0xf]
      %v279 = vld [vmem:[%s263 + $0x8] sm:$0xf]
      %v280 = vld [vmem:[%s263 + $0xc] sm:$0xf]
      %v281 = vld [vmem:[%s263 + $0x10] sm:$0xf]
      %v282 = vld [vmem:[%s263 + $0x14] sm:$0xf]
      %v283 = vld [vmem:[%s263 + $0x18] sm:$0xf]
      %v284 = vld [vmem:[%s263 + $0x1c] sm:$0xf]
      %v285 = vunpack.c.l.bf16 %v277
      %v286 = vunpack.c.l.bf16 %v278
      %v287 = vunpack.c.l.bf16 %v279
      %v288 = vunpack.c.l.bf16 %v280
      %v289 = vunpack.c.l.bf16 %v281
      %v290 = vunpack.c.l.bf16 %v282
      %v291 = vunpack.c.l.bf16 %v283
      %v292 = vunpack.c.l.bf16 %v284
      %v293 = vld [vmem:[%s2] sm:$0x1]
      %v295 = vlaneseq
      %v296 = vshrl.u32 %v295, 7
      %v297 = vsub.s32 0, %v296
      %v298 = vrot.slane %v293, %v297
      %v300 = vmul.f32 %v285, %v298
      %v301 = vmul.f32 %v286, %v298
      %v302 = vmul.f32 %v287, %v298
      %v303 = vmul.f32 %v288, %v298
      %v304 = vmul.f32 %v289, %v298
      %v305 = vmul.f32 %v290, %v298
      %v306 = vmul.f32 %v291, %v298
      %v307 = vmul.f32 %v292, %v298
      %v308 = vld [vmem:[%s3] sm:$0x1]
      %v310 = vlaneseq
      %v311 = vshrl.u32 %v310, 7
      %v312 = vsub.s32 0, %v311
      %v313 = vrot.slane %v308, %v312
      %v315 = vadd.f32 %v300, %v313
      %v316 = vadd.f32 %v301, %v313
      %v317 = vadd.f32 %v302, %v313
      %v318 = vadd.f32 %v303, %v313
      %v319 = vadd.f32 %v304, %v313
      %v320 = vadd.f32 %v305, %v313
      %v321 = vadd.f32 %v306, %v313
      %v322 = vadd.f32 %v307, %v313
      %v323 = vld [vmem:[%s269] sm:$0xf]
      %v324 = vld [vmem:[%s269 + $0x4] sm:$0xf]
      %v325 = vld [vmem:[%s269 + $0x8] sm:$0xf]
      %v326 = vld [vmem:[%s269 + $0xc] sm:$0xf]
      %v327 = vld [vmem:[%s269 + $0x10] sm:$0xf]
      %v328 = vld [vmem:[%s269 + $0x14] sm:$0xf]
      %v329 = vld [vmem:[%s269 + $0x18] sm:$0xf]
      %v330 = vld [vmem:[%s269 + $0x1c] sm:$0xf]
      %v331 = vunpack.c.l.bf16 %v323
      %v332 = vunpack.c.l.bf16 %v324
      %v333 = vunpack.c.l.bf16 %v325
      %v334 = vunpack.c.l.bf16 %v326
      %v335 = vunpack.c.l.bf16 %v327
      %v336 = vunpack.c.l.bf16 %v328
      %v337 = vunpack.c.l.bf16 %v329
      %v338 = vunpack.c.l.bf16 %v330
      %v339 = vld [vmem:[%s4] sm:$0x1]
      %v341 = vlaneseq
      %v342 = vshrl.u32 %v341, 7
      %v343 = vsub.s32 0, %v342
      %v344 = vrot.slane %v339, %v343
      %v346 = vmul.f32 %v331, %v344
      %v347 = vmul.f32 %v332, %v344
      %v348 = vmul.f32 %v333, %v344
      %v349 = vmul.f32 %v334, %v344
      %v350 = vmul.f32 %v335, %v344
      %v351 = vmul.f32 %v336, %v344
      %v352 = vmul.f32 %v337, %v344
      %v353 = vmul.f32 %v338, %v344
      %v354 = vadd.f32 %v315, %v346
      %v355 = vadd.f32 %v316, %v347
      %v356 = vadd.f32 %v317, %v348
      %v357 = vadd.f32 %v318, %v349
      %v358 = vadd.f32 %v319, %v350
      %v359 = vadd.f32 %v320, %v351
      %v360 = vadd.f32 %v321, %v352
      %v361 = vadd.f32 %v322, %v353
      %v362 = vld [vmem:[%s5] sm:$0x1]
      %v364 = vlaneseq
      %v365 = vshrl.u32 %v364, 7
      %v366 = vsub.s32 0, %v365
      %v367 = vrot.slane %v362, %v366
      %v369 = vadd.f32 %v354, %v367
      %v370 = vadd.f32 %v355, %v367
      %v371 = vadd.f32 %v356, %v367
      %v372 = vadd.f32 %v357, %v367
      %v373 = vadd.f32 %v358, %v367
      %v374 = vadd.f32 %v359, %v367
      %v375 = vadd.f32 %v360, %v367
      %v376 = vadd.f32 %v361, %v367
      %v377 = vmax.f32 %v369, 0.0
      %v378 = vmax.f32 %v370, 0.0
      %v379 = vmax.f32 %v371, 0.0
      %v380 = vmax.f32 %v372, 0.0
      %v381 = vmax.f32 %v373, 0.0
      %v382 = vmax.f32 %v374, 0.0
      %v383 = vmax.f32 %v375, 0.0
      %v384 = vmax.f32 %v376, 0.0
      %385 = vst [vmem:[%s275] sm:$0xff] %v377
      %386 = vst [vmem:[%s275 + $0x8] sm:$0xff] %v378
      %387 = vst [vmem:[%s275 + $0x10] sm:$0xff] %v379
      %388 = vst [vmem:[%s275 + $0x18] sm:$0xff] %v380
      %389 = vst [vmem:[%s275 + $0x20] sm:$0xff] %v381
      %390 = vst [vmem:[%s275 + $0x28] sm:$0xff] %v382
      %391 = vst [vmem:[%s275 + $0x30] sm:$0xff] %v383
      %392 = vst [vmem:[%s275 + $0x38] sm:$0xff] %v384
      %s393 = smul.u32 8, %s17
      %p394 = scmp.lt.s32.totalorder %s393, 15
      %s395 = scalar_select %p394, %s393, 15
      %s396 = smul.addr %s395, 8
      %s397 = scalar_lea.vmem %s6, %s396
      // Predicated region
      $region45: #{residual_block_forward.9} parent=43 // pred_check
        %p398 = pneg %p171
      $region46: #{residual_block_forward.9} parent=43 // pred_check_branch
        %400 = sbr.rel (%p398) target = $region48
      $region47: #{residual_block_forward.9} parent=43 // pred_region
        %s401 = smul.u32 8, %s17
      $region48: #{residual_block_forward.9} parent=43 // pred_fallthru
        _
    $region44: #{residual_block_forward.9} parent=5 // pred_fallthru
      _
    %p402 = scmp.le.s32.totalorder 2, %s12
    // Predicated region
    $region49: #{residual_block_forward.9} parent=5 // pred_check
      %p403 = pneg %p402
    $region50: #{residual_block_forward.9} parent=5 // pred_check_branch
      %405 = sbr.rel (%p403) target = $region52
    $region51: #{residual_block_forward.9} parent=5 // pred_region
      %s406 = ssub.s32 %s12, 2
      // Predicated region
      $region53: #{residual_block_forward.9} parent=51 // pred_check
        %p407 = pneg %p177
      $region54: #{residual_block_forward.9} parent=51 // pred_check_branch
        %409 = sbr.rel (%p407) target = $region56
      $region55: #{residual_block_forward.9} parent=51 // pred_region
        %s410 = smul.u32 8, %s18
        %p411 = scmp.lt.s32.totalorder %s410, 15
        %s412 = scalar_select %p411, %s410, 15
        %s413 = smul.addr %s412, 8
        %s414 = scalar_lea.vmem %s6, %s413
      $region56: #{residual_block_forward.9} parent=51 // pred_fallthru
        _
    $region52: #{residual_block_forward.9} parent=5 // pred_fallthru
      _
  $region6: #{residual_block_forward.9} parent=0 // loop_footer
    %s16 = sadd.s32 1, %s12
  $region7: #{residual_block_forward.9} parent=0 // loop_footer_branch
    %11 = sbr.rel target = $region3
  $region8: #{residual_block_forward.9} parent=0 // loop_exit
    _

// kernel: residual_block_forward.7
$region0: #{residual_block_forward.7}
  #allocation0 [shape = 'u32[]', space=smem, size = 0x4, offset = 0x4, fixed_abs, tag = 'smem constant byte address 0x4 - core index']
  #allocation1 [shape = 'u32[144,128]{1,0:T(1,128)}', space=vmem, size = 0x12000, scoped, tag = 'internal scratch']
  %s0 = inlined_call_operand.vmem [shape: bf16[2,10,10,128], index: 0, kind: input, shape index: {}]
  %s1 = inlined_call_operand.vmem [shape: bf16[9,128,128], index: 1, kind: input, shape index: {}]
  %s2 = inlined_call_operand.vmem [shape: bf16[2,64,128], index: 2, kind: output, shape index: {0}]
  %s3 = inlined_call_operand.vmem [shape: f32[2,2,128], index: 3, kind: output, shape index: {1}]
  %4 = xla_tuple %s2, %s3
  %s5 = sld [smem:[#allocation0]]
  $region49: #{residual_block_forward.7} parent=0
    _
  %s7 = ssub.s32 1, %s5
  %s8 = scalar_select 0, %s7, %s5
  loop: start=0, step=1, limit=4
  $region2: #{residual_block_forward.7} parent=0 // loop_pre_header
    _
  $region3: #{residual_block_forward.7} parent=0 // loop_header
    %s10 = sphi 0, %s14
    %p11 = scmp.ge.s32.totalorder %s10, 4
    %s20 = sphi 0, %s22
    %s23 = sphi 0, %s20
    %s24 = sphi 0, %s23
    %s40 = sphi 0, %s24
    %s44 = sphi 0, %s44
    %s46 = sphi 0, %s44
    %s47 = sphi 0, %s46
    %s61 = sphi 0, %s47
    %s67 = sphi 0, %s69
    %s70 = sphi 0, %s67
    %s71 = sphi 0, %s70
    %s87 = sphi 0, %s71
    %s93 = sphi 0, %s95
    %s96 = sphi 0, %s93
    %s97 = sphi 0, %s96
    %s113 = sphi 0, %s97
  $region4: #{residual_block_forward.7} parent=0 // loop_header_branch
    %13 = sbr.rel (%p11) target = $region8
  $region5: #{residual_block_forward.7} parent=0 // loop_body
    %s15 = ssub.s32 %s10, 1
    %s16 = ssub.s32 %s10, 2
    %s17 = sadd.s32 %s10, 1
    %s18 = ssub.s32 %s10, %s17
    %p19 = scmp.eq.s32.totalorder %s18, 0
    %s21 = sadd.s32 %s20, 1
    %s22 = scalar_select %p19, %s20, %s21
    %p25 = pneg %p19
    %p26 = scmp.eq.s32.totalorder %s10, 1
    %p27 = por %p25, %p26
    %p28 = scmp.ne.s32.totalorder %s20, %s23
    %p29 = scmp.eq.s32.totalorder %s10, 0
    %p30 = por %p28, %p29
    %p31 = scmp.ne.s32.totalorder %s20, %s23
    %p32 = scmp.eq.s32.totalorder %s15, 1
    %p33 = por %p31, %p32
    %p34 = scmp.ne.s32.totalorder %s23, %s24
    %p35 = scmp.eq.s32.totalorder %s15, 0
    %p36 = por %p34, %p35
    %p37 = scmp.ne.s32.totalorder %s23, %s24
    %p38 = scmp.eq.s32.totalorder %s16, 1
    %p39 = por %p37, %p38
    %p41 = scmp.ne.s32.totalorder %s24, %s40
    %p42 = scmp.eq.s32.totalorder %s16, 0
    %p43 = por %p41, %p42
    %s45 = sadd.s32 %s44, 1
    %p48 = scmp.eq.s32.totalorder %s10, 1
    %p49 = scmp.ne.s32.totalorder %s44, %s46
    %p50 = scmp.eq.s32.totalorder %s10, 0
    %p51 = por %p49, %p50
    %p52 = scmp.ne.s32.totalorder %s44, %s46
    %p53 = scmp.eq.s32.totalorder %s15, 1
    %p54 = por %p52, %p53
    %p55 = scmp.ne.s32.totalorder %s46, %s47
    %p56 = scmp.eq.s32.totalorder %s15, 0
    %p57 = por %p55, %p56
    %p58 = scmp.ne.s32.totalorder %s46, %s47
    %p59 = scmp.eq.s32.totalorder %s16, 1
    %p60 = por %p58, %p59
    %p62 = scmp.ne.s32.totalorder %s47, %s61
    %p63 = scmp.eq.s32.totalorder %s16, 0
    %p64 = por %p62, %p63
    %s65 = ssub.s32 %s10, %s17
    %p66 = scmp.eq.s32.totalorder %s65, 0
    %s68 = sadd.s32 %s67, 1
    %s69 = scalar_select %p66, %s67, %s68
    %p72 = pneg %p66
    %p73 = scmp.eq.s32.totalorder %s10, 1
    %p74 = por %p72, %p73
    %p75 = scmp.ne.s32.totalorder %s67, %s70
    %p76 = scmp.eq.s32.totalorder %s10, 0
    %p77 = por %p75, %p76
    %p78 = scmp.ne.s32.totalorder %s67, %s70
    %p79 = scmp.eq.s32.totalorder %s15, 1
    %p80 = por %p78, %p79
    %p81 = scmp.ne.s32.totalorder %s70, %s71
    %p82 = scmp.eq.s32.totalorder %s15, 0
    %p83 = por %p81, %p82
    %p84 = scmp.ne.s32.totalorder %s70, %s71
    %p85 = scmp.eq.s32.totalorder %s16, 1
    %p86 = por %p84, %p85
    %p88 = scmp.ne.s32.totalorder %s71, %s87
    %p89 = scmp.eq.s32.totalorder %s16, 0
    %p90 = por %p88, %p89
    %s91 = ssub.s32 %s10, %s17
    %p92 = scmp.eq.s32.totalorder %s91, 0
    %s94 = sadd.s32 %s93, 1
    %s95 = scalar_select %p92, %s93, %s94
    %p98 = pneg %p92
    %p99 = scmp.eq.s32.totalorder %s10, 1
    %p100 = por %p98, %p99
    %p101 = scmp.ne.s32.totalorder %s93, %s96
    %p102 = scmp.eq.s32.totalorder %s10, 0
    %p103 = por %p101, %p102
    %p104 = scmp.ne.s32.totalorder %s93, %s96
    %p105 = scmp.eq.s32.totalorder %s15, 1
    %p106 = por %p104, %p105
    %p107 = scmp.ne.s32.totalorder %s96, %s97
    %p108 = scmp.eq.s32.totalorder %s15, 0
    %p109 = por %p107, %p108
    %p110 = scmp.ne.s32.totalorder %s96, %s97
    %p111 = scmp.eq.s32.totalorder %s16, 1
    %p112 = por %p110, %p111
    %p114 = scmp.ne.s32.totalorder %s97, %s113
    %p115 = scmp.eq.s32.totalorder %s16, 0
    %p116 = por %p114, %p115
    %p117 = scmp.le.s32.totalorder 1, %s10
    %p118 = scmp.lt.s32.totalorder %s10, 3
    %p119 = pnand %p117, %p118
    %p120 = pneg %p119
    // Predicated region
    $region9: #{residual_block_forward.7} parent=5 // pred_check
      _
    $region10: #{residual_block_forward.7} parent=5 // pred_check_branch
      %122 = sbr.rel (%p119) target = $region12
    $region11: #{residual_block_forward.7} parent=5 // pred_region
      %s123 = ssub.s32 %s10, 1
      // Predicated region
      $region13: #{residual_block_forward.7} parent=11 // pred_check
        %p124 = pneg %p57
      $region14: #{residual_block_forward.7} parent=11 // pred_check_branch
        %126 = sbr.rel (%p124) target = $region16
      $region15: #{residual_block_forward.7} parent=11 // pred_region
        _
      $region16: #{residual_block_forward.7} parent=11 // pred_fallthru
        _
    $region12: #{residual_block_forward.7} parent=5 // pred_fallthru
      _
    %p127 = scmp.lt.s32.totalorder %s10, 2
    // Predicated region
    $region17: #{residual_block_forward.7} parent=5 // pred_check
      %p128 = pneg %p127
    $region18: #{residual_block_forward.7} parent=5 // pred_check_branch
      %130 = sbr.rel (%p128) target = $region20
    $region19: #{residual_block_forward.7} parent=5 // pred_region
      // Predicated region
      $region21: #{residual_block_forward.7} parent=19 // pred_check
        %p131 = pneg %p30
      $region22: #{residual_block_forward.7} parent=19 // pred_check_branch
        %133 = sbr.rel (%p131) target = $region24
      $region23: #{residual_block_forward.7} parent=19 // pred_region
        %p134 = scmp.lt.s32.totalorder %s10, 1
        %s135 = scalar_select %p134, %s10, 1
        %s136 = smul.addr %s135, 20
        %s137 = smul.addr %s136, 4
        %s138 = scalar_lea.vmem %s0, %s137
      $region24: #{residual_block_forward.7} parent=19 // pred_fallthru
        _
    $region20: #{residual_block_forward.7} parent=5 // pred_fallthru
      _
    %p139 = scmp.le.s32.totalorder 1, %s10
    %p140 = scmp.lt.s32.totalorder %s10, 3
    %p141 = pnand %p139, %p140
    %p142 = pneg %p141
    // Predicated region
    $region25: #{residual_block_forward.7} parent=5 // pred_check
      _
    $region26: #{residual_block_forward.7} parent=5 // pred_check_branch
      %144 = sbr.rel (%p141) target = $region28
    $region27: #{residual_block_forward.7} parent=5 // pred_region
      %s145 = ssub.s32 %s10, 1
      %p146 = scmp.lt.s32.totalorder %s15, 1
      %s147 = scalar_select %p146, %s15, 1
      %s148 = smul.addr %s147, 20
      %s149 = smul.addr %s148, 4
      %s150 = scalar_lea.vmem %s0, %s149
      %p151 = pneg %p36
      %p152 = pneg %p33
      %p153 = pneg %p57
      %p154 = pneg %p54
      %p155 = pneg %p83
      %p156 = pneg %p80
      %p157 = scmp.lt.s32.totalorder %s15, 1
      %s158 = scalar_select %p157, %s15, 1
      %s159 = smul.addr %s158, 8
      %s160 = smul.addr %s159, 4
      %s161 = scalar_lea.vmem %s2, %s160
      %p162 = pneg %p109
      %p163 = pneg %p106
      %p164 = scmp.lt.s32.totalorder %s15, 1
      %s165 = scalar_select %p164, %s15, 1
      %s166 = smul.addr %s165, 2
      %s167 = scalar_lea.vmem %s3, %s166
      %p168 = scmp.lt.s32.totalorder %s15, 1
      %s169 = scalar_select %p168, %s15, 1
      %s170 = smul.addr %s169, 20
      %s171 = smul.addr %s170, 4
      %s172 = scalar_lea.vmem %s0, %s171
      %p173 = scmp.lt.s32.totalorder %s15, 1
      %s174 = scalar_select %p173, %s15, 1
      %s175 = smul.addr %s174, 8
      %s176 = smul.addr %s175, 4
      %s177 = scalar_lea.vmem %s2, %s176
      %p178 = scmp.lt.s32.totalorder %s15, 1
      %s179 = scalar_select %p178, %s15, 1
      %s180 = smul.addr %s179, 2
      %s181 = scalar_lea.vmem %s3, %s180
      %v183 = vld [vmem:[%s172] sm:$0xf]
      %v184 = vld [vmem:[%s172 + $0x8] sm:$0xf]
      %v185 = vld [vmem:[%s172 + $0x10] sm:$0xf]
      %v186 = vld [vmem:[%s172 + $0x18] sm:$0xf]
      %v187 = vld [vmem:[%s172 + $0x20] sm:$0xf]
      %v188 = vld [vmem:[%s172 + $0x28] sm:$0xf]
      %v189 = vld [vmem:[%s172 + $0x30] sm:$0xf]
      %v190 = vld [vmem:[%s172 + $0x38] sm:$0xf]
      %v191 = vld [vmem:[%s1] sm:$0xf]
      %v192 = vld [vmem:[%s1 + $0x4] sm:$0xf]
      %v193 = vld [vmem:[%s1 + $0x8] sm:$0xf]
      %v194 = vld [vmem:[%s1 + $0xc] sm:$0xf]
      %v195 = vld [vmem:[%s1 + $0x10] sm:$0xf]
      %v196 = vld [vmem:[%s1 + $0x14] sm:$0xf]
      %v197 = vld [vmem:[%s1 + $0x18] sm:$0xf]
      %v198 = vld [vmem:[%s1 + $0x1c] sm:$0xf]
      %v199 = vld [vmem:[%s1 + $0x20] sm:$0xf]
      %v200 = vld [vmem:[%s1 + $0x24] sm:$0xf]
      %v201 = vld [vmem:[%s1 + $0x28] sm:$0xf]
      %v202 = vld [vmem:[%s1 + $0x2c] sm:$0xf]
      %v203 = vld [vmem:[%s1 + $0x30] sm:$0xf]
      %v204 = vld [vmem:[%s1 + $0x34] sm:$0xf]
      %v205 = vld [vmem:[%s1 + $0x38] sm:$0xf]
      %v206 = vld [vmem:[%s1 + $0x3c] sm:$0xf]
      %v207 = vld [vmem:[%s172 + $0x4] sm:$0x1]
      %v208 = vld [vmem:[%s172 + $0xc] sm:$0x1]
      %v209 = vld [vmem:[%s172 + $0x14] sm:$0x1]
      %v210 = vld [vmem:[%s172 + $0x1c] sm:$0x1]
      %v211 = vld [vmem:[%s172 + $0x24] sm:$0x1]
      %v212 = vld [vmem:[%s172 + $0x2c] sm:$0x1]
      %v213 = vld [vmem:[%s172 + $0x34] sm:$0x1]
      %v214 = vld [vmem:[%s172 + $0x3c] sm:$0x1]
      %vm215 = vsmask.f32 3328
      %vm216 = vsmask.f32 7440
      %vm217 = vmor %vm215, %vm216
      %v219 = vshrl.u32 %v183, 16
      %v221 = vrot.slane %v219, 4
      %v222 = vshll.u32 %v183, 16
      %v224 = vrot.slane %v222, 5
      %v225 = vor.u32 %v221, %v224
      %v226 = vrot.slane %v225, 4
      %v228 = vshll.u32 %v207, 16
      %v230 = vrot.slane %v228, 5
      %v231 = vsel %vm217, %v226, %v230
      %v233 = vshrl.u32 %v184, 16
      %v235 = vrot.slane %v233, 4
      %v236 = vshll.u32 %v184, 16
      %v238 = vrot.slane %v236, 5
      %v239 = vor.u32 %v235, %v238
      %v240 = vrot.slane %v239, 4
      %v242 = vshll.u32 %v208, 16
      %v244 = vrot.slane %v242, 5
      %v245 = vsel %vm217, %v240, %v244
      %v247 = vshrl.u32 %v185, 16
      %v249 = vrot.slane %v247, 4
      %v250 = vshll.u32 %v185, 16
      %v252 = vrot.slane %v250, 5
      %v253 = vor.u32 %v249, %v252
      %v254 = vrot.slane %v253, 4
      %v256 = vshll.u32 %v209, 16
      %v258 = vrot.slane %v256, 5
      %v259 = vsel %vm217, %v254, %v258
      %v261 = vshrl.u32 %v186, 16
      %v263 = vrot.slane %v261, 4
      %v264 = vshll.u32 %v186, 16
      %v266 = vrot.slane %v264, 5
      %v267 = vor.u32 %v263, %v266
      %v268 = vrot.slane %v267, 4
      %v270 = vshll.u32 %v210, 16
      %v272 = vrot.slane %v270, 5
      %v273 = vsel %vm217, %v268, %v272
      %v275 = vshrl.u32 %v187, 16
      %v277 = vrot.slane %v275, 4
      %v278 = vshll.u32 %v187, 16
      %v280 = vrot.slane %v278, 5
      %v281 = vor.u32 %v277, %v280
      %v282 = vrot.slane %v281, 4
      %v284 = vshll.u32 %v211, 16
      %v286 = vrot.slane %v284, 5
      %v287 = vsel %vm217, %v282, %v286
      %v289 = vshrl.u32 %v188, 16
      %v291 = vrot.slane %v289, 4
      %v292 = vshll.u32 %v188, 16
      %v294 = vrot.slane %v292, 5
      %v295 = vor.u32 %v291, %v294
      %v296 = vrot.slane %v295, 4
      %v298 = vshll.u32 %v212, 16
      %v300 = vrot.slane %v298, 5
      %v301 = vsel %vm217, %v296, %v300
      %v303 = vshrl.u32 %v189, 16
      %v305 = vrot.slane %v303, 4
      %v306 = vshll.u32 %v189, 16
      %v308 = vrot.slane %v306, 5
      %v309 = vor.u32 %v305, %v308
      %v310 = vrot.slane %v309, 4
      %v312 = vshll.u32 %v213, 16
      %v314 = vrot.slane %v312, 5
      %v315 = vsel %vm217, %v310, %v314
      %v317 = vshrl.u32 %v190, 16
      %v319 = vrot.slane %v317, 4
      %v320 = vshll.u32 %v190, 16
      %v322 = vrot.slane %v320, 5
      %v323 = vor.u32 %v319, %v322
      %v324 = vrot.slane %v323, 4
      %v326 = vshll.u32 %v214, 16
      %v328 = vrot.slane %v326, 5
      %v329 = vsel %vm217, %v324, %v328
      %s330 = scalar_lea.vmem %s1, 64
      %v331 = vld [vmem:[%s330] sm:$0xf]
      %v332 = vld [vmem:[%s330 + $0x4] sm:$0xf]
      %v333 = vld [vmem:[%s330 + $0x8] sm:$0xf]
      %v334 = vld [vmem:[%s330 + $0xc] sm:$0xf]
      %v335 = vld [vmem:[%s330 + $0x10] sm:$0xf]
      %v336 = vld [vmem:[%s330 + $0x14] sm:$0xf]
      %v337 = vld [vmem:[%s330 + $0x18] sm:$0xf]
      %v338 = vld [vmem:[%s330 + $0x1c] sm:$0xf]
      %v339 = vld [vmem:[%s330 + $0x20] sm:$0xf]
      %v340 = vld [vmem:[%s330 + $0x24] sm:$0xf]
      %v341 = vld [vmem:[%s330 + $0x28] sm:$0xf]
      %v342 = vld [vmem:[%s330 + $0x2c] sm:$0xf]
      %v343 = vld [vmem:[%s330 + $0x30] sm:$0xf]
      %v344 = vld [vmem:[%s330 + $0x34] sm:$0xf]
      %v345 = vld [vmem:[%s330 + $0x38] sm:$0xf]
      %v346 = vld [vmem:[%s330 + $0x3c] sm:$0xf]
      %v347 = vunpack.c.l.b16 %v231
      %v348 = vunpack.c.l.b16 %v245
      %v349 = vunpack.c.l.b16 %v259
      %v350 = vunpack.c.l.b16 %v273
      %v351 = vunpack.c.l.b16 %v287
      %v352 = vunpack.c.l.b16 %v301
      %v353 = vunpack.c.l.b16 %v315
      %v354 = vunpack.c.l.b16 %v329
      %v355 = vpack.c.b16 %v348, %v347
      %v356 = vpack.c.b16 %v350, %v349
      %v357 = vpack.c.b16 %v352, %v351
      %v358 = vpack.c.b16 %v354, %v353
      %v379 = vunpack.c.l.b16 %v331
      %v380 = vunpack.c.l.b16 %v332
      %v381 = vunpack.c.l.b16 %v333
      %v382 = vunpack.c.l.b16 %v334
      %v383 = vunpack.c.l.b16 %v335
      %v384 = vunpack.c.l.b16 %v336
      %v385 = vunpack.c.l.b16 %v337
      %v386 = vunpack.c.l.b16 %v338
      %v387 = vunpack.c.l.b16 %v339
      %v388 = vunpack.c.l.b16 %v340
      %v389 = vunpack.c.l.b16 %v341
      %v390 = vunpack.c.l.b16 %v342
      %v391 = vunpack.c.l.b16 %v343
      %v392 = vunpack.c.l.b16 %v344
      %v393 = vunpack.c.l.b16 %v345
      %v394 = vunpack.c.l.b16 %v346
      %v395 = vpack.c.b16 %v380, %v379
      %v396 = vpack.c.b16 %v382, %v381
      %v397 = vpack.c.b16 %v384, %v383
      %v398 = vpack.c.b16 %v386, %v385
      %v399 = vpack.c.b16 %v388, %v387
      %v400 = vpack.c.b16 %v390, %v389
      %v401 = vpack.c.b16 %v392, %v391
      %v402 = vpack.c.b16 %v394, %v393
      %411 = vmatprep.subr.bf16.mxu0 0
      %412 = vmatpush1.bf16.msra.mxu0 %v402
      %413 = vmatprep.subr.bf16.mxu0 0
      %414 = vmatpush1.bf16.msra.mxu0 %v401
      %415 = vmatprep.subr.bf16.mxu0 0
      %416 = vmatpush1.bf16.msra.mxu0 %v400
      %417 = vmatprep.subr.bf16.mxu0 0
      %418 = vmatpush1.bf16.msra.mxu0 %v399
      %419 = vmatprep.subr.bf16.mxu0 0
      %420 = vmatpush1.bf16.msra.mxu0 %v398
      %421 = vmatprep.subr.bf16.mxu0 0
      %422 = vmatpush1.bf16.msra.mxu0 %v397
      %423 = vmatprep.subr.bf16.mxu0 0
      %424 = vmatpush1.bf16.msra.mxu0 %v396
      %425 = vmatprep.subr.bf16.mxu0 0
      %426 = vmatpush1.bf16.msra.mxu0 %v395
      %427 = vmatprep.subr.bf16.mxu0 0
      %428 = vmatpush2.bf16.msra.mxu0 0
      %429 = vmatprep.subr.bf16.mxu0 0
      %430 = vmatpush2.bf16.msra.mxu0 0
      %431 = vmatprep.subr.bf16.mxu0 0
      %432 = vmatpush2.bf16.msra.mxu0 0
      %433 = vmatprep.subr.bf16.mxu0 0
      %434 = vmatpush2.bf16.msra.mxu0 0
      %435 = vmatprep.subr.bf16.mxu0 0
      %436 = vmatpush2.bf16.msra.mxu0 0
      %437 = vmatprep.subr.bf16.mxu0 0
      %438 = vmatpush2.bf16.msra.mxu0 0
      %439 = vmatprep.subr.bf16.mxu0 0
      %440 = vmatpush2.bf16.msra.mxu0 0
      %441 = vmatprep.subr.bf16.mxu0 0
      %442 = vmatpush2.bf16.msra.mxu0 0
      %443 = vmatprep.mubr.bf16.mxu0 0
      %444 = vmatmul.mubr.bf16.gmra.mxu0 %v355
      %v445 = vpop.f32.mrf.mxu0
      %v446 = vadd.f32 0.0, %v445
      %v447 = vpop.f32.mrf.mxu0
      %v448 = vpop.f32.mrf.mxu0
      %v449 = vadd.f32 0.0, %v448
      %v450 = vpop.f32.mrf.mxu0
      %451 = vmatprep.mubr.bf16.mxu0 0
      %452 = vmatmul.mubr.bf16.gmra.mxu0 %v356
      %v453 = vpop.f32.mrf.mxu0
      %v454 = vadd.f32 0.0, %v453
      %v455 = vpop.f32.mrf.mxu0
      %v456 = vpop.f32.mrf.mxu0
      %v457 = vadd.f32 0.0, %v456
      %v458 = vpop.f32.mrf.mxu0
      %459 = vmatprep.mubr.bf16.mxu0 0
      %460 = vmatmul.mubr.bf16.gmra.mxu0 %v357
      %v461 = vpop.f32.mrf.mxu0
      %v462 = vadd.f32 0.0, %v461
      %v463 = vpop.f32.mrf.mxu0
      %v464 = vpop.f32.mrf.mxu0
      %v465 = vadd.f32 0.0, %v464
      %v466 = vpop.f32.mrf.mxu0
      %467 = vmatprep.mubr.bf16.mxu0 0
      %468 = vmatmul.mubr.bf16.gmra.mxu0 %v358
      %v469 = vpop.f32.mrf.mxu0
      %v470 = vadd.f32 0.0, %v469
      %v471 = vpop.f32.mrf.mxu0
      %v472 = vpop.f32.mrf.mxu0
      %v473 = vadd.f32 0.0, %v472
      %v474 = vpop.f32.mrf.mxu0
      %475 = vdwg.mxu0
      %v484 = vunpack.c.l.b16 %v183
      %v485 = vunpack.c.l.b16 %v184
      %v486 = vunpack.c.l.b16 %v185
      %v487 = vunpack.c.l.b16 %v186
      %v488 = vunpack.c.l.b16 %v187
      %v489 = vunpack.c.l.b16 %v188
      %v490 = vunpack.c.l.b16 %v189
      %v491 = vunpack.c.l.b16 %v190
      %v492 = vpack.c.b16 %v485, %v484
      %v493 = vpack.c.b16 %v487, %v486
      %v494 = vpack.c.b16 %v489, %v488
      %v495 = vpack.c.b16 %v491, %v490
      %v516 = vunpack.c.l.b16 %v191
      %v517 = vunpack.c.l.b16 %v192
      %v518 = vunpack.c.l.b16 %v193
      %v519 = vunpack.c.l.b16 %v194
      %v520 = vunpack.c.l.b16 %v195
      %v521 = vunpack.c.l.b16 %v196
      %v522 = vunpack.c.l.b16 %v197
      %v523 = vunpack.c.l.b16 %v198
      %v524 = vunpack.c.l.b16 %v199
      %v525 = vunpack.c.l.b16 %v200
      %v526 = vunpack.c.l.b16 %v201
      %v527 = vunpack.c.l.b16 %v202
      %v528 = vunpack.c.l.b16 %v203
      %v529 = vunpack.c.l.b16 %v204
      %v530 = vunpack.c.l.b16 %v205
      %v531 = vunpack.c.l.b16 %v206
      %v532 = vpack.c.b16 %v517, %v516
      %v533 = vpack.c.b16 %v519, %v518
      %v534 = vpack.c.b16 %v521, %v520
      %v535 = vpack.c.b16 %v523, %v522
      %v536 = vpack.c.b16 %v525, %v524
      %v537 = vpack.c.b16 %v527, %v526
      %v538 = vpack.c.b16 %v529, %v528
      %v539 = vpack.c.b16 %v531, %v530
      %548 = vmatprep.subr.bf16.mxu0 0
      %549 = vmatpush1.bf16.msra.mxu0 %v539
      %550 = vmatprep.subr.bf16.mxu0 0
      %551 = vmatpush1.bf16.msra.mxu0 %v538
      %552 = vmatprep.subr.bf16.mxu0 0
      %553 = vmatpush1.bf16.msra.mxu0 %v537
      %554 = vmatprep.subr.bf16.mxu0 0
      %555 = vmatpush1.bf16.msra.mxu0 %v536
      %556 = vmatprep.subr.bf16.mxu0 0
      %557 = vmatpush1.bf16.msra.mxu0 %v535
      %558 = vmatprep.subr.bf16.mxu0 0
      %559 = vmatpush1.bf16.msra.mxu0 %v534
      %560 = vmatprep.subr.bf16.mxu0 0
      %561 = vmatpush1.bf16.msra.mxu0 %v533
      %562 = vmatprep.subr.bf16.mxu0 0
      %563 = vmatpush1.bf16.msra.mxu0 %v532
      %564 = vmatprep.subr.bf16.mxu0 0
      %565 = vmatpush2.bf16.msra.mxu0 0
      %566 = vmatprep.subr.bf16.mxu0 0
      %567 = vmatpush2.bf16.msra.mxu0 0
      %568 = vmatprep.subr.bf16.mxu0 0
      %569 = vmatpush2.bf16.msra.mxu0 0
      %570 = vmatprep.subr.bf16.mxu0 0
      %571 = vmatpush2.bf16.msra.mxu0 0
      %572 = vmatprep.subr.bf16.mxu0 0
      %573 = vmatpush2.bf16.msra.mxu0 0
      %574 = vmatprep.subr.bf16.mxu0 0
      %575 = vmatpush2.bf16.msra.mxu0 0
      %576 = vmatprep.subr.bf16.mxu0 0
      %577 = vmatpush2.bf16.msra.mxu0 0
      %578 = vmatprep.subr.bf16.mxu0 0
      %579 = vmatpush2.bf16.msra.mxu0 0
      %580 = vmatprep.mubr.bf16.mxu0 0
      %581 = vmatmul.mubr.bf16.gmra.mxu0 %v492
      %v582 = vpop.f32.mrf.mxu0
      %v583 = vadd.f32 %v446, %v582
      %v584 = vpop.f32.mrf.mxu0
      %v585 = vpop.f32.mrf.mxu0
      %v586 = vadd.f32 %v449, %v585
      %v587 = vpop.f32.mrf.mxu0
      %588 = vmatprep.mubr.bf16.mxu0 0
      %589 = vmatmul.mubr.bf16.gmra.mxu0 %v493
      %v590 = vpop.f32.mrf.mxu0
      %v591 = vadd.f32 %v454, %v590
      %v592 = vpop.f32.mrf.mxu0
      %v593 = vpop.f32.mrf.mxu0
      %v594 = vadd.f32 %v457, %v593
      %v595 = vpop.f32.mrf.mxu0
      %596 = vmatprep.mubr.bf16.mxu0 0
      %597 = vmatmul.mubr.bf16.gmra.mxu0 %v494
      %v598 = vpop.f32.mrf.mxu0
      %v599 = vadd.f32 %v462, %v598
      %v600 = vpop.f32.mrf.mxu0
      %v601 = vpop.f32.mrf.mxu0
      %v602 = vadd.f32 %v465, %v601
      %v603 = vpop.f32.mrf.mxu0
      %604 = vmatprep.mubr.bf16.mxu0 0
      %605 = vmatmul.mubr.bf16.gmra.mxu0 %v495
      %v606 = vpop.f32.mrf.mxu0
      %v607 = vadd.f32 %v470, %v606
      %v608 = vpop.f32.mrf.mxu0
      %v609 = vpop.f32.mrf.mxu0
      %v610 = vadd.f32 %v473, %v609
      %v611 = vpop.f32.mrf.mxu0
      %612 = vdwg.mxu0
      %v613 = vld [vmem:[%s172] sm:$0xe]
      %v614 = vld [vmem:[%s172 + $0x8] sm:$0xe]
      %v615 = vld [vmem:[%s172 + $0x10] sm:$0xe]
      %v616 = vld [vmem:[%s172 + $0x18] sm:$0xe]
      %v617 = vld [vmem:[%s172 + $0x20] sm:$0xe]
      %v618 = vld [vmem:[%s172 + $0x28] sm:$0xe]
      %v619 = vld [vmem:[%s172 + $0x30] sm:$0xe]
      %v620 = vld [vmem:[%s172 + $0x38] sm:$0xe]
      %vm637 = vcmask 1042432
      %vm638 = vcmask 1046532
      %vm639 = vmor %vm637, %vm638
      %v640 = vrot.slane %v613, 5
      %v641 = vrot.slane %v640, 4
      %v642 = vrot.slane %v207, 5
      %v643 = vsel %vm639, %v641, %v642
      %v644 = vrot.slane %v614, 5
      %v645 = vrot.slane %v644, 4
      %v646 = vrot.slane %v208, 5
      %v647 = vsel %vm639, %v645, %v646
      %v648 = vrot.slane %v615, 5
      %v649 = vrot.slane %v648, 4
      %v650 = vrot.slane %v209, 5
      %v651 = vsel %vm639, %v649, %v650
      %v652 = vrot.slane %v616, 5
      %v653 = vrot.slane %v652, 4
      %v654 = vrot.slane %v210, 5
      %v655 = vsel %vm639, %v653, %v654
      %v656 = vrot.slane %v617, 5
      %v657 = vrot.slane %v656, 4
      %v658 = vrot.slane %v211, 5
      %v659 = vsel %vm639, %v657, %v658
      %v660 = vrot.slane %v618, 5
      %v661 = vrot.slane %v660, 4
      %v662 = vrot.slane %v212, 5
      %v663 = vsel %vm639, %v661, %v662
      %v664 = vrot.slane %v619, 5
      %v665 = vrot.slane %v664, 4
      %v666 = vrot.slane %v213, 5
      %v667 = vsel %vm639, %v665, %v666
      %v668 = vrot.slane %v620, 5
      %v669 = vrot.slane %v668, 4
      %v670 = vrot.slane %v214, 5
      %v671 = vsel %vm639, %v669, %v670
      %s672 = scalar_lea.vmem %s1, 128
      %v673 = vld [vmem:[%s672] sm:$0xf]
      %v674 = vld [vmem:[%s672 + $0x4] sm:$0xf]
      %v675 = vld [vmem:[%s672 + $0x8] sm:$0xf]
      %v676 = vld [vmem:[%s672 + $0xc] sm:$0xf]
      %v677 = vld [vmem:[%s672 + $0x10] sm:$0xf]
      %v678 = vld [vmem:[%s672 + $0x14] sm:$0xf]
      %v679 = vld [vmem:[%s672 + $0x18] sm:$0xf]
      %v680 = vld [vmem:[%s672 + $0x1c] sm:$0xf]
      %v681 = vld [vmem:[%s672 + $0x20] sm:$0xf]
      %v682 = vld [vmem:[%s672 + $0x24] sm:$0xf]
      %v683 = vld [vmem:[%s672 + $0x28] sm:$0xf]
      %v684 = vld [vmem:[%s672 + $0x2c] sm:$0xf]
      %v685 = vld [vmem:[%s672 + $0x30] sm:$0xf]
      %v686 = vld [vmem:[%s672 + $0x34] sm:$0xf]
      %v687 = vld [vmem:[%s672 + $0x38] sm:$0xf]
      %v688 = vld [vmem:[%s672 + $0x3c] sm:$0xf]
      %v689 = vunpack.c.l.b16 %v643
      %v690 = vunpack.c.l.b16 %v647
      %v691 = vunpack.c.l.b16 %v651
      %v692 = vunpack.c.l.b16 %v655
      %v693 = vunpack.c.l.b16 %v659
      %v694 = vunpack.c.l.b16 %v663
      %v695 = vunpack.c.l.b16 %v667
      %v696 = vunpack.c.l.b16 %v671
      %v697 = vpack.c.b16 %v690, %v689
      %v698 = vpack.c.b16 %v692, %v691
      %v699 = vpack.c.b16 %v694, %v693
      %v700 = vpack.c.b16 %v696, %v695
      %v721 = vunpack.c.l.b16 %v673
      %v722 = vunpack.c.l.b16 %v674
      %v723 = vunpack.c.l.b16 %v675
      %v724 = vunpack.c.l.b16 %v676
      %v725 = vunpack.c.l.b16 %v677
      %v726 = vunpack.c.l.b16 %v678
      %v727 = vunpack.c.l.b16 %v679
      %v728 = vunpack.c.l.b16 %v680
      %v729 = vunpack.c.l.b16 %v681
      %v730 = vunpack.c.l.b16 %v682
      %v731 = vunpack.c.l.b16 %v683
      %v732 = vunpack.c.l.b16 %v684
      %v733 = vunpack.c.l.b16 %v685
      %v734 = vunpack.c.l.b16 %v686
      %v735 = vunpack.c.l.b16 %v687
      %v736 = vunpack.c.l.b16 %v688
      %v737 = vpack.c.b16 %v722, %v721
      %v738 = vpack.c.b16 %v724, %v723
      %v739 = vpack.c.b16 %v726, %v725
      %v740 = vpack.c.b16 %v728, %v727
      %v741 = vpack.c.b16 %v730, %v729
      %v742 = vpack.c.b16 %v732, %v731
      %v743 = vpack.c.b16 %v734, %v733
      %v744 = vpack.c.b16 %v736, %v735
      %753 = vmatprep.subr.bf16.mxu0 0
      %754 = vmatpush1.bf16.msra.mxu0 %v744
      %755 = vmatprep.subr.bf16.mxu0 0
      %756 = vmatpush1.bf16.msra.mxu0 %v743
      %757 = vmatprep.subr.bf16.mxu0 0
      %758 = vmatpush1.bf16.msra.mxu0 %v742
      %759 = vmatprep.subr.bf16.mxu0 0
      %760 = vmatpush1.bf16.msra.mxu0 %v741
      %761 = vmatprep.subr.bf16.mxu0 0
      %762 = vmatpush1.bf16.msra.mxu0 %v740
      %763 = vmatprep.subr.bf16.mxu0 0
      %764 = vmatpush1.bf16.msra.mxu0 %v739
      %765 = vmatprep.subr.bf16.mxu0 0
      %766 = vmatpush1.bf16.msra.mxu0 %v738
      %767 = vmatprep.subr.bf16.mxu0 0
      %768 = vmatpush1.bf16.msra.mxu0 %v737
      %769 = vmatprep.subr.bf16.mxu0 0
      %770 = vmatpush2.bf16.msra.mxu0 0
      %771 = vmatprep.subr.bf16.mxu0 0
      %772 = vmatpush2.bf16.msra.mxu0 0
      %773 = vmatprep.subr.bf16.mxu0 0
      %774 = vmatpush2.bf16.msra.mxu0 0
      %775 = vmatprep.subr.bf16.mxu0 0
      %776 = vmatpush2.bf16.msra.mxu0 0
      %777 = vmatprep.subr.bf16.mxu0 0
      %778 = vmatpush2.bf16.msra.mxu0 0
      %779 = vmatprep.subr.bf16.mxu0 0
      %780 = vmatpush2.bf16.msra.mxu0 0
      %781 = vmatprep.subr.bf16.mxu0 0
      %782 = vmatpush2.bf16.msra.mxu0 0
      %783 = vmatprep.subr.bf16.mxu0 0
      %784 = vmatpush2.bf16.msra.mxu0 0
      %785 = vmatprep.mubr.bf16.mxu0 0
      %786 = vmatmul.mubr.bf16.gmra.mxu0 %v697
      %v787 = vpop.f32.mrf.mxu0
      %v788 = vadd.f32 0.0, %v787
      %v789 = vpop.f32.mrf.mxu0
      %v790 = vpop.f32.mrf.mxu0
      %v791 = vadd.f32 0.0, %v790
      %v792 = vpop.f32.mrf.mxu0
      %793 = vmatprep.mubr.bf16.mxu0 0
      %794 = vmatmul.mubr.bf16.gmra.mxu0 %v698
      %v795 = vpop.f32.mrf.mxu0
      %v796 = vadd.f32 0.0, %v795
      %v797 = vpop.f32.mrf.mxu0
      %v798 = vpop.f32.mrf.mxu0
      %v799 = vadd.f32 0.0, %v798
      %v800 = vpop.f32.mrf.mxu0
      %801 = vmatprep.mubr.bf16.mxu0 0
      %802 = vmatmul.mubr.bf16.gmra.mxu0 %v699
      %v803 = vpop.f32.mrf.mxu0
      %v804 = vadd.f32 0.0, %v803
      %v805 = vpop.f32.mrf.mxu0
      %v806 = vpop.f32.mrf.mxu0
      %v807 = vadd.f32 0.0, %v806
      %v808 = vpop.f32.mrf.mxu0
      %809 = vmatprep.mubr.bf16.mxu0 0
      %810 = vmatmul.mubr.bf16.gmra.mxu0 %v700
      %v811 = vpop.f32.mrf.mxu0
      %v812 = vadd.f32 0.0, %v811
      %v813 = vpop.f32.mrf.mxu0
      %v814 = vpop.f32.mrf.mxu0
      %v815 = vadd.f32 0.0, %v814
      %v816 = vpop.f32.mrf.mxu0
      %817 = vdwg.mxu0
      %v818 = vadd.f32 %v583, %v788
      %v819 = vadd.f32 %v586, %v791
      %v820 = vadd.f32 %v591, %v796
      %v821 = vadd.f32 %v594, %v799
      %v822 = vadd.f32 %v599, %v804
      %v823 = vadd.f32 %v602, %v807
      %v824 = vadd.f32 %v607, %v812
      %v825 = vadd.f32 %v610, %v815
      %s826 = scalar_lea.vmem %s172, 8
      %v827 = vld [vmem:[%s826] sm:$0xf]
      %v828 = vld [vmem:[%s826 + $0x8] sm:$0xf]
      %v829 = vld [vmem:[%s826 + $0x10] sm:$0xf]
      %v830 = vld [vmem:[%s826 + $0x18] sm:$0xf]
      %v831 = vld [vmem:[%s826 + $0x20] sm:$0xf]
      %v832 = vld [vmem:[%s826 + $0x28] sm:$0xf]
      %v833 = vld [vmem:[%s826 + $0x30] sm:$0xf]
      %v834 = vld [vmem:[%s826 + $0x38] sm:$0xf]
      %s835 = scalar_lea.vmem %s1, 192
      %v836 = vld [vmem:[%s835] sm:$0xf]
      %v837 = vld [vmem:[%s835 + $0x4] sm:$0xf]
      %v838 = vld [vmem:[%s835 + $0x8] sm:$0xf]
      %v839 = vld [vmem:[%s835 + $0xc] sm:$0xf]
      %v840 = vld [vmem:[%s835 + $0x10] sm:$0xf]
      %v841 = vld [vmem:[%s835 + $0x14] sm:$0xf]
      %v842 = vld [vmem:[%s835 + $0x18] sm:$0xf]
      %v843 = vld [vmem:[%s835 + $0x1c] sm:$0xf]
      %v844 = vld [vmem:[%s835 + $0x20] sm:$0xf]
      %v845 = vld [vmem:[%s835 + $0x24] sm:$0xf]
      %v846 = vld [vmem:[%s835 + $0x28] sm:$0xf]
      %v847 = vld [vmem:[%s835 + $0x2c] sm:$0xf]
      %v848 = vld [vmem:[%s835 + $0x30] sm:$0xf]
      %v849 = vld [vmem:[%s835 + $0x34] sm:$0xf]
      %v850 = vld [vmem:[%s835 + $0x38] sm:$0xf]
      %v851 = vld [vmem:[%s835 + $0x3c] sm:$0xf]
      %v860 = vunpack.c.l.b16 %v827
      %v861 = vunpack.c.l.b16 %v828
      %v862 = vunpack.c.l.b16 %v829
      %v863 = vunpack.c.l.b16 %v830
      %v864 = vunpack.c.l.b16 %v831
      %v865 = vunpack.c.l.b16 %v832
      %v866 = vunpack.c.l.b16 %v833
      %v867 = vunpack.c.l.b16 %v834
      %v868 = vpack.c.b16 %v861, %v860
      %v869 = vpack.c.b16 %v863, %v862
      %v870 = vpack.c.b16 %v865, %v864
      %v871 = vpack.c.b16 %v867, %v866
      %v892 = vunpack.c.l.b16 %v836
      %v893 = vunpack.c.l.b16 %v837
      %v894 = vunpack.c.l.b16 %v838
      %v895 = vunpack.c.l.b16 %v839
      %v896 = vunpack.c.l.b16 %v840
      %v897 = vunpack.c.l.b16 %v841
      %v898 = vunpack.c.l.b16 %v842
      %v899 = vunpack.c.l.b16 %v843
      %v900 = vunpack.c.l.b16 %v844
      %v901 = vunpack.c.l.b16 %v845
      %v902 = vunpack.c.l.b16 %v846
      %v903 = vunpack.c.l.b16 %v847
      %v904 = vunpack.c.l.b16 %v848
      %v905 = vunpack.c.l.b16 %v849
      %v906 = vunpack.c.l.b16 %v850
      %v907 = vunpack.c.l.b16 %v851
      %v908 = vpack.c.b16 %v893, %v892
      %v909 = vpack.c.b16 %v895, %v894
      %v910 = vpack.c.b16 %v897, %v896
      %v911 = vpack.c.b16 %v899, %v898
      %v912 = vpack.c.b16 %v901, %v900
      %v913 = vpack.c.b16 %v903, %v902
      %v914 = vpack.c.b16 %v905, %v904
      %v915 = vpack.c.b16 %v907, %v906
      %924 = vmatprep.subr.bf16.mxu0 0
      %925 = vmatpush1.bf16.msra.mxu0 %v915
      %926 = vmatprep.subr.bf16.mxu0 0
      %927 = vmatpush1.bf16.msra.mxu0 %v914
      %928 = vmatprep.subr.bf16.mxu0 0
      %929 = vmatpush1.bf16.msra.mxu0 %v913
      %930 = vmatprep.subr.bf16.mxu0 0
      %931 = vmatpush1.bf16.msra.mxu0 %v912
      %932 = vmatprep.subr.bf16.mxu0 0
      %933 = vmatpush1.bf16.msra.mxu0 %v911
      %934 = vmatprep.subr.bf16.mxu0 0
      %935 = vmatpush1.bf16.msra.mxu0 %v910
      %936 = vmatprep.subr.bf16.mxu0 0
      %937 = vmatpush1.bf16.msra.mxu0 %v909
      %938 = vmatprep.subr.bf16.mxu0 0
      %939 = vmatpush1.bf16.msra.mxu0 %v908
      %940 = vmatprep.subr.bf16.mxu0 0
      %941 = vmatpush2.bf16.msra.mxu0 0
      %942 = vmatprep.subr.bf16.mxu0 0
      %943 = vmatpush2.bf16.msra.mxu0 0
      %944 = vmatprep.subr.bf16.mxu0 0
      %945 = vmatpush2.bf16.msra.mxu0 0
      %946 = vmatprep.subr.bf16.mxu0 0
      %947 = vmatpush2.bf16.msra.mxu0 0
      %948 = vmatprep.subr.bf16.mxu0 0
      %949 = vmatpush2.bf16.msra.mxu0 0
      %950 = vmatprep.subr.bf16.mxu0 0
      %951 = vmatpush2.bf16.msra.mxu0 0
      %952 = vmatprep.subr.bf16.mxu0 0
      %953 = vmatpush2.bf16.msra.mxu0 0
      %954 = vmatprep.subr.bf16.mxu0 0
      %955 = vmatpush2.bf16.msra.mxu0 0
      %956 = vmatprep.mubr.bf16.mxu0 0
      %957 = vmatmul.mubr.bf16.gmra.mxu0 %v868
      %v958 = vpop.f32.mrf.mxu0
      %v959 = vadd.f32 0.0, %v958
      %v960 = vpop.f32.mrf.mxu0
      %v961 = vpop.f32.mrf.mxu0
      %v962 = vadd.f32 0.0, %v961
      %v963 = vpop.f32.mrf.mxu0
      %964 = vmatprep.mubr.bf16.mxu0 0
      %965 = vmatmul.mubr.bf16.gmra.mxu0 %v869
      %v966 = vpop.f32.mrf.mxu0
      %v967 = vadd.f32 0.0, %v966
      %v968 = vpop.f32.mrf.mxu0
      %v969 = vpop.f32.mrf.mxu0
      %v970 = vadd.f32 0.0, %v969
      %v971 = vpop.f32.mrf.mxu0
      %972 = vmatprep.mubr.bf16.mxu0 0
      %973 = vmatmul.mubr.bf16.gmra.mxu0 %v870
      %v974 = vpop.f32.mrf.mxu0
      %v975 = vadd.f32 0.0, %v974
      %v976 = vpop.f32.mrf.mxu0
      %v977 = vpop.f32.mrf.mxu0
      %v978 = vadd.f32 0.0, %v977
      %v979 = vpop.f32.mrf.mxu0
      %980 = vmatprep.mubr.bf16.mxu0 0
      %981 = vmatmul.mubr.bf16.gmra.mxu0 %v871
      %v982 = vpop.f32.mrf.mxu0
      %v983 = vadd.f32 0.0, %v982
      %v984 = vpop.f32.mrf.mxu0
      %v985 = vpop.f32.mrf.mxu0
      %v986 = vadd.f32 0.0, %v985
      %v987 = vpop.f32.mrf.mxu0
      %988 = vdwg.mxu0
      %v989 = vadd.f32 %v818, %v959
      %v990 = vadd.f32 %v819, %v962
      %v991 = vadd.f32 %v820, %v967
      %v992 = vadd.f32 %v821, %v970
      %v993 = vadd.f32 %v822, %v975
      %v994 = vadd.f32 %v823, %v978
      %v995 = vadd.f32 %v824, %v983
      %v996 = vadd.f32 %v825, %v986
      %v997 = vld [vmem:[%s826] sm:$0xf]
      %v998 = vld [vmem:[%s826 + $0x4] sm:$0x1]
      %v999 = vld [vmem:[%s826 + $0x8] sm:$0xf]
      %v1000 = vld [vmem:[%s826 + $0xc] sm:$0x1]
      %v1001 = vld [vmem:[%s826 + $0x10] sm:$0xf]
      %v1002 = vld [vmem:[%s826 + $0x14] sm:$0x1]
      %v1003 = vld [vmem:[%s826 + $0x18] sm:$0xf]
      %v1004 = vld [vmem:[%s826 + $0x1c] sm:$0x1]
      %v1005 = vld [vmem:[%s826 + $0x20] sm:$0xf]
      %v1006 = vld [vmem:[%s826 + $0x24] sm:$0x1]
      %v1007 = vld [vmem:[%s826 + $0x28] sm:$0xf]
      %v1008 = vld [vmem:[%s826 + $0x2c] sm:$0x1]
      %v1009 = vld [vmem:[%s826 + $0x30] sm:$0xf]
      %v1010 = vld [vmem:[%s826 + $0x34] sm:$0x1]
      %v1011 = vld [vmem:[%s826 + $0x38] sm:$0xf]
      %v1012 = vld [vmem:[%s826 + $0x3c] sm:$0x1]
      %v1014 = vshrl.u32 %v997, 16
      %v1016 = vrot.slane %v1014, 4
      %v1017 = vshll.u32 %v997, 16
      %v1019 = vrot.slane %v1017, 5
      %v1020 = vor.u32 %v1016, %v1019
      %v1021 = vrot.slane %v1020, 4
      %v1023 = vshll.u32 %v998, 16
      %v1025 = vrot.slane %v1023, 5
      %v1026 = vsel %vm217, %v1021, %v1025
      %v1028 = vshrl.u32 %v999, 16
      %v1030 = vrot.slane %v1028, 4
      %v1031 = vshll.u32 %v999, 16
      %v1033 = vrot.slane %v1031, 5
      %v1034 = vor.u32 %v1030, %v1033
      %v1035 = vrot.slane %v1034, 4
      %v1037 = vshll.u32 %v1000, 16
      %v1039 = vrot.slane %v1037, 5
      %v1040 = vsel %vm217, %v1035, %v1039
      %v1042 = vshrl.u32 %v1001, 16
      %v1044 = vrot.slane %v1042, 4
      %v1045 = vshll.u32 %v1001, 16
      %v1047 = vrot.slane %v1045, 5
      %v1048 = vor.u32 %v1044, %v1047
      %v1049 = vrot.slane %v1048, 4
      %v1051 = vshll.u32 %v1002, 16
      %v1053 = vrot.slane %v1051, 5
      %v1054 = vsel %vm217, %v1049, %v1053
      %v1056 = vshrl.u32 %v1003, 16
      %v1058 = vrot.slane %v1056, 4
      %v1059 = vshll.u32 %v1003, 16
      %v1061 = vrot.slane %v1059, 5
      %v1062 = vor.u32 %v1058, %v1061
      %v1063 = vrot.slane %v1062, 4
      %v1065 = vshll.u32 %v1004, 16
      %v1067 = vrot.slane %v1065, 5
      %v1068 = vsel %vm217, %v1063, %v1067
      %v1070 = vshrl.u32 %v1005, 16
      %v1072 = vrot.slane %v1070, 4
      %v1073 = vshll.u32 %v1005, 16
      %v1075 = vrot.slane %v1073, 5
      %v1076 = vor.u32 %v1072, %v1075
      %v1077 = vrot.slane %v1076, 4
      %v1079 = vshll.u32 %v1006, 16
      %v1081 = vrot.slane %v1079, 5
      %v1082 = vsel %vm217, %v1077, %v1081
      %v1084 = vshrl.u32 %v1007, 16
      %v1086 = vrot.slane %v1084, 4
      %v1087 = vshll.u32 %v1007, 16
      %v1089 = vrot.slane %v1087, 5
      %v1090 = vor.u32 %v1086, %v1089
      %v1091 = vrot.slane %v1090, 4
      %v1093 = vshll.u32 %v1008, 16
      %v1095 = vrot.slane %v1093, 5
      %v1096 = vsel %vm217, %v1091, %v1095
      %v1098 = vshrl.u32 %v1009, 16
      %v1100 = vrot.slane %v1098, 4
      %v1101 = vshll.u32 %v1009, 16
      %v1103 = vrot.slane %v1101, 5
      %v1104 = vor.u32 %v1100, %v1103
      %v1105 = vrot.slane %v1104, 4
      %v1107 = vshll.u32 %v1010, 16
      %v1109 = vrot.slane %v1107, 5
      %v1110 = vsel %vm217, %v1105, %v1109
      %v1112 = vshrl.u32 %v1011, 16
      %v1114 = vrot.slane %v1112, 4
      %v1115 = vshll.u32 %v1011, 16
      %v1117 = vrot.slane %v1115, 5
      %v1118 = vor.u32 %v1114, %v1117
      %v1119 = vrot.slane %v1118, 4
      %v1121 = vshll.u32 %v1012, 16
      %v1123 = vrot.slane %v1121, 5
      %v1124 = vsel %vm217, %v1119, %v1123
      %s1125 = scalar_lea.vmem %s1, 256
      %v1126 = vld [vmem:[%s1125] sm:$0xf]
      %v1127 = vld [vmem:[%s1125 + $0x4] sm:$0xf]
      %v1128 = vld [vmem:[%s1125 + $0x8] sm:$0xf]
      %v1129 = vld [vmem:[%s1125 + $0xc] sm:$0xf]
      %v1130 = vld [vmem:[%s1125 + $0x10] sm:$0xf]
      %v1131 = vld [vmem:[%s1125 + $0x14] sm:$0xf]
      %v1132 = vld [vmem:[%s1125 + $0x18] sm:$0xf]
      %v1133 = vld [vmem:[%s1125 + $0x1c] sm:$0xf]
      %v1134 = vld [vmem:[%s1125 + $0x20] sm:$0xf]
      %v1135 = vld [vmem:[%s1125 + $0x24] sm:$0xf]
      %v1136 = vld [vmem:[%s1125 + $0x28] sm:$0xf]
      %v1137 = vld [vmem:[%s1125 + $0x2c] sm:$0xf]
      %v1138 = vld [vmem:[%s1125 + $0x30] sm:$0xf]
      %v1139 = vld [vmem:[%s1125 + $0x34] sm:$0xf]
      %v1140 = vld [vmem:[%s1125 + $0x38] sm:$0xf]
      %v1141 = vld [vmem:[%s1125 + $0x3c] sm:$0xf]
      %v1142 = vunpack.c.l.b16 %v1026
      %v1143 = vunpack.c.l.b16 %v1040
      %v1144 = vunpack.c.l.b16 %v1054
      %v1145 = vunpack.c.l.b16 %v1068
      %v1146 = vunpack.c.l.b16 %v1082
      %v1147 = vunpack.c.l.b16 %v1096
      %v1148 = vunpack.c.l.b16 %v1110
      %v1149 = vunpack.c.l.b16 %v1124
      %v1150 = vpack.c.b16 %v1143, %v1142
      %v1151 = vpack.c.b16 %v1145, %v1144
      %v1152 = vpack.c.b16 %v1147, %v1146
      %v1153 = vpack.c.b16 %v1149, %v1148
      %v1174 = vunpack.c.l.b16 %v1126
      %v1175 = vunpack.c.l.b16 %v1127
      %v1176 = vunpack.c.l.b16 %v1128
      %v1177 = vunpack.c.l.b16 %v1129
      %v1178 = vunpack.c.l.b16 %v1130
      %v1179 = vunpack.c.l.b16 %v1131
      %v1180 = vunpack.c.l.b16 %v1132
      %v1181 = vunpack.c.l.b16 %v1133
      %v1182 = vunpack.c.l.b16 %v1134
      %v1183 = vunpack.c.l.b16 %v1135
      %v1184 = vunpack.c.l.b16 %v1136
      %v1185 = vunpack.c.l.b16 %v1137
      %v1186 = vunpack.c.l.b16 %v1138
      %v1187 = vunpack.c.l.b16 %v1139
      %v1188 = vunpack.c.l.b16 %v1140
      %v1189 = vunpack.c.l.b16 %v1141
      %v1190 = vpack.c.b16 %v1175, %v1174
      %v1191 = vpack.c.b16 %v1177, %v1176
      %v1192 = vpack.c.b16 %v1179, %v1178
      %v1193 = vpack.c.b16 %v1181, %v1180
      %v1194 = vpack.c.b16 %v1183, %v1182
      %v1195 = vpack.c.b16 %v1185, %v1184
      %v1196 = vpack.c.b16 %v1187, %v1186
      %v1197 = vpack.c.b16 %v1189, %v1188
      %1206 = vmatprep.subr.bf16.mxu0 0
      %1207 = vmatpush1.bf16.msra.mxu0 %v1197
      %1208 = vmatprep.subr.bf16.mxu0 0
      %1209 = vmatpush1.bf16.msra.mxu0 %v1196
      %1210 = vmatprep.subr.bf16.mxu0 0
      %1211 = vmatpush1.bf16.msra.mxu0 %v1195
      %1212 = vmatprep.subr.bf16.mxu0 0
      %1213 = vmatpush1.bf16.msra.mxu0 %v1194
      %1214 = vmatprep.subr.bf16.mxu0 0
      %1215 = vmatpush1.bf16.msra.mxu0 %v1193
      %1216 = vmatprep.subr.bf16.mxu0 0
      %1217 = vmatpush1.bf16.msra.mxu0 %v1192
      %1218 = vmatprep.subr.bf16.mxu0 0
      %1219 = vmatpush1.bf16.msra.mxu0 %v1191
      %1220 = vmatprep.subr.bf16.mxu0 0
      %1221 = vmatpush1.bf16.msra.mxu0 %v1190
      %1222 = vmatprep.subr.bf16.mxu0 0
      %1223 = vmatpush2.bf16.msra.mxu0 0
      %1224 = vmatprep.subr.bf16.mxu0 0
      %1225 = vmatpush2.bf16.msra.mxu0 0
      %1226 = vmatprep.subr.bf16.mxu0 0
      %1227 = vmatpush2.bf16.msra.mxu0 0
      %1228 = vmatprep.subr.bf16.mxu0 0
      %1229 = vmatpush2.bf16.msra.mxu0 0
      %1230 = vmatprep.subr.bf16.mxu0 0
      %1231 = vmatpush2.bf16.msra.mxu0 0
      %1232 = vmatprep.subr.bf16.mxu0 0
      %1233 = vmatpush2.bf16.msra.mxu0 0
      %1234 = vmatprep.subr.bf16.mxu0 0
      %1235 = vmatpush2.bf16.msra.mxu0 0
      %1236 = vmatprep.subr.bf16.mxu0 0
      %1237 = vmatpush2.bf16.msra.mxu0 0
      %1238 = vmatprep.mubr.bf16.mxu0 0
      %1239 = vmatmul.mubr.bf16.gmra.mxu0 %v1150
      %v1240 = vpop.f32.mrf.mxu0
      %v1241 = vadd.f32 0.0, %v1240
      %v1242 = vpop.f32.mrf.mxu0
      %v1243 = vpop.f32.mrf.mxu0
      %v1244 = vadd.f32 0.0, %v1243
      %v1245 = vpop.f32.mrf.mxu0
      %1246 = vmatprep.mubr.bf16.mxu0 0
      %1247 = vmatmul.mubr.bf16.gmra.mxu0 %v1151
      %v1248 = vpop.f32.mrf.mxu0
      %v1249 = vadd.f32 0.0, %v1248
      %v1250 = vpop.f32.mrf.mxu0
      %v1251 = vpop.f32.mrf.mxu0
      %v1252 = vadd.f32 0.0, %v1251
      %v1253 = vpop.f32.mrf.mxu0
      %1254 = vmatprep.mubr.bf16.mxu0 0
      %1255 = vmatmul.mubr.bf16.gmra.mxu0 %v1152
      %v1256 = vpop.f32.mrf.mxu0
      %v1257 = vadd.f32 0.0, %v1256
      %v1258 = vpop.f32.mrf.mxu0
      %v1259 = vpop.f32.mrf.mxu0
      %v1260 = vadd.f32 0.0, %v1259
      %v1261 = vpop.f32.mrf.mxu0
      %1262 = vmatprep.mubr.bf16.mxu0 0
      %1263 = vmatmul.mubr.bf16.gmra.mxu0 %v1153
      %v1264 = vpop.f32.mrf.mxu0
      %v1265 = vadd.f32 0.0, %v1264
      %v1266 = vpop.f32.mrf.mxu0
      %v1267 = vpop.f32.mrf.mxu0
      %v1268 = vadd.f32 0.0, %v1267
      %v1269 = vpop.f32.mrf.mxu0
      %1270 = vdwg.mxu0
      %v1271 = vadd.f32 %v989, %v1241
      %v1272 = vadd.f32 %v990, %v1244
      %v1273 = vadd.f32 %v991, %v1249
      %v1274 = vadd.f32 %v992, %v1252
      %v1275 = vadd.f32 %v993, %v1257
      %v1276 = vadd.f32 %v994, %v1260
      %v1277 = vadd.f32 %v995, %v1265
      %v1278 = vadd.f32 %v996, %v1268
      %v1279 = vld [vmem:[%s826] sm:$0xe]
      %v1280 = vld [vmem:[%s826 + $0x8] sm:$0xe]
      %v1281 = vld [vmem:[%s826 + $0x10] sm:$0xe]
      %v1282 = vld [vmem:[%s826 + $0x18] sm:$0xe]
      %v1283 = vld [vmem:[%s826 + $0x20] sm:$0xe]
      %v1284 = vld [vmem:[%s826 + $0x28] sm:$0xe]
      %v1285 = vld [vmem:[%s826 + $0x30] sm:$0xe]
      %v1286 = vld [vmem:[%s826 + $0x38] sm:$0xe]
      %v1303 = vrot.slane %v1279, 5
      %v1304 = vrot.slane %v1303, 4
      %v1305 = vrot.slane %v998, 5
      %v1306 = vsel %vm639, %v1304, %v1305
      %v1307 = vrot.slane %v1280, 5
      %v1308 = vrot.slane %v1307, 4
      %v1309 = vrot.slane %v1000, 5
      %v1310 = vsel %vm639, %v1308, %v1309
      %v1311 = vrot.slane %v1281, 5
      %v1312 = vrot.slane %v1311, 4
      %v1313 = vrot.slane %v1002, 5
      %v1314 = vsel %vm639, %v1312, %v1313
      %v1315 = vrot.slane %v1282, 5
      %v1316 = vrot.slane %v1315, 4
      %v1317 = vrot.slane %v1004, 5
      %v1318 = vsel %vm639, %v1316, %v1317
      %v1319 = vrot.slane %v1283, 5
      %v1320 = vrot.slane %v1319, 4
      %v1321 = vrot.slane %v1006, 5
      %v1322 = vsel %vm639, %v1320, %v1321
      %v1323 = vrot.slane %v1284, 5
      %v1324 = vrot.slane %v1323, 4
      %v1325 = vrot.slane %v1008, 5
      %v1326 = vsel %vm639, %v1324, %v1325
      %v1327 = vrot.slane %v1285, 5
      %v1328 = vrot.slane %v1327, 4
      %v1329 = vrot.slane %v1010, 5
      %v1330 = vsel %vm639, %v1328, %v1329
      %v1331 = vrot.slane %v1286, 5
      %v1332 = vrot.slane %v1331, 4
      %v1333 = vrot.slane %v1012, 5
      %v1334 = vsel %vm639, %v1332, %v1333
      %s1335 = scalar_lea.vmem %s1, 320
      %v1336 = vld [vmem:[%s1335] sm:$0xf]
      %v1337 = vld [vmem:[%s1335 + $0x4] sm:$0xf]
      %v1338 = vld [vmem:[%s1335 + $0x8] sm:$0xf]
      %v1339 = vld [vmem:[%s1335 + $0xc] sm:$0xf]
      %v1340 = vld [vmem:[%s1335 + $0x10] sm:$0xf]
      %v1341 = vld [vmem:[%s1335 + $0x14] sm:$0xf]
      %v1342 = vld [vmem:[%s1335 + $0x18] sm:$0xf]
      %v1343 = vld [vmem:[%s1335 + $0x1c] sm:$0xf]
      %v1344 = vld [vmem:[%s1335 + $0x20] sm:$0xf]
      %v1345 = vld [vmem:[%s1335 + $0x24] sm:$0xf]
      %v1346 = vld [vmem:[%s1335 + $0x28] sm:$0xf]
      %v1347 = vld [vmem:[%s1335 + $0x2c] sm:$0xf]
      %v1348 = vld [vmem:[%s1335 + $0x30] sm:$0xf]
      %v1349 = vld [vmem:[%s1335 + $0x34] sm:$0xf]
      %v1350 = vld [vmem:[%s1335 + $0x38] sm:$0xf]
      %v1351 = vld [vmem:[%s1335 + $0x3c] sm:$0xf]
      %v1352 = vunpack.c.l.b16 %v1306
      %v1353 = vunpack.c.l.b16 %v1310
      %v1354 = vunpack.c.l.b16 %v1314
      %v1355 = vunpack.c.l.b16 %v1318
      %v1356 = vunpack.c.l.b16 %v1322
      %v1357 = vunpack.c.l.b16 %v1326
      %v1358 = vunpack.c.l.b16 %v1330
      %v1359 = vunpack.c.l.b16 %v1334
      %v1360 = vpack.c.b16 %v1353, %v1352
      %v1361 = vpack.c.b16 %v1355, %v1354
      %v1362 = vpack.c.b16 %v1357, %v1356
      %v1363 = vpack.c.b16 %v1359, %v1358
      %v1384 = vunpack.c.l.b16 %v1336
      %v1385 = vunpack.c.l.b16 %v1337
      %v1386 = vunpack.c.l.b16 %v1338
      %v1387 = vunpack.c.l.b16 %v1339
      %v1388 = vunpack.c.l.b16 %v1340
      %v1389 = vunpack.c.l.b16 %v1341
      %v1390 = vunpack.c.l.b16 %v1342
      %v1391 = vunpack.c.l.b16 %v1343
      %v1392 = vunpack.c.l.b16 %v1344
      %v1393 = vunpack.c.l.b16 %v1345
      %v1394 = vunpack.c.l.b16 %v1346
      %v1395 = vunpack.c.l.b16 %v1347
      %v1396 = vunpack.c.l.b16 %v1348
      %v1397 = vunpack.c.l.b16 %v1349
      %v1398 = vunpack.c.l.b16 %v1350
      %v1399 = vunpack.c.l.b16 %v1351
      %v1400 = vpack.c.b16 %v1385, %v1384
      %v1401 = vpack.c.b16 %v1387, %v1386
      %v1402 = vpack.c.b16 %v1389, %v1388
      %v1403 = vpack.c.b16 %v1391, %v1390
      %v1404 = vpack.c.b16 %v1393, %v1392
      %v1405 = vpack.c.b16 %v1395, %v1394
      %v1406 = vpack.c.b16 %v1397, %v1396
      %v1407 = vpack.c.b16 %v1399, %v1398
      %1416 = vmatprep.subr.bf16.mxu0 0
      %1417 = vmatpush1.bf16.msra.mxu0 %v1407
      %1418 = vmatprep.subr.bf16.mxu0 0
      %1419 = vmatpush1.bf16.msra.mxu0 %v1406
      %1420 = vmatprep.subr.bf16.mxu0 0
      %1421 = vmatpush1.bf16.msra.mxu0 %v1405
      %1422 = vmatprep.subr.bf16.mxu0 0
      %1423 = vmatpush1.bf16.msra.mxu0 %v1404
      %1424 = vmatprep.subr.bf16.mxu0 0
      %1425 = vmatpush1.bf16.msra.mxu0 %v1403
      %1426 = vmatprep.subr.bf16.mxu0 0
      %1427 = vmatpush1.bf16.msra.mxu0 %v1402
      %1428 = vmatprep.subr.bf16.mxu0 0
      %1429 = vmatpush1.bf16.msra.mxu0 %v1401
      %1430 = vmatprep.subr.bf16.mxu0 0
      %1431 = vmatpush1.bf16.msra.mxu0 %v1400
      %1432 = vmatprep.subr.bf16.mxu0 0
      %1433 = vmatpush2.bf16.msra.mxu0 0
      %1434 = vmatprep.subr.bf16.mxu0 0
      %1435 = vmatpush2.bf16.msra.mxu0 0
      %1436 = vmatprep.subr.bf16.mxu0 0
      %1437 = vmatpush2.bf16.msra.mxu0 0
      %1438 = vmatprep.subr.bf16.mxu0 0
      %1439 = vmatpush2.bf16.msra.mxu0 0
      %1440 = vmatprep.subr.bf16.mxu0 0
      %1441 = vmatpush2.bf16.msra.mxu0 0
      %1442 = vmatprep.subr.bf16.mxu0 0
      %1443 = vmatpush2.bf16.msra.mxu0 0
      %1444 = vmatprep.subr.bf16.mxu0 0
      %1445 = vmatpush2.bf16.msra.mxu0 0
      %1446 = vmatprep.subr.bf16.mxu0 0
      %1447 = vmatpush2.bf16.msra.mxu0 0
      %1448 = vmatprep.mubr.bf16.mxu0 0
      %1449 = vmatmul.mubr.bf16.gmra.mxu0 %v1360
      %v1450 = vpop.f32.mrf.mxu0
      %v1451 = vadd.f32 0.0, %v1450
      %v1452 = vpop.f32.mrf.mxu0
      %v1453 = vpop.f32.mrf.mxu0
      %v1454 = vadd.f32 0.0, %v1453
      %v1455 = vpop.f32.mrf.mxu0
      %1456 = vmatprep.mubr.bf16.mxu0 0
      %1457 = vmatmul.mubr.bf16.gmra.mxu0 %v1361
      %v1458 = vpop.f32.mrf.mxu0
      %v1459 = vadd.f32 0.0, %v1458
      %v1460 = vpop.f32.mrf.mxu0
      %v1461 = vpop.f32.mrf.mxu0
      %v1462 = vadd.f32 0.0, %v1461
      %v1463 = vpop.f32.mrf.mxu0
      %1464 = vmatprep.mubr.bf16.mxu0 0
      %1465 = vmatmul.mubr.bf16.gmra.mxu0 %v1362
      %v1466 = vpop.f32.mrf.mxu0
      %v1467 = vadd.f32 0.0, %v1466
      %v1468 = vpop.f32.mrf.mxu0
      %v1469 = vpop.f32.mrf.mxu0
      %v1470 = vadd.f32 0.0, %v1469
      %v1471 = vpop.f32.mrf.mxu0
      %1472 = vmatprep.mubr.bf16.mxu0 0
      %1473 = vmatmul.mubr.bf16.gmra.mxu0 %v1363
      %v1474 = vpop.f32.mrf.mxu0
      %v1475 = vadd.f32 0.0, %v1474
      %v1476 = vpop.f32.mrf.mxu0
      %v1477 = vpop.f32.mrf.mxu0
      %v1478 = vadd.f32 0.0, %v1477
      %v1479 = vpop.f32.mrf.mxu0
      %1480 = vdwg.mxu0
      %v1481 = vadd.f32 %v1271, %v1451
      %v1482 = vadd.f32 %v1272, %v1454
      %v1483 = vadd.f32 %v1273, %v1459
      %v1484 = vadd.f32 %v1274, %v1462
      %v1485 = vadd.f32 %v1275, %v1467
      %v1486 = vadd.f32 %v1276, %v1470
      %v1487 = vadd.f32 %v1277, %v1475
      %v1488 = vadd.f32 %v1278, %v1478
      %s1489 = scalar_lea.vmem %s172, 16
      %v1490 = vld [vmem:[%s1489] sm:$0xf]
      %v1491 = vld [vmem:[%s1489 + $0x8] sm:$0xf]
      %v1492 = vld [vmem:[%s1489 + $0x10] sm:$0xf]
      %v1493 = vld [vmem:[%s1489 + $0x18] sm:$0xf]
      %v1494 = vld [vmem:[%s1489 + $0x20] sm:$0xf]
      %v1495 = vld [vmem:[%s1489 + $0x28] sm:$0xf]
      %v1496 = vld [vmem:[%s1489 + $0x30] sm:$0xf]
      %v1497 = vld [vmem:[%s1489 + $0x38] sm:$0xf]
      %s1498 = scalar_lea.vmem %s1, 384
      %v1499 = vld [vmem:[%s1498] sm:$0xf]
      %v1500 = vld [vmem:[%s1498 + $0x4] sm:$0xf]
      %v1501 = vld [vmem:[%s1498 + $0x8] sm:$0xf]
      %v1502 = vld [vmem:[%s1498 + $0xc] sm:$0xf]
      %v1503 = vld [vmem:[%s1498 + $0x10] sm:$0xf]
      %v1504 = vld [vmem:[%s1498 + $0x14] sm:$0xf]
      %v1505 = vld [vmem:[%s1498 + $0x18] sm:$0xf]
      %v1506 = vld [vmem:[%s1498 + $0x1c] sm:$0xf]
      %v1507 = vld [vmem:[%s1498 + $0x20] sm:$0xf]
      %v1508 = vld [vmem:[%s1498 + $0x24] sm:$0xf]
      %v1509 = vld [vmem:[%s1498 + $0x28] sm:$0xf]
      %v1510 = vld [vmem:[%s1498 + $0x2c] sm:$0xf]
      %v1511 = vld [vmem:[%s1498 + $0x30] sm:$0xf]
      %v1512 = vld [vmem:[%s1498 + $0x34] sm:$0xf]
      %v1513 = vld [vmem:[%s1498 + $0x38] sm:$0xf]
      %v1514 = vld [vmem:[%s1498 + $0x3c] sm:$0xf]
      %v1523 = vunpack.c.l.b16 %v1490
      %v1524 = vunpack.c.l.b16 %v1491
      %v1525 = vunpack.c.l.b16 %v1492
      %v1526 = vunpack.c.l.b16 %v1493
      %v1527 = vunpack.c.l.b16 %v1494
      %v1528 = vunpack.c.l.b16 %v1495
      %v1529 = vunpack.c.l.b16 %v1496
      %v1530 = vunpack.c.l.b16 %v1497
      %v1531 = vpack.c.b16 %v1524, %v1523
      %v1532 = vpack.c.b16 %v1526, %v1525
      %v1533 = vpack.c.b16 %v1528, %v1527
      %v1534 = vpack.c.b16 %v1530, %v1529
      %v1555 = vunpack.c.l.b16 %v1499
      %v1556 = vunpack.c.l.b16 %v1500
      %v1557 = vunpack.c.l.b16 %v1501
      %v1558 = vunpack.c.l.b16 %v1502
      %v1559 = vunpack.c.l.b16 %v1503
      %v1560 = vunpack.c.l.b16 %v1504
      %v1561 = vunpack.c.l.b16 %v1505
      %v1562 = vunpack.c.l.b16 %v1506
      %v1563 = vunpack.c.l.b16 %v1507
      %v1564 = vunpack.c.l.b16 %v1508
      %v1565 = vunpack.c.l.b16 %v1509
      %v1566 = vunpack.c.l.b16 %v1510
      %v1567 = vunpack.c.l.b16 %v1511
      %v1568 = vunpack.c.l.b16 %v1512
      %v1569 = vunpack.c.l.b16 %v1513
      %v1570 = vunpack.c.l.b16 %v1514
      %v1571 = vpack.c.b16 %v1556, %v1555
      %v1572 = vpack.c.b16 %v1558, %v1557
      %v1573 = vpack.c.b16 %v1560, %v1559
      %v1574 = vpack.c.b16 %v1562, %v1561
      %v1575 = vpack.c.b16 %v1564, %v1563
      %v1576 = vpack.c.b16 %v1566, %v1565
      %v1577 = vpack.c.b16 %v1568, %v1567
      %v1578 = vpack.c.b16 %v1570, %v1569
      %1587 = vmatprep.subr.bf16.mxu0 0
      %1588 = vmatpush1.bf16.msra.mxu0 %v1578
      %1589 = vmatprep.subr.bf16.mxu0 0
      %1590 = vmatpush1.bf16.msra.mxu0 %v1577
      %1591 = vmatprep.subr.bf16.mxu0 0
      %1592 = vmatpush1.bf16.msra.mxu0 %v1576
      %1593 = vmatprep.subr.bf16.mxu0 0
      %1594 = vmatpush1.bf16.msra.mxu0 %v1575
      %1595 = vmatprep.subr.bf16.mxu0 0
      %1596 = vmatpush1.bf16.msra.mxu0 %v1574
      %1597 = vmatprep.subr.bf16.mxu0 0
      %1598 = vmatpush1.bf16.msra.mxu0 %v1573
      %1599 = vmatprep.subr.bf16.mxu0 0
      %1600 = vmatpush1.bf16.msra.mxu0 %v1572
      %1601 = vmatprep.subr.bf16.mxu0 0
      %1602 = vmatpush1.bf16.msra.mxu0 %v1571
      %1603 = vmatprep.subr.bf16.mxu0 0
      %1604 = vmatpush2.bf16.msra.mxu0 0
      %1605 = vmatprep.subr.bf16.mxu0 0
      %1606 = vmatpush2.bf16.msra.mxu0 0
      %1607 = vmatprep.subr.bf16.mxu0 0
      %1608 = vmatpush2.bf16.msra.mxu0 0
      %1609 = vmatprep.subr.bf16.mxu0 0
      %1610 = vmatpush2.bf16.msra.mxu0 0
      %1611 = vmatprep.subr.bf16.mxu0 0
      %1612 = vmatpush2.bf16.msra.mxu0 0
      %1613 = vmatprep.subr.bf16.mxu0 0
      %1614 = vmatpush2.bf16.msra.mxu0 0
      %1615 = vmatprep.subr.bf16.mxu0 0
      %1616 = vmatpush2.bf16.msra.mxu0 0
      %1617 = vmatprep.subr.bf16.mxu0 0
      %1618 = vmatpush2.bf16.msra.mxu0 0
      %1619 = vmatprep.mubr.bf16.mxu0 0
      %1620 = vmatmul.mubr.bf16.gmra.mxu0 %v1531
      %v1621 = vpop.f32.mrf.mxu0
      %v1622 = vadd.f32 0.0, %v1621
      %v1623 = vpop.f32.mrf.mxu0
      %v1624 = vpop.f32.mrf.mxu0
      %v1625 = vadd.f32 0.0, %v1624
      %v1626 = vpop.f32.mrf.mxu0
      %1627 = vmatprep.mubr.bf16.mxu0 0
      %1628 = vmatmul.mubr.bf16.gmra.mxu0 %v1532
      %v1629 = vpop.f32.mrf.mxu0
      %v1630 = vadd.f32 0.0, %v1629
      %v1631 = vpop.f32.mrf.mxu0
      %v1632 = vpop.f32.mrf.mxu0
      %v1633 = vadd.f32 0.0, %v1632
      %v1634 = vpop.f32.mrf.mxu0
      %1635 = vmatprep.mubr.bf16.mxu0 0
      %1636 = vmatmul.mubr.bf16.gmra.mxu0 %v1533
      %v1637 = vpop.f32.mrf.mxu0
      %v1638 = vadd.f32 0.0, %v1637
      %v1639 = vpop.f32.mrf.mxu0
      %v1640 = vpop.f32.mrf.mxu0
      %v1641 = vadd.f32 0.0, %v1640
      %v1642 = vpop.f32.mrf.mxu0
      %1643 = vmatprep.mubr.bf16.mxu0 0
      %1644 = vmatmul.mubr.bf16.gmra.mxu0 %v1534
      %v1645 = vpop.f32.mrf.mxu0
      %v1646 = vadd.f32 0.0, %v1645
      %v1647 = vpop.f32.mrf.mxu0
      %v1648 = vpop.f32.mrf.mxu0
      %v1649 = vadd.f32 0.0, %v1648
      %v1650 = vpop.f32.mrf.mxu0
      %1651 = vdwg.mxu0
      %v1652 = vadd.f32 %v1481, %v1622
      %v1653 = vadd.f32 %v1482, %v1625
      %v1654 = vadd.f32 %v1483, %v1630
      %v1655 = vadd.f32 %v1484, %v1633
      %v1656 = vadd.f32 %v1485, %v1638
      %v1657 = vadd.f32 %v1486, %v1641
      %v1658 = vadd.f32 %v1487, %v1646
      %v1659 = vadd.f32 %v1488, %v1649
      %v1660 = vld [vmem:[%s1489] sm:$0xf]
      %v1661 = vld [vmem:[%s1489 + $0x4] sm:$0x1]
      %v1662 = vld [vmem:[%s1489 + $0x8] sm:$0xf]
      %v1663 = vld [vmem:[%s1489 + $0xc] sm:$0x1]
      %v1664 = vld [vmem:[%s1489 + $0x10] sm:$0xf]
      %v1665 = vld [vmem:[%s1489 + $0x14] sm:$0x1]
      %v1666 = vld [vmem:[%s1489 + $0x18] sm:$0xf]
      %v1667 = vld [vmem:[%s1489 + $0x1c] sm:$0x1]
      %v1668 = vld [vmem:[%s1489 + $0x20] sm:$0xf]
      %v1669 = vld [vmem:[%s1489 + $0x24] sm:$0x1]
      %v1670 = vld [vmem:[%s1489 + $0x28] sm:$0xf]
      %v1671 = vld [vmem:[%s1489 + $0x2c] sm:$0x1]
      %v1672 = vld [vmem:[%s1489 + $0x30] sm:$0xf]
      %v1673 = vld [vmem:[%s1489 + $0x34] sm:$0x1]
      %v1674 = vld [vmem:[%s1489 + $0x38] sm:$0xf]
      %v1675 = vld [vmem:[%s1489 + $0x3c] sm:$0x1]
      %v1677 = vshrl.u32 %v1660, 16
      %v1679 = vrot.slane %v1677, 4
      %v1680 = vshll.u32 %v1660, 16
      %v1682 = vrot.slane %v1680, 5
      %v1683 = vor.u32 %v1679, %v1682
      %v1684 = vrot.slane %v1683, 4
      %v1686 = vshll.u32 %v1661, 16
      %v1688 = vrot.slane %v1686, 5
      %v1689 = vsel %vm217, %v1684, %v1688
      %v1691 = vshrl.u32 %v1662, 16
      %v1693 = vrot.slane %v1691, 4
      %v1694 = vshll.u32 %v1662, 16
      %v1696 = vrot.slane %v1694, 5
      %v1697 = vor.u32 %v1693, %v1696
      %v1698 = vrot.slane %v1697, 4
      %v1700 = vshll.u32 %v1663, 16
      %v1702 = vrot.slane %v1700, 5
      %v1703 = vsel %vm217, %v1698, %v1702
      %v1705 = vshrl.u32 %v1664, 16
      %v1707 = vrot.slane %v1705, 4
      %v1708 = vshll.u32 %v1664, 16
      %v1710 = vrot.slane %v1708, 5
      %v1711 = vor.u32 %v1707, %v1710
      %v1712 = vrot.slane %v1711, 4
      %v1714 = vshll.u32 %v1665, 16
      %v1716 = vrot.slane %v1714, 5
      %v1717 = vsel %vm217, %v1712, %v1716
      %v1719 = vshrl.u32 %v1666, 16
      %v1721 = vrot.slane %v1719, 4
      %v1722 = vshll.u32 %v1666, 16
      %v1724 = vrot.slane %v1722, 5
      %v1725 = vor.u32 %v1721, %v1724
      %v1726 = vrot.slane %v1725, 4
      %v1728 = vshll.u32 %v1667, 16
      %v1730 = vrot.slane %v1728, 5
      %v1731 = vsel %vm217, %v1726, %v1730
      %v1733 = vshrl.u32 %v1668, 16
      %v1735 = vrot.slane %v1733, 4
      %v1736 = vshll.u32 %v1668, 16
      %v1738 = vrot.slane %v1736, 5
      %v1739 = vor.u32 %v1735, %v1738
      %v1740 = vrot.slane %v1739, 4
      %v1742 = vshll.u32 %v1669, 16
      %v1744 = vrot.slane %v1742, 5
      %v1745 = vsel %vm217, %v1740, %v1744
      %v1747 = vshrl.u32 %v1670, 16
      %v1749 = vrot.slane %v1747, 4
      %v1750 = vshll.u32 %v1670, 16
      %v1752 = vrot.slane %v1750, 5
      %v1753 = vor.u32 %v1749, %v1752
      %v1754 = vrot.slane %v1753, 4
      %v1756 = vshll.u32 %v1671, 16
      %v1758 = vrot.slane %v1756, 5
      %v1759 = vsel %vm217, %v1754, %v1758
      %v1761 = vshrl.u32 %v1672, 16
      %v1763 = vrot.slane %v1761, 4
      %v1764 = vshll.u32 %v1672, 16
      %v1766 = vrot.slane %v1764, 5
      %v1767 = vor.u32 %v1763, %v1766
      %v1768 = vrot.slane %v1767, 4
      %v1770 = vshll.u32 %v1673, 16
      %v1772 = vrot.slane %v1770, 5
      %v1773 = vsel %vm217, %v1768, %v1772
      %v1775 = vshrl.u32 %v1674, 16
      %v1777 = vrot.slane %v1775, 4
      %v1778 = vshll.u32 %v1674, 16
      %v1780 = vrot.slane %v1778, 5
      %v1781 = vor.u32 %v1777, %v1780
      %v1782 = vrot.slane %v1781, 4
      %v1784 = vshll.u32 %v1675, 16
      %v1786 = vrot.slane %v1784, 5
      %v1787 = vsel %vm217, %v1782, %v1786
      %s1788 = scalar_lea.vmem %s1, 448
      %v1789 = vld [vmem:[%s1788] sm:$0xf]
      %v1790 = vld [vmem:[%s1788 + $0x4] sm:$0xf]
      %v1791 = vld [vmem:[%s1788 + $0x8] sm:$0xf]
      %v1792 = vld [vmem:[%s1788 + $0xc] sm:$0xf]
      %v1793 = vld [vmem:[%s1788 + $0x10] sm:$0xf]
      %v1794 = vld [vmem:[%s1788 + $0x14] sm:$0xf]
      %v1795 = vld [vmem:[%s1788 + $0x18] sm:$0xf]
      %v1796 = vld [vmem:[%s1788 + $0x1c] sm:$0xf]
      %v1797 = vld [vmem:[%s1788 + $0x20] sm:$0xf]
      %v1798 = vld [vmem:[%s1788 + $0x24] sm:$0xf]
      %v1799 = vld [vmem:[%s1788 + $0x28] sm:$0xf]
      %v1800 = vld [vmem:[%s1788 + $0x2c] sm:$0xf]
      %v1801 = vld [vmem:[%s1788 + $0x30] sm:$0xf]
      %v1802 = vld [vmem:[%s1788 + $0x34] sm:$0xf]
      %v1803 = vld [vmem:[%s1788 + $0x38] sm:$0xf]
      %v1804 = vld [vmem:[%s1788 + $0x3c] sm:$0xf]
      %v1805 = vunpack.c.l.b16 %v1689
      %v1806 = vunpack.c.l.b16 %v1703
      %v1807 = vunpack.c.l.b16 %v1717
      %v1808 = vunpack.c.l.b16 %v1731
      %v1809 = vunpack.c.l.b16 %v1745
      %v1810 = vunpack.c.l.b16 %v1759
      %v1811 = vunpack.c.l.b16 %v1773
      %v1812 = vunpack.c.l.b16 %v1787
      %v1813 = vpack.c.b16 %v1806, %v1805
      %v1814 = vpack.c.b16 %v1808, %v1807
      %v1815 = vpack.c.b16 %v1810, %v1809
      %v1816 = vpack.c.b16 %v1812, %v1811
      %v1837 = vunpack.c.l.b16 %v1789
      %v1838 = vunpack.c.l.b16 %v1790
      %v1839 = vunpack.c.l.b16 %v1791
      %v1840 = vunpack.c.l.b16 %v1792
      %v1841 = vunpack.c.l.b16 %v1793
      %v1842 = vunpack.c.l.b16 %v1794
      %v1843 = vunpack.c.l.b16 %v1795
      %v1844 = vunpack.c.l.b16 %v1796
      %v1845 = vunpack.c.l.b16 %v1797
      %v1846 = vunpack.c.l.b16 %v1798
      %v1847 = vunpack.c.l.b16 %v1799
      %v1848 = vunpack.c.l.b16 %v1800
      %v1849 = vunpack.c.l.b16 %v1801
      %v1850 = vunpack.c.l.b16 %v1802
      %v1851 = vunpack.c.l.b16 %v1803
      %v1852 = vunpack.c.l.b16 %v1804
      %v1853 = vpack.c.b16 %v1838, %v1837
      %v1854 = vpack.c.b16 %v1840, %v1839
      %v1855 = vpack.c.b16 %v1842, %v1841
      %v1856 = vpack.c.b16 %v1844, %v1843
      %v1857 = vpack.c.b16 %v1846, %v1845
      %v1858 = vpack.c.b16 %v1848, %v1847
      %v1859 = vpack.c.b16 %v1850, %v1849
      %v1860 = vpack.c.b16 %v1852, %v1851
      %1869 = vmatprep.subr.bf16.mxu0 0
      %1870 = vmatpush1.bf16.msra.mxu0 %v1860
      %1871 = vmatprep.subr.bf16.mxu0 0
      %1872 = vmatpush1.bf16.msra.mxu0 %v1859
      %1873 = vmatprep.subr.bf16.mxu0 0
      %1874 = vmatpush1.bf16.msra.mxu0 %v1858
      %1875 = vmatprep.subr.bf16.mxu0 0
      %1876 = vmatpush1.bf16.msra.mxu0 %v1857
      %1877 = vmatprep.subr.bf16.mxu0 0
      %1878 = vmatpush1.bf16.msra.mxu0 %v1856
      %1879 = vmatprep.subr.bf16.mxu0 0
      %1880 = vmatpush1.bf16.msra.mxu0 %v1855
      %1881 = vmatprep.subr.bf16.mxu0 0
      %1882 = vmatpush1.bf16.msra.mxu0 %v1854
      %1883 = vmatprep.subr.bf16.mxu0 0
      %1884 = vmatpush1.bf16.msra.mxu0 %v1853
      %1885 = vmatprep.subr.bf16.mxu0 0
      %1886 = vmatpush2.bf16.msra.mxu0 0
      %1887 = vmatprep.subr.bf16.mxu0 0
      %1888 = vmatpush2.bf16.msra.mxu0 0
      %1889 = vmatprep.subr.bf16.mxu0 0
      %1890 = vmatpush2.bf16.msra.mxu0 0
      %1891 = vmatprep.subr.bf16.mxu0 0
      %1892 = vmatpush2.bf16.msra.mxu0 0
      %1893 = vmatprep.subr.bf16.mxu0 0
      %1894 = vmatpush2.bf16.msra.mxu0 0
      %1895 = vmatprep.subr.bf16.mxu0 0
      %1896 = vmatpush2.bf16.msra.mxu0 0
      %1897 = vmatprep.subr.bf16.mxu0 0
      %1898 = vmatpush2.bf16.msra.mxu0 0
      %1899 = vmatprep.subr.bf16.mxu0 0
      %1900 = vmatpush2.bf16.msra.mxu0 0
      %1901 = vmatprep.mubr.bf16.mxu0 0
      %1902 = vmatmul.mubr.bf16.gmra.mxu0 %v1813
      %v1903 = vpop.f32.mrf.mxu0
      %v1904 = vadd.f32 0.0, %v1903
      %v1905 = vpop.f32.mrf.mxu0
      %v1906 = vpop.f32.mrf.mxu0
      %v1907 = vadd.f32 0.0, %v1906
      %v1908 = vpop.f32.mrf.mxu0
      %1909 = vmatprep.mubr.bf16.mxu0 0
      %1910 = vmatmul.mubr.bf16.gmra.mxu0 %v1814
      %v1911 = vpop.f32.mrf.mxu0
      %v1912 = vadd.f32 0.0, %v1911
      %v1913 = vpop.f32.mrf.mxu0
      %v1914 = vpop.f32.mrf.mxu0
      %v1915 = vadd.f32 0.0, %v1914
      %v1916 = vpop.f32.mrf.mxu0
      %1917 = vmatprep.mubr.bf16.mxu0 0
      %1918 = vmatmul.mubr.bf16.gmra.mxu0 %v1815
      %v1919 = vpop.f32.mrf.mxu0
      %v1920 = vadd.f32 0.0, %v1919
      %v1921 = vpop.f32.mrf.mxu0
      %v1922 = vpop.f32.mrf.mxu0
      %v1923 = vadd.f32 0.0, %v1922
      %v1924 = vpop.f32.mrf.mxu0
      %1925 = vmatprep.mubr.bf16.mxu0 0
      %1926 = vmatmul.mubr.bf16.gmra.mxu0 %v1816
      %v1927 = vpop.f32.mrf.mxu0
      %v1928 = vadd.f32 0.0, %v1927
      %v1929 = vpop.f32.mrf.mxu0
      %v1930 = vpop.f32.mrf.mxu0
      %v1931 = vadd.f32 0.0, %v1930
      %v1932 = vpop.f32.mrf.mxu0
      %1933 = vdwg.mxu0
      %v1934 = vadd.f32 %v1652, %v1904
      %v1935 = vadd.f32 %v1653, %v1907
      %v1936 = vadd.f32 %v1654, %v1912
      %v1937 = vadd.f32 %v1655, %v1915
      %v1938 = vadd.f32 %v1656, %v1920
      %v1939 = vadd.f32 %v1657, %v1923
      %v1940 = vadd.f32 %v1658, %v1928
      %v1941 = vadd.f32 %v1659, %v1931
      %v1942 = vld [vmem:[%s1489] sm:$0xe]
      %v1943 = vld [vmem:[%s1489 + $0x8] sm:$0xe]
      %v1944 = vld [vmem:[%s1489 + $0x10] sm:$0xe]
      %v1945 = vld [vmem:[%s1489 + $0x18] sm:$0xe]
      %v1946 = vld [vmem:[%s1489 + $0x20] sm:$0xe]
      %v1947 = vld [vmem:[%s1489 + $0x28] sm:$0xe]
      %v1948 = vld [vmem:[%s1489 + $0x30] sm:$0xe]
      %v1949 = vld [vmem:[%s1489 + $0x38] sm:$0xe]
      %v1966 = vrot.slane %v1942, 5
      %v1967 = vrot.slane %v1966, 4
      %v1968 = vrot.slane %v1661, 5
      %v1969 = vsel %vm639, %v1967, %v1968
      %v1970 = vrot.slane %v1943, 5
      %v1971 = vrot.slane %v1970, 4
      %v1972 = vrot.slane %v1663, 5
      %v1973 = vsel %vm639, %v1971, %v1972
      %v1974 = vrot.slane %v1944, 5
      %v1975 = vrot.slane %v1974, 4
      %v1976 = vrot.slane %v1665, 5
      %v1977 = vsel %vm639, %v1975, %v1976
      %v1978 = vrot.slane %v1945, 5
      %v1979 = vrot.slane %v1978, 4
      %v1980 = vrot.slane %v1667, 5
      %v1981 = vsel %vm639, %v1979, %v1980
      %v1982 = vrot.slane %v1946, 5
      %v1983 = vrot.slane %v1982, 4
      %v1984 = vrot.slane %v1669, 5
      %v1985 = vsel %vm639, %v1983, %v1984
      %v1986 = vrot.slane %v1947, 5
      %v1987 = vrot.slane %v1986, 4
      %v1988 = vrot.slane %v1671, 5
      %v1989 = vsel %vm639, %v1987, %v1988
      %v1990 = vrot.slane %v1948, 5
      %v1991 = vrot.slane %v1990, 4
      %v1992 = vrot.slane %v1673, 5
      %v1993 = vsel %vm639, %v1991, %v1992
      %v1994 = vrot.slane %v1949, 5
      %v1995 = vrot.slane %v1994, 4
      %v1996 = vrot.slane %v1675, 5
      %v1997 = vsel %vm639, %v1995, %v1996
      %s1998 = scalar_lea.vmem %s1, 512
      %v1999 = vld [vmem:[%s1998] sm:$0xf]
      %v2000 = vld [vmem:[%s1998 + $0x4] sm:$0xf]
      %v2001 = vld [vmem:[%s1998 + $0x8] sm:$0xf]
      %v2002 = vld [vmem:[%s1998 + $0xc] sm:$0xf]
      %v2003 = vld [vmem:[%s1998 + $0x10] sm:$0xf]
      %v2004 = vld [vmem:[%s1998 + $0x14] sm:$0xf]
      %v2005 = vld [vmem:[%s1998 + $0x18] sm:$0xf]
      %v2006 = vld [vmem:[%s1998 + $0x1c] sm:$0xf]
      %v2007 = vld [vmem:[%s1998 + $0x20] sm:$0xf]
      %v2008 = vld [vmem:[%s1998 + $0x24] sm:$0xf]
      %v2009 = vld [vmem:[%s1998 + $0x28] sm:$0xf]
      %v2010 = vld [vmem:[%s1998 + $0x2c] sm:$0xf]
      %v2011 = vld [vmem:[%s1998 + $0x30] sm:$0xf]
      %v2012 = vld [vmem:[%s1998 + $0x34] sm:$0xf]
      %v2013 = vld [vmem:[%s1998 + $0x38] sm:$0xf]
      %v2014 = vld [vmem:[%s1998 + $0x3c] sm:$0xf]
      %v2015 = vunpack.c.l.b16 %v1969
      %v2016 = vunpack.c.l.b16 %v1973
      %v2017 = vunpack.c.l.b16 %v1977
      %v2018 = vunpack.c.l.b16 %v1981
      %v2019 = vunpack.c.l.b16 %v1985
      %v2020 = vunpack.c.l.b16 %v1989
      %v2021 = vunpack.c.l.b16 %v1993
      %v2022 = vunpack.c.l.b16 %v1997
      %v2023 = vpack.c.b16 %v2016, %v2015
      %v2024 = vpack.c.b16 %v2018, %v2017
      %v2025 = vpack.c.b16 %v2020, %v2019
      %v2026 = vpack.c.b16 %v2022, %v2021
      %v2047 = vunpack.c.l.b16 %v1999
      %v2048 = vunpack.c.l.b16 %v2000
      %v2049 = vunpack.c.l.b16 %v2001
      %v2050 = vunpack.c.l.b16 %v2002
      %v2051 = vunpack.c.l.b16 %v2003
      %v2052 = vunpack.c.l.b16 %v2004
      %v2053 = vunpack.c.l.b16 %v2005
      %v2054 = vunpack.c.l.b16 %v2006
      %v2055 = vunpack.c.l.b16 %v2007
      %v2056 = vunpack.c.l.b16 %v2008
      %v2057 = vunpack.c.l.b16 %v2009
      %v2058 = vunpack.c.l.b16 %v2010
      %v2059 = vunpack.c.l.b16 %v2011
      %v2060 = vunpack.c.l.b16 %v2012
      %v2061 = vunpack.c.l.b16 %v2013
      %v2062 = vunpack.c.l.b16 %v2014
      %v2063 = vpack.c.b16 %v2048, %v2047
      %v2064 = vpack.c.b16 %v2050, %v2049
      %v2065 = vpack.c.b16 %v2052, %v2051
      %v2066 = vpack.c.b16 %v2054, %v2053
      %v2067 = vpack.c.b16 %v2056, %v2055
      %v2068 = vpack.c.b16 %v2058, %v2057
      %v2069 = vpack.c.b16 %v2060, %v2059
      %v2070 = vpack.c.b16 %v2062, %v2061
      %2079 = vmatprep.subr.bf16.mxu0 0
      %2080 = vmatpush1.bf16.msra.mxu0 %v2070
      %2081 = vmatprep.subr.bf16.mxu0 0
      %2082 = vmatpush1.bf16.msra.mxu0 %v2069
      %2083 = vmatprep.subr.bf16.mxu0 0
      %2084 = vmatpush1.bf16.msra.mxu0 %v2068
      %2085 = vmatprep.subr.bf16.mxu0 0
      %2086 = vmatpush1.bf16.msra.mxu0 %v2067
      %2087 = vmatprep.subr.bf16.mxu0 0
      %2088 = vmatpush1.bf16.msra.mxu0 %v2066
      %2089 = vmatprep.subr.bf16.mxu0 0
      %2090 = vmatpush1.bf16.msra.mxu0 %v2065
      %2091 = vmatprep.subr.bf16.mxu0 0
      %2092 = vmatpush1.bf16.msra.mxu0 %v2064
      %2093 = vmatprep.subr.bf16.mxu0 0
      %2094 = vmatpush1.bf16.msra.mxu0 %v2063
      %2095 = vmatprep.subr.bf16.mxu0 0
      %2096 = vmatpush2.bf16.msra.mxu0 0
      %2097 = vmatprep.subr.bf16.mxu0 0
      %2098 = vmatpush2.bf16.msra.mxu0 0
      %2099 = vmatprep.subr.bf16.mxu0 0
      %2100 = vmatpush2.bf16.msra.mxu0 0
      %2101 = vmatprep.subr.bf16.mxu0 0
      %2102 = vmatpush2.bf16.msra.mxu0 0
      %2103 = vmatprep.subr.bf16.mxu0 0
      %2104 = vmatpush2.bf16.msra.mxu0 0
      %2105 = vmatprep.subr.bf16.mxu0 0
      %2106 = vmatpush2.bf16.msra.mxu0 0
      %2107 = vmatprep.subr.bf16.mxu0 0
      %2108 = vmatpush2.bf16.msra.mxu0 0
      %2109 = vmatprep.subr.bf16.mxu0 0
      %2110 = vmatpush2.bf16.msra.mxu0 0
      %2111 = vmatprep.mubr.bf16.mxu0 0
      %2112 = vmatmul.mubr.bf16.gmra.mxu0 %v2023
      %v2113 = vpop.f32.mrf.mxu0
      %v2114 = vadd.f32 0.0, %v2113
      %v2115 = vpop.f32.mrf.mxu0
      %v2116 = vpop.f32.mrf.mxu0
      %v2117 = vadd.f32 0.0, %v2116
      %v2118 = vpop.f32.mrf.mxu0
      %2119 = vmatprep.mubr.bf16.mxu0 0
      %2120 = vmatmul.mubr.bf16.gmra.mxu0 %v2024
      %v2121 = vpop.f32.mrf.mxu0
      %v2122 = vadd.f32 0.0, %v2121
      %v2123 = vpop.f32.mrf.mxu0
      %v2124 = vpop.f32.mrf.mxu0
      %v2125 = vadd.f32 0.0, %v2124
      %v2126 = vpop.f32.mrf.mxu0
      %2127 = vmatprep.mubr.bf16.mxu0 0
      %2128 = vmatmul.mubr.bf16.gmra.mxu0 %v2025
      %v2129 = vpop.f32.mrf.mxu0
      %v2130 = vadd.f32 0.0, %v2129
      %v2131 = vpop.f32.mrf.mxu0
      %v2132 = vpop.f32.mrf.mxu0
      %v2133 = vadd.f32 0.0, %v2132
      %v2134 = vpop.f32.mrf.mxu0
      %2135 = vmatprep.mubr.bf16.mxu0 0
      %2136 = vmatmul.mubr.bf16.gmra.mxu0 %v2026
      %v2137 = vpop.f32.mrf.mxu0
      %v2138 = vadd.f32 0.0, %v2137
      %v2139 = vpop.f32.mrf.mxu0
      %v2140 = vpop.f32.mrf.mxu0
      %v2141 = vadd.f32 0.0, %v2140
      %v2142 = vpop.f32.mrf.mxu0
      %2143 = vdwg.mxu0
      %v2144 = vadd.f32 %v1934, %v2114
      %v2145 = vadd.f32 %v1935, %v2117
      %v2146 = vadd.f32 %v1936, %v2122
      %v2147 = vadd.f32 %v1937, %v2125
      %v2148 = vadd.f32 %v1938, %v2130
      %v2149 = vadd.f32 %v1939, %v2133
      %v2150 = vadd.f32 %v1940, %v2138
      %v2151 = vadd.f32 %v1941, %v2141
      %v2152 = vpack.c.bf16 %v2145, %v2144
      %v2153 = vpack.c.bf16 %v2147, %v2146
      %v2154 = vpack.c.bf16 %v2149, %v2148
      %v2155 = vpack.c.bf16 %v2151, %v2150
      %v2160 = vunpack.c.l.b16 %v2152
      %v2161 = vunpack.c.h.b16 %v2152
      %v2162 = vunpack.c.l.b16 %v2153
      %v2163 = vunpack.c.h.b16 %v2153
      %v2164 = vunpack.c.l.b16 %v2154
      %v2165 = vunpack.c.h.b16 %v2154
      %v2166 = vunpack.c.l.b16 %v2155
      %v2167 = vunpack.c.h.b16 %v2155
      %v2168 = vpack.c.b16 %v2160, %v2160
      %v2169 = vpack.c.b16 %v2161, %v2161
      %v2170 = vpack.c.b16 %v2162, %v2162
      %v2171 = vpack.c.b16 %v2163, %v2163
      %v2172 = vpack.c.b16 %v2164, %v2164
      %v2173 = vpack.c.b16 %v2165, %v2165
      %v2174 = vpack.c.b16 %v2166, %v2166
      %v2175 = vpack.c.b16 %v2167, %v2167
      %2184 = vst [vmem:[%s177] sm:$0xf] %v2168
      %2185 = vst [vmem:[%s177 + $0x4] sm:$0xf] %v2169
      %2186 = vst [vmem:[%s177 + $0x8] sm:$0xf] %v2170
      %2187 = vst [vmem:[%s177 + $0xc] sm:$0xf] %v2171
      %2188 = vst [vmem:[%s177 + $0x10] sm:$0xf] %v2172
      %2189 = vst [vmem:[%s177 + $0x14] sm:$0xf] %v2173
      %2190 = vst [vmem:[%s177 + $0x18] sm:$0xf] %v2174
      %2191 = vst [vmem:[%s177 + $0x1c] sm:$0xf] %v2175
      %v2192 = vadd.f32 %v2144, %v2145
      %v2193 = vadd.f32 %v2192, %v2146
      %v2194 = vadd.f32 %v2193, %v2147
      %v2195 = vadd.f32 %v2194, %v2148
      %v2196 = vadd.f32 %v2195, %v2149
      %v2197 = vadd.f32 %v2196, %v2150
      %v2198 = vadd.f32 %v2197, %v2151
      %v2199 = vrot.slane %v2198, 4
      %v2200 = vadd.f32 %v2198, %v2199
      %v2201 = vrot.slane %v2200, 2
      %v2202 = vadd.f32 %v2200, %v2201
      %v2203 = vrot.slane %v2202, 1
      %v2204 = vadd.f32 %v2202, %v2203
      %v2205 = vmul.f32 %v2144, %v2144
      %v2206 = vmul.f32 %v2145, %v2145
      %v2207 = vmul.f32 %v2146, %v2146
      %v2208 = vmul.f32 %v2147, %v2147
      %v2209 = vmul.f32 %v2148, %v2148
      %v2210 = vmul.f32 %v2149, %v2149
      %v2211 = vmul.f32 %v2150, %v2150
      %v2212 = vmul.f32 %v2151, %v2151
      %v2213 = vadd.f32 %v2205, %v2206
      %v2214 = vadd.f32 %v2213, %v2207
      %v2215 = vadd.f32 %v2214, %v2208
      %v2216 = vadd.f32 %v2215, %v2209
      %v2217 = vadd.f32 %v2216, %v2210
      %v2218 = vadd.f32 %v2217, %v2211
      %v2219 = vadd.f32 %v2218, %v2212
      %v2220 = vrot.slane %v2219, 4
      %v2221 = vadd.f32 %v2219, %v2220
      %v2222 = vrot.slane %v2221, 2
      %v2223 = vadd.f32 %v2221, %v2222
      %v2224 = vrot.slane %v2223, 1
      %v2225 = vadd.f32 %v2223, %v2224
      %vm2226 = vcmask 1040384
      %v2227 = vsel %vm2226, %v2204, %v2225
      %2228 = vst [vmem:[%s181] sm:$0x3] %v2227
      %p2229 = scmp.lt.s32.totalorder %s15, 1
      %s2230 = scalar_select %p2229, %s15, 1
      %s2231 = smul.addr %s2230, 8
      %s2232 = smul.addr %s2231, 4
      %s2233 = scalar_lea.vmem %s2, %s2232
      %p2234 = scmp.lt.s32.totalorder %s15, 1
      %s2235 = scalar_select %p2234, %s15, 1
      %s2236 = smul.addr %s2235, 2
      %s2237 = scalar_lea.vmem %s3, %s2236
      // Predicated region
      $region29: #{residual_block_forward.7} parent=27 // pred_check
        %p2238 = pneg %p80
      $region30: #{residual_block_forward.7} parent=27 // pred_check_branch
        %2240 = sbr.rel (%p2238) target = $region32
      $region31: #{residual_block_forward.7} parent=27 // pred_region
        _
      $region32: #{residual_block_forward.7} parent=27 // pred_fallthru
        _
      // Predicated region
      $region33: #{residual_block_forward.7} parent=27 // pred_check
        %p2241 = pneg %p106
      $region34: #{residual_block_forward.7} parent=27 // pred_check_branch
        %2243 = sbr.rel (%p2241) target = $region36
      $region35: #{residual_block_forward.7} parent=27 // pred_region
        _
      $region36: #{residual_block_forward.7} parent=27 // pred_fallthru
        _
    $region28: #{residual_block_forward.7} parent=5 // pred_fallthru
      _
    %p2244 = scmp.le.s32.totalorder 2, %s10
    // Predicated region
    $region37: #{residual_block_forward.7} parent=5 // pred_check
      %p2245 = pneg %p2244
    $region38: #{residual_block_forward.7} parent=5 // pred_check_branch
      %2247 = sbr.rel (%p2245) target = $region40
    $region39: #{residual_block_forward.7} parent=5 // pred_region
      %s2248 = ssub.s32 %s10, 2
      // Predicated region
      $region41: #{residual_block_forward.7} parent=39 // pred_check
        %p2249 = pneg %p86
      $region42: #{residual_block_forward.7} parent=39 // pred_check_branch
        %2251 = sbr.rel (%p2249) target = $region44
      $region43: #{residual_block_forward.7} parent=39 // pred_region
        %p2252 = scmp.lt.s32.totalorder %s16, 1
        %s2253 = scalar_select %p2252, %s16, 1
        %s2254 = smul.addr %s2253, 8
        %s2255 = smul.addr %s2254, 4
        %s2256 = scalar_lea.vmem %s2, %s2255
      $region44: #{residual_block_forward.7} parent=39 // pred_fallthru
        _
      // Predicated region
      $region45: #{residual_block_forward.7} parent=39 // pred_check
        %p2257 = pneg %p112
      $region46: #{residual_block_forward.7} parent=39 // pred_check_branch
        %2259 = sbr.rel (%p2257) target = $region48
      $region47: #{residual_block_forward.7} parent=39 // pred_region
        %p2260 = scmp.lt.s32.totalorder %s16, 1
        %s2261 = scalar_select %p2260, %s16, 1
        %s2262 = smul.addr %s2261, 2
        %s2263 = scalar_lea.vmem %s3, %s2262
      $region48: #{residual_block_forward.7} parent=39 // pred_fallthru
        _
    $region40: #{residual_block_forward.7} parent=5 // pred_fallthru
      _
  $region6: #{residual_block_forward.7} parent=0 // loop_footer
    %s14 = sadd.s32 1, %s10
  $region7: #{residual_block_forward.7} parent=0 // loop_footer_branch
    %9 = sbr.rel target = $region3
  $region8: #{residual_block_forward.7} parent=0 // loop_exit
    _

</llo_original>
